<compile_context>
chip_gen: v7x
topology: tpu7x:2x2x1
jax: 0.10.0
libtpu: 0.0.40
codegen_flags: <defaults>
</compile_context>

<pallas_src>
import functools

import jax
import jax.numpy as jnp
from jax import lax
from jax.experimental import pallas as pl
from jax.experimental.pallas import tpu as pltpu

IMAGE_SIZE = 16          # global the torch module relies on
BN_EPS = 1e-5            # nn.BatchNorm2d default
LEAKY_SLOPE = 0.01       # nn.LeakyReLU default
LANE = 128


def _round_up(n, m):
    return ((n + m - 1) // m) * m


def _pad_lanes(a, n_to, value=0.0):
    """Zero/constant-pad the last axis of `a` up to `n_to`."""
    pad = n_to - a.shape[-1]
    if pad == 0:
        return a
    cfg = [(0, 0)] * (a.ndim - 1) + [(0, pad)]
    return jnp.pad(a, cfg, constant_values=value)


_VMEM = pl.BlockSpec(memory_space=pltpu.MemorySpace.VMEM)


# ---------------------------------------------------------------------------
# Pallas kernels
# ---------------------------------------------------------------------------
def _mm_bn_act_kernel(x_ref, w_ref, b_ref, g_ref, beta_ref, o_ref, *, act):
    """Fused im2col-matmul + bias + batch-stat BatchNorm + activation.

    x: (M, K) bf16, w: (K, Np) bf16 (Np multiple of 128); epilogue in f32.
    """
    y = jnp.dot(x_ref[...], w_ref[...], preferred_element_type=jnp.float32)
    y = y + b_ref[...]
    # training-mode BatchNorm over the (N*OH*OW) row axis, one-pass variance.
    mean = jnp.mean(y, axis=0, keepdims=True)
    var = jnp.maximum(jnp.mean(y * y, axis=0, keepdims=True) - mean * mean, 0.0)
    y = (y - mean) * lax.rsqrt(var + BN_EPS) * g_ref[...] + beta_ref[...]
    if act == "leaky_relu":
        y = jnp.where(y >= 0, y, LEAKY_SLOPE * y)
    else:  # sigmoid via tanh on the EUP; result exactly within [0, 1]
        y = 0.5 * (jnp.tanh(0.5 * y) + 1.0)
    o_ref[...] = y


def _latent_kernel(x_ref, wmv_ref, bmv_ref, eps_ref, wd_ref, bd_ref,
                   mu_ref, lv_ref, d_ref):
    """Fused qz_mu + qz_var + reparameterize + decoder_input.

    x:   (B, S)      bf16 flattened encoder output
    wmv: (S, 2*Lp)   bf16  [W_mu.T | W_var.T] (each lane-padded to Lp)
    eps: (B, Lp)     f32   (padded lanes are zero)
    wd:  (Lp, Sp)    bf16  decoder_input weight (padded rows are zero)
    """
    lp = mu_ref.shape[-1]
    y = jnp.dot(x_ref[...], wmv_ref[...], preferred_element_type=jnp.float32)
    y = y + bmv_ref[...]
    mu = y[:, :lp]
    log_var = y[:, lp:2 * lp]
    # reparameterize: std = exp(logvar), exactly as the torch module writes it.
    z = jnp.exp(log_var) * eps_ref[...] + mu
    d = jnp.dot(z.astype(jnp.bfloat16), wd_ref[...],
                preferred_element_type=jnp.float32) + bd_ref[...]
    mu_ref[...] = mu
    lv_ref[...] = log_var
    d_ref[...] = d


# ---------------------------------------------------------------------------
# Kernel wrappers
# ---------------------------------------------------------------------------
def conv_matmul(cols, wmat, b, gamma, beta, *, act):
    """cols: (M, K) f32, wmat: (K, Cout). Returns (M, Cout) f32."""
    M, _ = cols.shape
    Cout = wmat.shape[1]
    Np = _round_up(Cout, LANE)                      # lane-dense output
    kern = functools.partial(_mm_bn_act_kernel, act=act)
    out = pl.pallas_call(
        kern,
        out_shape=jax.ShapeDtypeStruct((M, Np), jnp.float32),
        in_specs=[_VMEM] * 5,
        out_specs=_VMEM,
    )(
        cols.astype(jnp.bfloat16),
        _pad_lanes(wmat.astype(jnp.float32), Np).astype(jnp.bfloat16),
        _pad_lanes(b.reshape(1, Cout).astype(jnp.float32), Np),
        _pad_lanes(gamma.reshape(1, Cout).astype(jnp.float32), Np, 1.0),
        _pad_lanes(beta.reshape(1, Cout).astype(jnp.float32), Np),
    )
    return out[:, :Cout]


def latent_path(flat, params, eps, latent_dim):
    """flat: (B, S) f32 -> (mu, log_var, decoder_input) via one fused kernel."""
    B, S = flat.shape
    Lp = _round_up(latent_dim, LANE)
    Sd = params["dec_in_W"].shape[0]                # start_size
    Sp = _round_up(Sd, LANE)

    wmv = jnp.concatenate(
        [_pad_lanes(params["qz_mu_W"].T.astype(jnp.float32), Lp),
         _pad_lanes(params["qz_var_W"].T.astype(jnp.float32), Lp)],
        axis=-1).astype(jnp.bfloat16)                           # (S, 2*Lp)
    bmv = jnp.concatenate(
        [_pad_lanes(params["qz_mu_b"].reshape(1, -1).astype(jnp.float32), Lp),
         _pad_lanes(params["qz_var_b"].reshape(1, -1).astype(jnp.float32), Lp)],
        axis=-1)                                                # (1, 2*Lp)
    wd = jnp.pad(params["dec_in_W"].T.astype(jnp.float32),
                 ((0, Lp - latent_dim), (0, Sp - Sd))).astype(jnp.bfloat16)
    bd = _pad_lanes(params["dec_in_b"].reshape(1, -1).astype(jnp.float32), Sp)
    eps_p = _pad_lanes(eps.astype(jnp.float32), Lp)

    mu, lv, d = pl.pallas_call(
        _latent_kernel,
        out_shape=(jax.ShapeDtypeStruct((B, Lp), jnp.float32),
                   jax.ShapeDtypeStruct((B, Lp), jnp.float32),
                   jax.ShapeDtypeStruct((B, Sp), jnp.float32)),
        in_specs=[_VMEM] * 6,
        out_specs=(_VMEM, _VMEM, _VMEM),
    )(flat.astype(jnp.bfloat16), wmv, bmv, eps_p, wd, bd)
    return mu[:, :latent_dim], lv[:, :latent_dim], d[:, :Sd]


# ---------------------------------------------------------------------------
# JAX glue: NHWC im2col / zero-dilation (pure data movement, no heavy compute)
# ---------------------------------------------------------------------------
def _im2col_nhwc(xp, k, stride):
    """xp: already-padded NHWC input. Column order: (kh, kw, ci)."""
    N, H, Wd, C = xp.shape
    OH = (H - k) // stride + 1
    OW = (Wd - k) // stride + 1
    slabs = []
    for i in range(k):
        for j in range(k):
            slabs.append(
                xp[:, i:i + stride * (OH - 1) + 1:stride,
                      j:j + stride * (OW - 1) + 1:stride, :])
    cols = jnp.concatenate(slabs, axis=-1)          # (N, OH, OW, k*k*C)
    return cols.reshape(N * OH * OW, k * k * C), OH, OW


def conv_bn_lrelu(x, W, b, gamma, beta):
    """Conv2d(k=5, s=2, p=2) + BatchNorm2d + LeakyReLU.  x: NHWC."""
    N = x.shape[0]
    Cout = W.shape[0]                               # torch layout (Cout,Cin,k,k)
    xp = jnp.pad(x, ((0, 0), (2, 2), (2, 2), (0, 0)))
    cols, OH, OW = _im2col_nhwc(xp, 5, 2)
    wmat = W.transpose(2, 3, 1, 0).reshape(-1, Cout)   # (k*k*Cin, Cout), (kh,kw,ci) rows
    out = conv_matmul(cols, wmat, b, gamma, beta, act="leaky_relu")
    return out.reshape(N, OH, OW, Cout)


def deconv_bn_act(x, W, b, gamma, beta, *, act):
    """ConvTranspose2d(k=5, s=2, p=2, output_padding=1) + BN + act.  x: NHWC."""
    k, s, p, op = 5, 2, 2, 1
    N, H, Wd, Cin = x.shape
    Cout = W.shape[1]                               # torch layout (Cin,Cout,k,k)
    # zero-dilate the input by the stride, then pad for a stride-1 correlation
    Hd, Wdd = (H - 1) * s + 1, (Wd - 1) * s + 1
    xd = jnp.zeros((N, Hd, Wdd, Cin), x.dtype).at[:, ::s, ::s, :].set(x)
    lo, hi = k - 1 - p, k - 1 - p + op
    xp = jnp.pad(xd, ((0, 0), (lo, hi), (lo, hi), (0, 0)))
    cols, OH, OW = _im2col_nhwc(xp, k, 1)
    # equivalent correlation kernel: flip spatially, swap in/out channels
    Wc = jnp.flip(W, axis=(2, 3)).transpose(1, 0, 2, 3)  # (Cout, Cin, k, k)
    wmat = Wc.transpose(2, 3, 1, 0).reshape(-1, Cout)
    out = conv_matmul(cols, wmat, b, gamma, beta, act=act)
    return out.reshape(N, OH, OW, Cout)


# ---------------------------------------------------------------------------
# GaussianVAE parameters + forward
# ---------------------------------------------------------------------------
def init_params(key, hidden_channels, latent_dim):
    last_dim = IMAGE_SIZE // (2 ** len(hidden_channels))
    start_size = hidden_channels[-1] * last_dim * last_dim
    keys = iter(jax.random.split(key, 32))
    p = {"encoder": [], "decoder": []}

    in_c = 3
    for h in hidden_channels:
        p["encoder"].append({
            "W": 0.05 * jax.random.normal(next(keys), (h, in_c, 5, 5), jnp.float32),
            "b": 0.01 * jax.random.normal(next(keys), (h,), jnp.float32),
            "gamma": jnp.ones((h,), jnp.float32),
            "beta": jnp.zeros((h,), jnp.float32),
        })
        in_c = h

    p["qz_mu_W"] = 0.05 * jax.random.normal(next(keys), (latent_dim, start_size), jnp.float32)
    p["qz_mu_b"] = 0.01 * jax.random.normal(next(keys), (latent_dim,), jnp.float32)
    p["qz_var_W"] = 0.05 * jax.random.normal(next(keys), (latent_dim, start_size), jnp.float32)
    p["qz_var_b"] = 0.01 * jax.random.normal(next(keys), (latent_dim,), jnp.float32)
    p["dec_in_W"] = 0.05 * jax.random.normal(next(keys), (start_size, latent_dim), jnp.float32)
    p["dec_in_b"] = 0.01 * jax.random.normal(next(keys), (start_size,), jnp.float32)

    for i in range(-1, -len(hidden_channels), -1):
        cin, cout = hidden_channels[i], hidden_channels[i - 1]
        p["decoder"].append({
            "W": 0.05 * jax.random.normal(next(keys), (cin, cout, 5, 5), jnp.float32),
            "b": 0.01 * jax.random.normal(next(keys), (cout,), jnp.float32),
            "gamma": jnp.ones((cout,), jnp.float32),
            "beta": jnp.zeros((cout,), jnp.float32),
        })

    p["final_W"] = 0.05 * jax.random.normal(next(keys), (hidden_channels[0], 3, 5, 5), jnp.float32)
    p["final_b"] = 0.01 * jax.random.normal(next(keys), (3,), jnp.float32)
    p["final_gamma"] = jnp.ones((3,), jnp.float32)
    p["final_beta"] = jnp.zeros((3,), jnp.float32)
    return p, last_dim


def gaussian_vae_forward(params, x, eps_key, hidden_channels, latent_dim, last_dim):
    N = x.shape[0]

    # ---- encode (NHWC internally) -----------------------------------------
    h = jnp.transpose(x, (0, 2, 3, 1))              # NCHW -> NHWC, once
    for lp in params["encoder"]:
        h = conv_bn_lrelu(h, lp["W"], lp["b"], lp["gamma"], lp["beta"])
    # torch.flatten(start_dim=1) flattens in NCHW order
    flat = jnp.transpose(h, (0, 3, 1, 2)).reshape(N, -1)

    # ---- fused latent path: mu / logvar / reparam / decoder_input ----------
    # TODO(synk): torch.randn_like uses torch's global RNG; eps comes from an explicit JAX key.
    eps = jax.random.normal(eps_key, (N, latent_dim), jnp.float32)
    mu, log_var, d = latent_path(flat, params, eps, latent_dim)

    # ---- decode -------------------------------------------------------------
    # torch: result.view(-1, C, last_dim, last_dim); convert to NHWC once
    h = d.reshape(N, hidden_channels[-1], last_dim, last_dim).transpose(0, 2, 3, 1)
    for lp in params["decoder"]:
        h = deconv_bn_act(h, lp["W"], lp["b"], lp["gamma"], lp["beta"], act="leaky_relu")
    h = deconv_bn_act(h, params["final_W"], params["final_b"],
                      params["final_gamma"], params["final_beta"], act="sigmoid")
    recons = jnp.transpose(h, (0, 3, 1, 2))         # NHWC -> NCHW for the API

    return [recons, x, mu, log_var]


# ---------------------------------------------------------------------------
if __name__ == "__main__":
    hidden_channels = [8, 16]
    latent_dim = 16
    batch = 2

    key = jax.random.PRNGKey(0)
    pkey, xkey, ekey = jax.random.split(key, 3)

    params, last_dim = init_params(pkey, hidden_channels, latent_dim)
    x = jax.random.uniform(xkey, (batch, 3, IMAGE_SIZE, IMAGE_SIZE), jnp.float32)

    fwd = jax.jit(functools.partial(
        gaussian_vae_forward,
        hidden_channels=tuple(hidden_channels),
        latent_dim=latent_dim,
        last_dim=last_dim,
    ))
    recons, inp, mu, log_var = fwd(params, x, ekey)
    jax.block_until_ready((recons, inp, mu, log_var))

    assert recons.shape == x.shape, recons.shape
    assert mu.shape == (batch, latent_dim)
    assert log_var.shape == (batch, latent_dim)
    assert bool(jnp.all(jnp.isfinite(recons)))
    assert bool(jnp.all((recons >= 0.0) & (recons <= 1.0)))  # sigmoid output range

    print("KERNEL_OK")
</pallas_src>

<mosaic_0001>
module attributes {stable_mosaic.version = 11 : i64} {
  func.func @_mm_bn_act_kernel(%arg0: memref<128x75xbf16, #tpu.memory_space<vmem>>, %arg1: memref<75x128xbf16, #tpu.memory_space<vmem>>, %arg2: memref<1x128xf32, #tpu.memory_space<vmem>>, %arg3: memref<1x128xf32, #tpu.memory_space<vmem>>, %arg4: memref<1x128xf32, #tpu.memory_space<vmem>>, %arg5: memref<128x128xf32, #tpu.memory_space<vmem>>) attributes {dimension_semantics = [], scalar_prefetch = 0 : i64, scratch_operands = 0 : i64, tpu.core_type = #tpu.core_type<tc>} {
    %c0 = arith.constant 0 : index
    %c0_0 = arith.constant 0 : index
    %0 = vector.load %arg0[%c0, %c0_0] : memref<128x75xbf16, #tpu.memory_space<vmem>>, vector<128x75xbf16>
    %c0_1 = arith.constant 0 : index
    %c0_2 = arith.constant 0 : index
    %1 = vector.load %arg1[%c0_1, %c0_2] : memref<75x128xbf16, #tpu.memory_space<vmem>>, vector<75x128xbf16>
    %cst = arith.constant dense<0.000000e+00> : vector<128x128xf32>
    %2 = tpu.matmul %0, %1, %cst {dimension_numbers = #tpu.dot_dimension_numbers<[1], [0], [0], [1], [0, 0, 1, 1], [], []>} : vector<128x75xbf16>, vector<75x128xbf16>, vector<128x128xf32> -> vector<128x128xf32>
    %c0_3 = arith.constant 0 : index
    %c0_4 = arith.constant 0 : index
    %3 = vector.load %arg2[%c0_3, %c0_4] : memref<1x128xf32, #tpu.memory_space<vmem>>, vector<1x128xf32>
    %4 = vector.broadcast %3 : vector<1x128xf32> to vector<128x128xf32>
    %5 = arith.addf %2, %4 : vector<128x128xf32>
    %cst_5 = arith.constant dense<0.000000e+00> : vector<128xf32>
    %6 = vector.multi_reduction <add>, %5, %cst_5 [0] : vector<128x128xf32> to vector<128xf32>
    %7 = vector.shape_cast %6 : vector<128xf32> to vector<1x128xf32>
    %cst_6 = arith.constant 1.280000e+02 : f32
    %8 = vector.broadcast %cst_6 : f32 to vector<1x128xf32>
    %9 = arith.divf %7, %8 : vector<1x128xf32>
    %10 = arith.mulf %5, %5 : vector<128x128xf32>
    %cst_7 = arith.constant dense<0.000000e+00> : vector<128xf32>
    %11 = vector.multi_reduction <add>, %10, %cst_7 [0] : vector<128x128xf32> to vector<128xf32>
    %12 = vector.shape_cast %11 : vector<128xf32> to vector<1x128xf32>
    %cst_8 = arith.constant 1.280000e+02 : f32
    %13 = vector.broadcast %cst_8 : f32 to vector<1x128xf32>
    %14 = arith.divf %12, %13 : vector<1x128xf32>
    %15 = arith.mulf %9, %9 : vector<1x128xf32>
    %16 = arith.subf %14, %15 : vector<1x128xf32>
    %cst_9 = arith.constant 0.000000e+00 : f32
    %17 = vector.broadcast %cst_9 : f32 to vector<1x128xf32>
    %18 = arith.maximumf %16, %17 : vector<1x128xf32>
    %19 = vector.broadcast %9 : vector<1x128xf32> to vector<128x128xf32>
    %20 = arith.subf %5, %19 : vector<128x128xf32>
    %cst_10 = arith.constant 9.99999974E-6 : f32
    %21 = vector.broadcast %cst_10 : f32 to vector<1x128xf32>
    %22 = arith.addf %18, %21 : vector<1x128xf32>
    %23 = math.rsqrt %22 : vector<1x128xf32>
    %24 = vector.broadcast %23 : vector<1x128xf32> to vector<128x128xf32>
    %25 = arith.mulf %20, %24 : vector<128x128xf32>
    %c0_11 = arith.constant 0 : index
    %c0_12 = arith.constant 0 : index
    %26 = vector.load %arg3[%c0_11, %c0_12] : memref<1x128xf32, #tpu.memory_space<vmem>>, vector<1x128xf32>
    %27 = vector.broadcast %26 : vector<1x128xf32> to vector<128x128xf32>
    %28 = arith.mulf %25, %27 : vector<128x128xf32>
    %c0_13 = arith.constant 0 : index
    %c0_14 = arith.constant 0 : index
    %29 = vector.load %arg4[%c0_13, %c0_14] : memref<1x128xf32, #tpu.memory_space<vmem>>, vector<1x128xf32>
    %30 = vector.broadcast %29 : vector<1x128xf32> to vector<128x128xf32>
    %31 = arith.addf %28, %30 : vector<128x128xf32>
    %cst_15 = arith.constant 0.000000e+00 : f32
    %32 = vector.broadcast %cst_15 : f32 to vector<128x128xf32>
    %33 = arith.cmpf oge, %31, %32 : vector<128x128xf32>
    %cst_16 = arith.constant 0.00999999977 : f32
    %34 = vector.broadcast %cst_16 : f32 to vector<128x128xf32>
    %35 = arith.mulf %34, %31 : vector<128x128xf32>
    %36 = arith.select %33, %31, %35 : vector<128x128xi1>, vector<128x128xf32>
    %c0_17 = arith.constant 0 : index
    %c0_18 = arith.constant 0 : index
    %37 = vector.load %arg5[%c0_17, %c0_18] : memref<128x128xf32, #tpu.memory_space<vmem>>, vector<128x128xf32>
    tpu.vector_store %arg5[%c0_17, %c0_18], %36 {strides = array<i32>} : memref<128x128xf32, #tpu.memory_space<vmem>>, vector<128x128xf32>,
    return
  }
}

module attributes {stable_mosaic.version = 11 : i64} {
  func.func @_mm_bn_act_kernel(%arg0: memref<32x200xbf16, #tpu.memory_space<vmem>>, %arg1: memref<200x128xbf16, #tpu.memory_space<vmem>>, %arg2: memref<1x128xf32, #tpu.memory_space<vmem>>, %arg3: memref<1x128xf32, #tpu.memory_space<vmem>>, %arg4: memref<1x128xf32, #tpu.memory_space<vmem>>, %arg5: memref<32x128xf32, #tpu.memory_space<vmem>>) attributes {dimension_semantics = [], scalar_prefetch = 0 : i64, scratch_operands = 0 : i64, tpu.core_type = #tpu.core_type<tc>} {
    %c0 = arith.constant 0 : index
    %c0_0 = arith.constant 0 : index
    %0 = vector.load %arg0[%c0, %c0_0] : memref<32x200xbf16, #tpu.memory_space<vmem>>, vector<32x200xbf16>
    %c0_1 = arith.constant 0 : index
    %c0_2 = arith.constant 0 : index
    %1 = vector.load %arg1[%c0_1, %c0_2] : memref<200x128xbf16, #tpu.memory_space<vmem>>, vector<200x128xbf16>
    %cst = arith.constant dense<0.000000e+00> : vector<32x128xf32>
    %2 = tpu.matmul %0, %1, %cst {dimension_numbers = #tpu.dot_dimension_numbers<[1], [0], [0], [1], [0, 0, 1, 1], [], []>} : vector<32x200xbf16>, vector<200x128xbf16>, vector<32x128xf32> -> vector<32x128xf32>
    %c0_3 = arith.constant 0 : index
    %c0_4 = arith.constant 0 : index
    %3 = vector.load %arg2[%c0_3, %c0_4] : memref<1x128xf32, #tpu.memory_space<vmem>>, vector<1x128xf32>
    %4 = vector.broadcast %3 : vector<1x128xf32> to vector<32x128xf32>
    %5 = arith.addf %2, %4 : vector<32x128xf32>
    %cst_5 = arith.constant dense<0.000000e+00> : vector<128xf32>
    %6 = vector.multi_reduction <add>, %5, %cst_5 [0] : vector<32x128xf32> to vector<128xf32>
    %7 = vector.shape_cast %6 : vector<128xf32> to vector<1x128xf32>
    %cst_6 = arith.constant 3.200000e+01 : f32
    %8 = vector.broadcast %cst_6 : f32 to vector<1x128xf32>
    %9 = arith.divf %7, %8 : vector<1x128xf32>
    %10 = arith.mulf %5, %5 : vector<32x128xf32>
    %cst_7 = arith.constant dense<0.000000e+00> : vector<128xf32>
    %11 = vector.multi_reduction <add>, %10, %cst_7 [0] : vector<32x128xf32> to vector<128xf32>
    %12 = vector.shape_cast %11 : vector<128xf32> to vector<1x128xf32>
    %cst_8 = arith.constant 3.200000e+01 : f32
    %13 = vector.broadcast %cst_8 : f32 to vector<1x128xf32>
    %14 = arith.divf %12, %13 : vector<1x128xf32>
    %15 = arith.mulf %9, %9 : vector<1x128xf32>
    %16 = arith.subf %14, %15 : vector<1x128xf32>
    %cst_9 = arith.constant 0.000000e+00 : f32
    %17 = vector.broadcast %cst_9 : f32 to vector<1x128xf32>
    %18 = arith.maximumf %16, %17 : vector<1x128xf32>
    %19 = vector.broadcast %9 : vector<1x128xf32> to vector<32x128xf32>
    %20 = arith.subf %5, %19 : vector<32x128xf32>
    %cst_10 = arith.constant 9.99999974E-6 : f32
    %21 = vector.broadcast %cst_10 : f32 to vector<1x128xf32>
    %22 = arith.addf %18, %21 : vector<1x128xf32>
    %23 = math.rsqrt %22 : vector<1x128xf32>
    %24 = vector.broadcast %23 : vector<1x128xf32> to vector<32x128xf32>
    %25 = arith.mulf %20, %24 : vector<32x128xf32>
    %c0_11 = arith.constant 0 : index
    %c0_12 = arith.constant 0 : index
    %26 = vector.load %arg3[%c0_11, %c0_12] : memref<1x128xf32, #tpu.memory_space<vmem>>, vector<1x128xf32>
    %27 = vector.broadcast %26 : vector<1x128xf32> to vector<32x128xf32>
    %28 = arith.mulf %25, %27 : vector<32x128xf32>
    %c0_13 = arith.constant 0 : index
    %c0_14 = arith.constant 0 : index
    %29 = vector.load %arg4[%c0_13, %c0_14] : memref<1x128xf32, #tpu.memory_space<vmem>>, vector<1x128xf32>
    %30 = vector.broadcast %29 : vector<1x128xf32> to vector<32x128xf32>
    %31 = arith.addf %28, %30 : vector<32x128xf32>
    %cst_15 = arith.constant 0.000000e+00 : f32
    %32 = vector.broadcast %cst_15 : f32 to vector<32x128xf32>
    %33 = arith.cmpf oge, %31, %32 : vector<32x128xf32>
    %cst_16 = arith.constant 0.00999999977 : f32
    %34 = vector.broadcast %cst_16 : f32 to vector<32x128xf32>
    %35 = arith.mulf %34, %31 : vector<32x128xf32>
    %36 = arith.select %33, %31, %35 : vector<32x128xi1>, vector<32x128xf32>
    %c0_17 = arith.constant 0 : index
    %c0_18 = arith.constant 0 : index
    %37 = vector.load %arg5[%c0_17, %c0_18] : memref<32x128xf32, #tpu.memory_space<vmem>>, vector<32x128xf32>
    tpu.vector_store %arg5[%c0_17, %c0_18], %36 {strides = array<i32>} : memref<32x128xf32, #tpu.memory_space<vmem>>, vector<32x128xf32>,
    return
  }
}

module attributes {stable_mosaic.version = 11 : i64} {
  func.func @_latent_kernel(%arg0: memref<2x256xbf16, #tpu.memory_space<vmem>>, %arg1: memref<256x256xbf16, #tpu.memory_space<vmem>>, %arg2: memref<1x256xf32, #tpu.memory_space<vmem>>, %arg3: memref<2x128xf32, #tpu.memory_space<vmem>>, %arg4: memref<128x256xbf16, #tpu.memory_space<vmem>>, %arg5: memref<1x256xf32, #tpu.memory_space<vmem>>, %arg6: memref<2x128xf32, #tpu.memory_space<vmem>>, %arg7: memref<2x128xf32, #tpu.memory_space<vmem>>, %arg8: memref<2x256xf32, #tpu.memory_space<vmem>>) attributes {dimension_semantics = [], scalar_prefetch = 0 : i64, scratch_operands = 0 : i64, tpu.core_type = #tpu.core_type<tc>} {
    %c0 = arith.constant 0 : index
    %c0_0 = arith.constant 0 : index
    %0 = vector.load %arg0[%c0, %c0_0] : memref<2x256xbf16, #tpu.memory_space<vmem>>, vector<2x256xbf16>
    %c0_1 = arith.constant 0 : index
    %c0_2 = arith.constant 0 : index
    %1 = vector.load %arg1[%c0_1, %c0_2] : memref<256x256xbf16, #tpu.memory_space<vmem>>, vector<256x256xbf16>
    %cst = arith.constant dense<0.000000e+00> : vector<2x256xf32>
    %2 = tpu.matmul %0, %1, %cst {dimension_numbers = #tpu.dot_dimension_numbers<[1], [0], [0], [1], [0, 0, 1, 1], [], []>} : vector<2x256xbf16>, vector<256x256xbf16>, vector<2x256xf32> -> vector<2x256xf32>
    %c0_3 = arith.constant 0 : index
    %c0_4 = arith.constant 0 : index
    %3 = vector.load %arg2[%c0_3, %c0_4] : memref<1x256xf32, #tpu.memory_space<vmem>>, vector<1x256xf32>
    %4 = vector.broadcast %3 : vector<1x256xf32> to vector<2x256xf32>
    %5 = arith.addf %2, %4 : vector<2x256xf32>
    %6 = vector.extract_strided_slice %5 {offsets = [0, 0], sizes = [2, 128], strides = [1, 1]} : vector<2x256xf32> to vector<2x128xf32>
    %7 = vector.extract_strided_slice %5 {offsets = [0, 128], sizes = [2, 128], strides = [1, 1]} : vector<2x256xf32> to vector<2x128xf32>
    %8 = math.exp %7 : vector<2x128xf32>
    %c0_5 = arith.constant 0 : index
    %c0_6 = arith.constant 0 : index
    %9 = vector.load %arg3[%c0_5, %c0_6] : memref<2x128xf32, #tpu.memory_space<vmem>>, vector<2x128xf32>
    %10 = arith.mulf %8, %9 : vector<2x128xf32>
    %11 = arith.addf %10, %6 : vector<2x128xf32>
    %12 = arith.truncf %11 : vector<2x128xf32> to vector<2x128xbf16>
    %c0_7 = arith.constant 0 : index
    %c0_8 = arith.constant 0 : index
    %13 = vector.load %arg4[%c0_7, %c0_8] : memref<128x256xbf16, #tpu.memory_space<vmem>>, vector<128x256xbf16>
    %cst_9 = arith.constant dense<0.000000e+00> : vector<2x256xf32>
    %14 = tpu.matmul %12, %13, %cst_9 {dimension_numbers = #tpu.dot_dimension_numbers<[1], [0], [0], [1], [0, 0, 1, 1], [], []>} : vector<2x128xbf16>, vector<128x256xbf16>, vector<2x256xf32> -> vector<2x256xf32>
    %c0_10 = arith.constant 0 : index
    %c0_11 = arith.constant 0 : index
    %15 = vector.load %arg5[%c0_10, %c0_11] : memref<1x256xf32, #tpu.memory_space<vmem>>, vector<1x256xf32>
    %16 = vector.broadcast %15 : vector<1x256xf32> to vector<2x256xf32>
    %17 = arith.addf %14, %16 : vector<2x256xf32>
    %c0_12 = arith.constant 0 : index
    %c0_13 = arith.constant 0 : index
    %18 = vector.load %arg6[%c0_12, %c0_13] : memref<2x128xf32, #tpu.memory_space<vmem>>, vector<2x128xf32>
    tpu.vector_store %arg6[%c0_12, %c0_13], %6 {strides = array<i32>} : memref<2x128xf32, #tpu.memory_space<vmem>>, vector<2x128xf32>,
    %c0_14 = arith.constant 0 : index
    %c0_15 = arith.constant 0 : index
    %19 = vector.load %arg7[%c0_14, %c0_15] : memref<2x128xf32, #tpu.memory_space<vmem>>, vector<2x128xf32>
    tpu.vector_store %arg7[%c0_14, %c0_15], %7 {strides = array<i32>} : memref<2x128xf32, #tpu.memory_space<vmem>>, vector<2x128xf32>,
    %c0_16 = arith.constant 0 : index
    %c0_17 = arith.constant 0 : index
    %20 = vector.load %arg8[%c0_16, %c0_17] : memref<2x256xf32, #tpu.memory_space<vmem>>, vector<2x256xf32>
    tpu.vector_store %arg8[%c0_16, %c0_17], %17 {strides = array<i32>} : memref<2x256xf32, #tpu.memory_space<vmem>>, vector<2x256xf32>,
    return
  }
}

module attributes {stable_mosaic.version = 11 : i64} {
  func.func @_mm_bn_act_kernel(%arg0: memref<128x400xbf16, #tpu.memory_space<vmem>>, %arg1: memref<400x128xbf16, #tpu.memory_space<vmem>>, %arg2: memref<1x128xf32, #tpu.memory_space<vmem>>, %arg3: memref<1x128xf32, #tpu.memory_space<vmem>>, %arg4: memref<1x128xf32, #tpu.memory_space<vmem>>, %arg5: memref<128x128xf32, #tpu.memory_space<vmem>>) attributes {dimension_semantics = [], scalar_prefetch = 0 : i64, scratch_operands = 0 : i64, tpu.core_type = #tpu.core_type<tc>} {
    %c0 = arith.constant 0 : index
    %c0_0 = arith.constant 0 : index
    %0 = vector.load %arg0[%c0, %c0_0] : memref<128x400xbf16, #tpu.memory_space<vmem>>, vector<128x400xbf16>
    %c0_1 = arith.constant 0 : index
    %c0_2 = arith.constant 0 : index
    %1 = vector.load %arg1[%c0_1, %c0_2] : memref<400x128xbf16, #tpu.memory_space<vmem>>, vector<400x128xbf16>
    %cst = arith.constant dense<0.000000e+00> : vector<128x128xf32>
    %2 = tpu.matmul %0, %1, %cst {dimension_numbers = #tpu.dot_dimension_numbers<[1], [0], [0], [1], [0, 0, 1, 1], [], []>} : vector<128x400xbf16>, vector<400x128xbf16>, vector<128x128xf32> -> vector<128x128xf32>
    %c0_3 = arith.constant 0 : index
    %c0_4 = arith.constant 0 : index
    %3 = vector.load %arg2[%c0_3, %c0_4] : memref<1x128xf32, #tpu.memory_space<vmem>>, vector<1x128xf32>
    %4 = vector.broadcast %3 : vector<1x128xf32> to vector<128x128xf32>
    %5 = arith.addf %2, %4 : vector<128x128xf32>
    %cst_5 = arith.constant dense<0.000000e+00> : vector<128xf32>
    %6 = vector.multi_reduction <add>, %5, %cst_5 [0] : vector<128x128xf32> to vector<128xf32>
    %7 = vector.shape_cast %6 : vector<128xf32> to vector<1x128xf32>
    %cst_6 = arith.constant 1.280000e+02 : f32
    %8 = vector.broadcast %cst_6 : f32 to vector<1x128xf32>
    %9 = arith.divf %7, %8 : vector<1x128xf32>
    %10 = arith.mulf %5, %5 : vector<128x128xf32>
    %cst_7 = arith.constant dense<0.000000e+00> : vector<128xf32>
    %11 = vector.multi_reduction <add>, %10, %cst_7 [0] : vector<128x128xf32> to vector<128xf32>
    %12 = vector.shape_cast %11 : vector<128xf32> to vector<1x128xf32>
    %cst_8 = arith.constant 1.280000e+02 : f32
    %13 = vector.broadcast %cst_8 : f32 to vector<1x128xf32>
    %14 = arith.divf %12, %13 : vector<1x128xf32>
    %15 = arith.mulf %9, %9 : vector<1x128xf32>
    %16 = arith.subf %14, %15 : vector<1x128xf32>
    %cst_9 = arith.constant 0.000000e+00 : f32
    %17 = vector.broadcast %cst_9 : f32 to vector<1x128xf32>
    %18 = arith.maximumf %16, %17 : vector<1x128xf32>
    %19 = vector.broadcast %9 : vector<1x128xf32> to vector<128x128xf32>
    %20 = arith.subf %5, %19 : vector<128x128xf32>
    %cst_10 = arith.constant 9.99999974E-6 : f32
    %21 = vector.broadcast %cst_10 : f32 to vector<1x128xf32>
    %22 = arith.addf %18, %21 : vector<1x128xf32>
    %23 = math.rsqrt %22 : vector<1x128xf32>
    %24 = vector.broadcast %23 : vector<1x128xf32> to vector<128x128xf32>
    %25 = arith.mulf %20, %24 : vector<128x128xf32>
    %c0_11 = arith.constant 0 : index
    %c0_12 = arith.constant 0 : index
    %26 = vector.load %arg3[%c0_11, %c0_12] : memref<1x128xf32, #tpu.memory_space<vmem>>, vector<1x128xf32>
    %27 = vector.broadcast %26 : vector<1x128xf32> to vector<128x128xf32>
    %28 = arith.mulf %25, %27 : vector<128x128xf32>
    %c0_13 = arith.constant 0 : index
    %c0_14 = arith.constant 0 : index
    %29 = vector.load %arg4[%c0_13, %c0_14] : memref<1x128xf32, #tpu.memory_space<vmem>>, vector<1x128xf32>
    %30 = vector.broadcast %29 : vector<1x128xf32> to vector<128x128xf32>
    %31 = arith.addf %28, %30 : vector<128x128xf32>
    %cst_15 = arith.constant 0.000000e+00 : f32
    %32 = vector.broadcast %cst_15 : f32 to vector<128x128xf32>
    %33 = arith.cmpf oge, %31, %32 : vector<128x128xf32>
    %cst_16 = arith.constant 0.00999999977 : f32
    %34 = vector.broadcast %cst_16 : f32 to vector<128x128xf32>
    %35 = arith.mulf %34, %31 : vector<128x128xf32>
    %36 = arith.select %33, %31, %35 : vector<128x128xi1>, vector<128x128xf32>
    %c0_17 = arith.constant 0 : index
    %c0_18 = arith.constant 0 : index
    %37 = vector.load %arg5[%c0_17, %c0_18] : memref<128x128xf32, #tpu.memory_space<vmem>>, vector<128x128xf32>
    tpu.vector_store %arg5[%c0_17, %c0_18], %36 {strides = array<i32>} : memref<128x128xf32, #tpu.memory_space<vmem>>, vector<128x128xf32>,
    return
  }
}

module attributes {stable_mosaic.version = 11 : i64} {
  func.func @_mm_bn_act_kernel(%arg0: memref<512x200xbf16, #tpu.memory_space<vmem>>, %arg1: memref<200x128xbf16, #tpu.memory_space<vmem>>, %arg2: memref<1x128xf32, #tpu.memory_space<vmem>>, %arg3: memref<1x128xf32, #tpu.memory_space<vmem>>, %arg4: memref<1x128xf32, #tpu.memory_space<vmem>>, %arg5: memref<512x128xf32, #tpu.memory_space<vmem>>) attributes {dimension_semantics = [], scalar_prefetch = 0 : i64, scratch_operands = 0 : i64, tpu.core_type = #tpu.core_type<tc>} {
    %c0 = arith.constant 0 : index
    %c0_0 = arith.constant 0 : index
    %0 = vector.load %arg0[%c0, %c0_0] : memref<512x200xbf16, #tpu.memory_space<vmem>>, vector<512x200xbf16>
    %c0_1 = arith.constant 0 : index
    %c0_2 = arith.constant 0 : index
    %1 = vector.load %arg1[%c0_1, %c0_2] : memref<200x128xbf16, #tpu.memory_space<vmem>>, vector<200x128xbf16>
    %cst = arith.constant dense<0.000000e+00> : vector<512x128xf32>
    %2 = tpu.matmul %0, %1, %cst {dimension_numbers = #tpu.dot_dimension_numbers<[1], [0], [0], [1], [0, 0, 1, 1], [], []>} : vector<512x200xbf16>, vector<200x128xbf16>, vector<512x128xf32> -> vector<512x128xf32>
    %c0_3 = arith.constant 0 : index
    %c0_4 = arith.constant 0 : index
    %3 = vector.load %arg2[%c0_3, %c0_4] : memref<1x128xf32, #tpu.memory_space<vmem>>, vector<1x128xf32>
    %4 = vector.broadcast %3 : vector<1x128xf32> to vector<512x128xf32>
    %5 = arith.addf %2, %4 : vector<512x128xf32>
    %cst_5 = arith.constant dense<0.000000e+00> : vector<128xf32>
    %6 = vector.multi_reduction <add>, %5, %cst_5 [0] : vector<512x128xf32> to vector<128xf32>
    %7 = vector.shape_cast %6 : vector<128xf32> to vector<1x128xf32>
    %cst_6 = arith.constant 5.120000e+02 : f32
    %8 = vector.broadcast %cst_6 : f32 to vector<1x128xf32>
    %9 = arith.divf %7, %8 : vector<1x128xf32>
    %10 = arith.mulf %5, %5 : vector<512x128xf32>
    %cst_7 = arith.constant dense<0.000000e+00> : vector<128xf32>
    %11 = vector.multi_reduction <add>, %10, %cst_7 [0] : vector<512x128xf32> to vector<128xf32>
    %12 = vector.shape_cast %11 : vector<128xf32> to vector<1x128xf32>
    %cst_8 = arith.constant 5.120000e+02 : f32
    %13 = vector.broadcast %cst_8 : f32 to vector<1x128xf32>
    %14 = arith.divf %12, %13 : vector<1x128xf32>
    %15 = arith.mulf %9, %9 : vector<1x128xf32>
    %16 = arith.subf %14, %15 : vector<1x128xf32>
    %cst_9 = arith.constant 0.000000e+00 : f32
    %17 = vector.broadcast %cst_9 : f32 to vector<1x128xf32>
    %18 = arith.maximumf %16, %17 : vector<1x128xf32>
    %19 = vector.broadcast %9 : vector<1x128xf32> to vector<512x128xf32>
    %20 = arith.subf %5, %19 : vector<512x128xf32>
    %cst_10 = arith.constant 9.99999974E-6 : f32
    %21 = vector.broadcast %cst_10 : f32 to vector<1x128xf32>
    %22 = arith.addf %18, %21 : vector<1x128xf32>
    %23 = math.rsqrt %22 : vector<1x128xf32>
    %24 = vector.broadcast %23 : vector<1x128xf32> to vector<512x128xf32>
    %25 = arith.mulf %20, %24 : vector<512x128xf32>
    %c0_11 = arith.constant 0 : index
    %c0_12 = arith.constant 0 : index
    %26 = vector.load %arg3[%c0_11, %c0_12] : memref<1x128xf32, #tpu.memory_space<vmem>>, vector<1x128xf32>
    %27 = vector.broadcast %26 : vector<1x128xf32> to vector<512x128xf32>
    %28 = arith.mulf %25, %27 : vector<512x128xf32>
    %c0_13 = arith.constant 0 : index
    %c0_14 = arith.constant 0 : index
    %29 = vector.load %arg4[%c0_13, %c0_14] : memref<1x128xf32, #tpu.memory_space<vmem>>, vector<1x128xf32>
    %30 = vector.broadcast %29 : vector<1x128xf32> to vector<512x128xf32>
    %31 = arith.addf %28, %30 : vector<512x128xf32>
    %cst_15 = arith.constant 5.000000e-01 : f32
    %32 = vector.broadcast %cst_15 : f32 to vector<512x128xf32>
    %33 = arith.mulf %32, %31 : vector<512x128xf32>
    %34 = math.tanh %33 : vector<512x128xf32>
    %cst_16 = arith.constant 1.000000e+00 : f32
    %35 = vector.broadcast %cst_16 : f32 to vector<512x128xf32>
    %36 = arith.addf %34, %35 : vector<512x128xf32>
    %cst_17 = arith.constant 5.000000e-01 : f32
    %37 = vector.broadcast %cst_17 : f32 to vector<512x128xf32>
    %38 = arith.mulf %37, %36 : vector<512x128xf32>
    %c0_18 = arith.constant 0 : index
    %c0_19 = arith.constant 0 : index
    %39 = vector.load %arg5[%c0_18, %c0_19] : memref<512x128xf32, #tpu.memory_space<vmem>>, vector<512x128xf32>
    tpu.vector_store %arg5[%c0_18, %c0_19], %38 {strides = array<i32>} : memref<512x128xf32, #tpu.memory_space<vmem>>, vector<512x128xf32>,
    return
  }
}

</mosaic_0001>

<llo_original>
// kernel: gaussian_vae_forward.5
$region0: #{gaussian_vae_forward.5}
  #allocation0 [shape = 'u32[]', space=smem, size = 0x4, offset = 0x4, fixed_abs, tag = 'smem constant byte address 0x4 - core index']
  #allocation1 [shape = 'u32[144,128]{1,0:T(1,128)}', space=vmem, size = 0x12000, scoped, tag = 'internal scratch']
  %s0 = inlined_call_operand.vmem [shape: bf16[128,75], index: 0, kind: input, shape index: {}]
  %s1 = inlined_call_operand.vmem [shape: bf16[75,128], index: 1, kind: input, shape index: {}]
  %s2 = inlined_call_operand.vmem [shape: f32[1,128], index: 2, kind: input, shape index: {}]
  %s3 = inlined_call_operand.vmem [shape: f32[1,128], index: 3, kind: input, shape index: {}]
  %s4 = inlined_call_operand.vmem [shape: f32[1,128], index: 4, kind: input, shape index: {}]
  %s5 = inlined_call_operand.vmem [shape: f32[128,128], index: 5, kind: output, shape index: {}]
  %s6 = sld [smem:[#allocation0]]
  $region30: #{gaussian_vae_forward.5} parent=0
    _
  %s8 = ssub.s32 1, %s6
  %s9 = scalar_select 0, %s8, %s6
  // Predicated region
  $region2: #{gaussian_vae_forward.5} parent=0 // pred_check
    _
  $region3: #{gaussian_vae_forward.5} parent=0 // pred_check_branch
    %11 = sbr.rel (0) target = $region5
  $region4: #{gaussian_vae_forward.5} parent=0 // pred_region
    _
  $region5: #{gaussian_vae_forward.5} parent=0 // pred_fallthru
    _
  // Predicated region
  $region6: #{gaussian_vae_forward.5} parent=0 // pred_check
    _
  $region7: #{gaussian_vae_forward.5} parent=0 // pred_check_branch
    %13 = sbr.rel (0) target = $region9
  $region8: #{gaussian_vae_forward.5} parent=0 // pred_region
    _
  $region9: #{gaussian_vae_forward.5} parent=0 // pred_fallthru
    _
  // Predicated region
  $region10: #{gaussian_vae_forward.5} parent=0 // pred_check
    _
  $region11: #{gaussian_vae_forward.5} parent=0 // pred_check_branch
    %15 = sbr.rel (0) target = $region13
  $region12: #{gaussian_vae_forward.5} parent=0 // pred_region
    _
  $region13: #{gaussian_vae_forward.5} parent=0 // pred_fallthru
    _
  // Predicated region
  $region14: #{gaussian_vae_forward.5} parent=0 // pred_check
    _
  $region15: #{gaussian_vae_forward.5} parent=0 // pred_check_branch
    %17 = sbr.rel (0) target = $region17
  $region16: #{gaussian_vae_forward.5} parent=0 // pred_region
    _
  $region17: #{gaussian_vae_forward.5} parent=0 // pred_fallthru
    _
  // Predicated region
  $region18: #{gaussian_vae_forward.5} parent=0 // pred_check
    _
  $region19: #{gaussian_vae_forward.5} parent=0 // pred_check_branch
    %19 = sbr.rel (0) target = $region21
  $region20: #{gaussian_vae_forward.5} parent=0 // pred_region
    _
  $region21: #{gaussian_vae_forward.5} parent=0 // pred_fallthru
    _
  %v21 = vld [vmem:[%s0] sm:$0xf]
  %v22 = vld [vmem:[%s0 + $0x4] sm:$0xf]
  %v23 = vld [vmem:[%s0 + $0x8] sm:$0xf]
  %v24 = vld [vmem:[%s0 + $0xc] sm:$0xf]
  %v25 = vld [vmem:[%s0 + $0x10] sm:$0xf]
  %v26 = vld [vmem:[%s0 + $0x14] sm:$0xf]
  %v27 = vld [vmem:[%s0 + $0x18] sm:$0xf]
  %v28 = vld [vmem:[%s0 + $0x1c] sm:$0xf]
  %v29 = vld [vmem:[%s0 + $0x20] sm:$0xf]
  %v30 = vld [vmem:[%s0 + $0x24] sm:$0xf]
  %v31 = vld [vmem:[%s0 + $0x28] sm:$0xf]
  %v32 = vld [vmem:[%s0 + $0x2c] sm:$0xf]
  %v33 = vld [vmem:[%s0 + $0x30] sm:$0xf]
  %v34 = vld [vmem:[%s0 + $0x34] sm:$0xf]
  %v35 = vld [vmem:[%s0 + $0x38] sm:$0xf]
  %v36 = vld [vmem:[%s0 + $0x3c] sm:$0xf]
  %v37 = vld [vmem:[%s1] sm:$0xf]
  %v38 = vld [vmem:[%s1 + $0x4] sm:$0xf]
  %v39 = vld [vmem:[%s1 + $0x8] sm:$0xf]
  %v40 = vld [vmem:[%s1 + $0xc] sm:$0xf]
  %v41 = vld [vmem:[%s1 + $0x10] sm:$0xf]
  %v42 = vld [vmem:[%s1 + $0x14] sm:$0xf]
  %v43 = vld [vmem:[%s1 + $0x18] sm:$0xf]
  %v44 = vld [vmem:[%s1 + $0x1c] sm:$0xf]
  %v45 = vld [vmem:[%s1 + $0x20] sm:$0xf]
  %v46 = vld [vmem:[%s1 + $0x24] sm:$0x3]
  %v47 = vld [vmem:[%s2] sm:$0x1]
  %v49 = vlaneseq
  %v50 = vshrl.u32 %v49, 7
  %v51 = vsub.s32 0, %v50
  %v52 = vrot.slane %v47, %v51
  %v70 = vunpack.c.l.b16 %v21
  %v71 = vunpack.c.l.b16 %v22
  %v72 = vunpack.c.l.b16 %v23
  %v73 = vunpack.c.l.b16 %v24
  %v74 = vunpack.c.l.b16 %v25
  %v75 = vunpack.c.l.b16 %v26
  %v76 = vunpack.c.l.b16 %v27
  %v77 = vunpack.c.l.b16 %v28
  %v78 = vunpack.c.l.b16 %v29
  %v79 = vunpack.c.l.b16 %v30
  %v80 = vunpack.c.l.b16 %v31
  %v81 = vunpack.c.l.b16 %v32
  %v82 = vunpack.c.l.b16 %v33
  %v83 = vunpack.c.l.b16 %v34
  %v84 = vunpack.c.l.b16 %v35
  %v85 = vunpack.c.l.b16 %v36
  %v86 = vpack.c.b16 %v71, %v70
  %v87 = vpack.c.b16 %v73, %v72
  %v88 = vpack.c.b16 %v75, %v74
  %v89 = vpack.c.b16 %v77, %v76
  %v90 = vpack.c.b16 %v79, %v78
  %v91 = vpack.c.b16 %v81, %v80
  %v92 = vpack.c.b16 %v83, %v82
  %v93 = vpack.c.b16 %v85, %v84
  %v104 = vunpack.c.l.b16 %v37
  %v105 = vunpack.c.l.b16 %v38
  %v106 = vunpack.c.l.b16 %v39
  %v107 = vunpack.c.l.b16 %v40
  %v108 = vunpack.c.l.b16 %v41
  %v109 = vunpack.c.l.b16 %v42
  %v110 = vunpack.c.l.b16 %v43
  %v111 = vunpack.c.l.b16 %v44
  %v112 = vunpack.c.l.b16 %v45
  %v113 = vunpack.c.l.b16 %v46
  %v114 = vpack.c.b16 %v105, %v104
  %v115 = vpack.c.b16 %v107, %v106
  %v116 = vpack.c.b16 %v109, %v108
  %v117 = vpack.c.b16 %v111, %v110
  %v118 = vpack.c.b16 %v113, %v112
  %vm123 = vcmask 613376
  %v125 = vsel %vm123, %v86, 0
  %v128 = vsel %vm123, %v87, 0
  %v131 = vsel %vm123, %v88, 0
  %v134 = vsel %vm123, %v89, 0
  %v137 = vsel %vm123, %v90, 0
  %v140 = vsel %vm123, %v91, 0
  %v143 = vsel %vm123, %v92, 0
  %v146 = vsel %vm123, %v93, 0
  %vm148 = vcmask 1044480
  %vm149 = vcmask 1045504
  %v150 = vsel %vm148, 4294967295, 65535
  %v151 = vsel %vm149, %v150, 0
  %v153 = vand.u32 %v118, %v151
  %155 = vmatprep.subr.bf16.mxu0 0
  %156 = vmatpush1.bf16.msra.mxu0 %v114
  %157 = vmatprep.subr.bf16.mxu0 0
  %158 = vmatpush1.bf16.msra.mxu0 %v115
  %159 = vmatprep.subr.bf16.mxu0 0
  %160 = vmatpush1.bf16.msra.mxu0 %v116
  %161 = vmatprep.subr.bf16.mxu0 0
  %162 = vmatpush1.bf16.msra.mxu0 %v117
  %163 = vmatprep.subr.bf16.mxu0 0
  %164 = vmatpush1.bf16.msra.mxu0 %v153
  %165 = vmatprep.subr.bf16.mxu0 0
  %166 = vmatpush1.bf16.msra.mxu0 0
  %167 = vmatprep.subr.bf16.mxu0 0
  %168 = vmatpush1.bf16.msra.mxu0 0
  %169 = vmatprep.subr.bf16.mxu0 0
  %170 = vmatpush1.bf16.msra.mxu0 0
  %171 = vmatprep.subr.bf16.mxu0 0
  %172 = vmatpush1.bf16.msra.mxu0 0
  %173 = vmatprep.subr.bf16.mxu0 0
  %174 = vmatpush1.bf16.msra.mxu0 0
  %175 = vmatprep.subr.bf16.mxu0 0
  %176 = vmatpush1.bf16.msra.mxu0 0
  %177 = vmatprep.subr.bf16.mxu0 0
  %178 = vmatpush1.bf16.msra.mxu0 0
  %179 = vmatprep.subr.bf16.mxu0 0
  %180 = vmatpush1.bf16.msra.mxu0 0
  %181 = vmatprep.subr.bf16.mxu0 0
  %182 = vmatpush1.bf16.msra.mxu0 0
  %183 = vmatprep.subr.bf16.mxu0 0
  %184 = vmatpush1.bf16.msra.mxu0 0
  %185 = vmatprep.subr.bf16.mxu0 0
  %186 = vmatpush1.bf16.msra.mxu0 0
  %187 = vmatprep.mubr.bf16.mxu0 0
  %188 = vmatmul.mubr.bf16.gmra.mrb[0].mxu0 %v125
  %v189 = vpop.f32.mrb[0].mxu0
  %v190 = vadd.f32 %v52, %v189
  %v191 = vpop.f32.mrb[0].mxu0
  %v192 = vpop.f32.mrb[0].mxu0
  %v193 = vadd.f32 %v52, %v192
  %v194 = vpop.f32.mrb[0].mxu0
  %195 = vmatprep.mubr.bf16.mxu0 0
  %196 = vmatmul.mubr.bf16.gmra.mrb[0].mxu0 %v128
  %v197 = vpop.f32.mrb[0].mxu0
  %v198 = vadd.f32 %v52, %v197
  %v199 = vpop.f32.mrb[0].mxu0
  %v200 = vpop.f32.mrb[0].mxu0
  %v201 = vadd.f32 %v52, %v200
  %v202 = vpop.f32.mrb[0].mxu0
  %203 = vmatprep.mubr.bf16.mxu0 0
  %204 = vmatmul.mubr.bf16.gmra.mrb[0].mxu0 %v131
  %v205 = vpop.f32.mrb[0].mxu0
  %v206 = vadd.f32 %v52, %v205
  %v207 = vpop.f32.mrb[0].mxu0
  %v208 = vpop.f32.mrb[0].mxu0
  %v209 = vadd.f32 %v52, %v208
  %v210 = vpop.f32.mrb[0].mxu0
  %211 = vmatprep.mubr.bf16.mxu0 0
  %212 = vmatmul.mubr.bf16.gmra.mrb[0].mxu0 %v134
  %v213 = vpop.f32.mrb[0].mxu0
  %v214 = vadd.f32 %v52, %v213
  %v215 = vpop.f32.mrb[0].mxu0
  %v216 = vpop.f32.mrb[0].mxu0
  %v217 = vadd.f32 %v52, %v216
  %v218 = vpop.f32.mrb[0].mxu0
  %219 = vmatprep.mubr.bf16.mxu0 0
  %220 = vmatmul.mubr.bf16.gmra.mrb[0].mxu0 %v137
  %v221 = vpop.f32.mrb[0].mxu0
  %v222 = vadd.f32 %v52, %v221
  %v223 = vpop.f32.mrb[0].mxu0
  %v224 = vpop.f32.mrb[0].mxu0
  %v225 = vadd.f32 %v52, %v224
  %v226 = vpop.f32.mrb[0].mxu0
  %227 = vmatprep.mubr.bf16.mxu0 0
  %228 = vmatmul.mubr.bf16.gmra.mrb[0].mxu0 %v140
  %v229 = vpop.f32.mrb[0].mxu0
  %v230 = vadd.f32 %v52, %v229
  %v231 = vpop.f32.mrb[0].mxu0
  %v232 = vpop.f32.mrb[0].mxu0
  %v233 = vadd.f32 %v52, %v232
  %v234 = vpop.f32.mrb[0].mxu0
  %235 = vmatprep.mubr.bf16.mxu0 0
  %236 = vmatmul.mubr.bf16.gmra.mrb[0].mxu0 %v143
  %v237 = vpop.f32.mrb[0].mxu0
  %v238 = vadd.f32 %v52, %v237
  %v239 = vpop.f32.mrb[0].mxu0
  %v240 = vpop.f32.mrb[0].mxu0
  %v241 = vadd.f32 %v52, %v240
  %v242 = vpop.f32.mrb[0].mxu0
  %243 = vmatprep.mubr.bf16.mxu0 0
  %244 = vmatmul.mubr.bf16.gmra.mrb[0].mxu0 %v146
  %v245 = vpop.f32.mrb[0].mxu0
  %v246 = vadd.f32 %v52, %v245
  %v247 = vpop.f32.mrb[0].mxu0
  %v248 = vpop.f32.mrb[0].mxu0
  %v249 = vadd.f32 %v52, %v248
  %v250 = vpop.f32.mrb[0].mxu0
  %251 = vdwg.mxu0
  %v252 = vadd.f32 %v190, %v193
  %v253 = vadd.f32 %v252, %v198
  %v254 = vadd.f32 %v253, %v201
  %v255 = vadd.f32 %v254, %v206
  %v256 = vadd.f32 %v255, %v209
  %v257 = vadd.f32 %v256, %v214
  %v258 = vadd.f32 %v257, %v217
  %v259 = vadd.f32 %v258, %v222
  %v260 = vadd.f32 %v259, %v225
  %v261 = vadd.f32 %v260, %v230
  %v262 = vadd.f32 %v261, %v233
  %v263 = vadd.f32 %v262, %v238
  %v264 = vadd.f32 %v263, %v241
  %v265 = vadd.f32 %v264, %v246
  %v266 = vadd.f32 %v265, %v249
  %v267 = vrot.slane %v266, 4
  %v268 = vadd.f32 %v266, %v267
  %v269 = vrot.slane %v268, 2
  %v270 = vadd.f32 %v268, %v269
  %v271 = vrot.slane %v270, 1
  %v272 = vadd.f32 %v270, %v271
  %v273 = vrcp.pop 128.0
  %v274 = vmul.f32 %v272, %v273
  %v275 = vmul.f32 %v190, %v190
  %v276 = vmul.f32 %v193, %v193
  %v277 = vmul.f32 %v198, %v198
  %v278 = vmul.f32 %v201, %v201
  %v279 = vmul.f32 %v206, %v206
  %v280 = vmul.f32 %v209, %v209
  %v281 = vmul.f32 %v214, %v214
  %v282 = vmul.f32 %v217, %v217
  %v283 = vmul.f32 %v222, %v222
  %v284 = vmul.f32 %v225, %v225
  %v285 = vmul.f32 %v230, %v230
  %v286 = vmul.f32 %v233, %v233
  %v287 = vmul.f32 %v238, %v238
  %v288 = vmul.f32 %v241, %v241
  %v289 = vmul.f32 %v246, %v246
  %v290 = vmul.f32 %v249, %v249
  %v291 = vadd.f32 %v275, %v276
  %v292 = vadd.f32 %v291, %v277
  %v293 = vadd.f32 %v292, %v278
  %v294 = vadd.f32 %v293, %v279
  %v295 = vadd.f32 %v294, %v280
  %v296 = vadd.f32 %v295, %v281
  %v297 = vadd.f32 %v296, %v282
  %v298 = vadd.f32 %v297, %v283
  %v299 = vadd.f32 %v298, %v284
  %v300 = vadd.f32 %v299, %v285
  %v301 = vadd.f32 %v300, %v286
  %v302 = vadd.f32 %v301, %v287
  %v303 = vadd.f32 %v302, %v288
  %v304 = vadd.f32 %v303, %v289
  %v305 = vadd.f32 %v304, %v290
  %v306 = vrot.slane %v305, 4
  %v307 = vadd.f32 %v305, %v306
  %v308 = vrot.slane %v307, 2
  %v309 = vadd.f32 %v307, %v308
  %v310 = vrot.slane %v309, 1
  %v311 = vadd.f32 %v309, %v310
  %v312 = vmul.f32 %v311, %v273
  %v313 = vmul.f32 %v274, %v274
  %v314 = vsub.f32 %v312, %v313
  %v315 = vmax.f32 %v314, 0.0
  %v316 = vsub.f32 %v190, %v274
  %v317 = vsub.f32 %v193, %v274
  %v318 = vsub.f32 %v198, %v274
  %v319 = vsub.f32 %v201, %v274
  %v320 = vsub.f32 %v206, %v274
  %v321 = vsub.f32 %v209, %v274
  %v322 = vsub.f32 %v214, %v274
  %v323 = vsub.f32 %v217, %v274
  %v324 = vsub.f32 %v222, %v274
  %v325 = vsub.f32 %v225, %v274
  %v326 = vsub.f32 %v230, %v274
  %v327 = vsub.f32 %v233, %v274
  %v328 = vsub.f32 %v238, %v274
  %v329 = vsub.f32 %v241, %v274
  %v330 = vsub.f32 %v246, %v274
  %v331 = vsub.f32 %v249, %v274
  %v332 = vadd.f32 %v315, 1e-05
  %v333 = vrsqrt.pop %v332
  %v334 = vmul.f32 %v316, %v333
  %v335 = vmul.f32 %v317, %v333
  %v336 = vmul.f32 %v318, %v333
  %v337 = vmul.f32 %v319, %v333
  %v338 = vmul.f32 %v320, %v333
  %v339 = vmul.f32 %v321, %v333
  %v340 = vmul.f32 %v322, %v333
  %v341 = vmul.f32 %v323, %v333
  %v342 = vmul.f32 %v324, %v333
  %v343 = vmul.f32 %v325, %v333
  %v344 = vmul.f32 %v326, %v333
  %v345 = vmul.f32 %v327, %v333
  %v346 = vmul.f32 %v328, %v333
  %v347 = vmul.f32 %v329, %v333
  %v348 = vmul.f32 %v330, %v333
  %v349 = vmul.f32 %v331, %v333
  %v350 = vld [vmem:[%s3] sm:$0x1]
  %v352 = vlaneseq
  %v353 = vshrl.u32 %v352, 7
  %v354 = vsub.s32 0, %v353
  %v355 = vrot.slane %v350, %v354
  %v357 = vmul.f32 %v334, %v355
  %v358 = vmul.f32 %v335, %v355
  %v359 = vmul.f32 %v336, %v355
  %v360 = vmul.f32 %v337, %v355
  %v361 = vmul.f32 %v338, %v355
  %v362 = vmul.f32 %v339, %v355
  %v363 = vmul.f32 %v340, %v355
  %v364 = vmul.f32 %v341, %v355
  %v365 = vmul.f32 %v342, %v355
  %v366 = vmul.f32 %v343, %v355
  %v367 = vmul.f32 %v344, %v355
  %v368 = vmul.f32 %v345, %v355
  %v369 = vmul.f32 %v346, %v355
  %v370 = vmul.f32 %v347, %v355
  %v371 = vmul.f32 %v348, %v355
  %v372 = vmul.f32 %v349, %v355
  %v373 = vld [vmem:[%s4] sm:$0x1]
  %v375 = vlaneseq
  %v376 = vshrl.u32 %v375, 7
  %v377 = vsub.s32 0, %v376
  %v378 = vrot.slane %v373, %v377
  %v380 = vadd.f32 %v357, %v378
  %v381 = vadd.f32 %v358, %v378
  %v382 = vadd.f32 %v359, %v378
  %v383 = vadd.f32 %v360, %v378
  %v384 = vadd.f32 %v361, %v378
  %v385 = vadd.f32 %v362, %v378
  %v386 = vadd.f32 %v363, %v378
  %v387 = vadd.f32 %v364, %v378
  %v388 = vadd.f32 %v365, %v378
  %v389 = vadd.f32 %v366, %v378
  %v390 = vadd.f32 %v367, %v378
  %v391 = vadd.f32 %v368, %v378
  %v392 = vadd.f32 %v369, %v378
  %v393 = vadd.f32 %v370, %v378
  %v394 = vadd.f32 %v371, %v378
  %v395 = vadd.f32 %v372, %v378
  %vm396 = vcmp.ge.f32.partialorder %v380, 0.0
  %vm397 = vcmp.ge.f32.partialorder %v381, 0.0
  %vm398 = vcmp.ge.f32.partialorder %v382, 0.0
  %vm399 = vcmp.ge.f32.partialorder %v383, 0.0
  %vm400 = vcmp.ge.f32.partialorder %v384, 0.0
  %vm401 = vcmp.ge.f32.partialorder %v385, 0.0
  %vm402 = vcmp.ge.f32.partialorder %v386, 0.0
  %vm403 = vcmp.ge.f32.partialorder %v387, 0.0
  %vm404 = vcmp.ge.f32.partialorder %v388, 0.0
  %vm405 = vcmp.ge.f32.partialorder %v389, 0.0
  %vm406 = vcmp.ge.f32.partialorder %v390, 0.0
  %vm407 = vcmp.ge.f32.partialorder %v391, 0.0
  %vm408 = vcmp.ge.f32.partialorder %v392, 0.0
  %vm409 = vcmp.ge.f32.partialorder %v393, 0.0
  %vm410 = vcmp.ge.f32.partialorder %v394, 0.0
  %vm411 = vcmp.ge.f32.partialorder %v395, 0.0
  %v412 = vmul.f32 %v380, 0.01
  %v413 = vmul.f32 %v381, 0.01
  %v414 = vmul.f32 %v382, 0.01
  %v415 = vmul.f32 %v383, 0.01
  %v416 = vmul.f32 %v384, 0.01
  %v417 = vmul.f32 %v385, 0.01
  %v418 = vmul.f32 %v386, 0.01
  %v419 = vmul.f32 %v387, 0.01
  %v420 = vmul.f32 %v388, 0.01
  %v421 = vmul.f32 %v389, 0.01
  %v422 = vmul.f32 %v390, 0.01
  %v423 = vmul.f32 %v391, 0.01
  %v424 = vmul.f32 %v392, 0.01
  %v425 = vmul.f32 %v393, 0.01
  %v426 = vmul.f32 %v394, 0.01
  %v427 = vmul.f32 %v395, 0.01
  %v428 = vsel %vm396, %v380, %v412
  %v429 = vsel %vm397, %v381, %v413
  %v430 = vsel %vm398, %v382, %v414
  %v431 = vsel %vm399, %v383, %v415
  %v432 = vsel %vm400, %v384, %v416
  %v433 = vsel %vm401, %v385, %v417
  %v434 = vsel %vm402, %v386, %v418
  %v435 = vsel %vm403, %v387, %v419
  %v436 = vsel %vm404, %v388, %v420
  %v437 = vsel %vm405, %v389, %v421
  %v438 = vsel %vm406, %v390, %v422
  %v439 = vsel %vm407, %v391, %v423
  %v440 = vsel %vm408, %v392, %v424
  %v441 = vsel %vm409, %v393, %v425
  %v442 = vsel %vm410, %v394, %v426
  %v443 = vsel %vm411, %v395, %v427
  %444 = vst [vmem:[%s5] sm:$0xff] %v428
  %445 = vst [vmem:[%s5 + $0x8] sm:$0xff] %v429
  %446 = vst [vmem:[%s5 + $0x10] sm:$0xff] %v430
  %447 = vst [vmem:[%s5 + $0x18] sm:$0xff] %v431
  %448 = vst [vmem:[%s5 + $0x20] sm:$0xff] %v432
  %449 = vst [vmem:[%s5 + $0x28] sm:$0xff] %v433
  %450 = vst [vmem:[%s5 + $0x30] sm:$0xff] %v434
  %451 = vst [vmem:[%s5 + $0x38] sm:$0xff] %v435
  %452 = vst [vmem:[%s5 + $0x40] sm:$0xff] %v436
  %453 = vst [vmem:[%s5 + $0x48] sm:$0xff] %v437
  %454 = vst [vmem:[%s5 + $0x50] sm:$0xff] %v438
  %455 = vst [vmem:[%s5 + $0x58] sm:$0xff] %v439
  %456 = vst [vmem:[%s5 + $0x60] sm:$0xff] %v440
  %457 = vst [vmem:[%s5 + $0x68] sm:$0xff] %v441
  %458 = vst [vmem:[%s5 + $0x70] sm:$0xff] %v442
  %459 = vst [vmem:[%s5 + $0x78] sm:$0xff] %v443
  // Predicated region
  $region22: #{gaussian_vae_forward.5} parent=0 // pred_check
    _
  $region23: #{gaussian_vae_forward.5} parent=0 // pred_check_branch
    %461 = sbr.rel (0) target = $region25
  $region24: #{gaussian_vae_forward.5} parent=0 // pred_region
    _
  $region25: #{gaussian_vae_forward.5} parent=0 // pred_fallthru
    _
  // Predicated region
  $region26: #{gaussian_vae_forward.5} parent=0 // pred_check
    _
  $region27: #{gaussian_vae_forward.5} parent=0 // pred_check_branch
    %463 = sbr.rel (0) target = $region29
  $region28: #{gaussian_vae_forward.5} parent=0 // pred_region
    _
  $region29: #{gaussian_vae_forward.5} parent=0 // pred_fallthru
    _

// kernel: gaussian_vae_forward.6
$region0: #{gaussian_vae_forward.6}
  #allocation0 [shape = 'u32[]', space=smem, size = 0x4, offset = 0x4, fixed_abs, tag = 'smem constant byte address 0x4 - core index']
  #allocation1 [shape = 'u32[144,128]{1,0:T(1,128)}', space=vmem, size = 0x12000, scoped, tag = 'internal scratch']
  %s0 = inlined_call_operand.vmem [shape: bf16[32,200], index: 0, kind: input, shape index: {}]
  %s1 = inlined_call_operand.vmem [shape: bf16[200,128], index: 1, kind: input, shape index: {}]
  %s2 = inlined_call_operand.vmem [shape: f32[1,128], index: 2, kind: input, shape index: {}]
  %s3 = inlined_call_operand.vmem [shape: f32[1,128], index: 3, kind: input, shape index: {}]
  %s4 = inlined_call_operand.vmem [shape: f32[1,128], index: 4, kind: input, shape index: {}]
  %s5 = inlined_call_operand.vmem [shape: f32[32,128], index: 5, kind: output, shape index: {}]
  %s6 = sld [smem:[#allocation0]]
  $region30: #{gaussian_vae_forward.6} parent=0
    _
  %s8 = ssub.s32 1, %s6
  %s9 = scalar_select 0, %s8, %s6
  // Predicated region
  $region2: #{gaussian_vae_forward.6} parent=0 // pred_check
    _
  $region3: #{gaussian_vae_forward.6} parent=0 // pred_check_branch
    %11 = sbr.rel (0) target = $region5
  $region4: #{gaussian_vae_forward.6} parent=0 // pred_region
    _
  $region5: #{gaussian_vae_forward.6} parent=0 // pred_fallthru
    _
  // Predicated region
  $region6: #{gaussian_vae_forward.6} parent=0 // pred_check
    _
  $region7: #{gaussian_vae_forward.6} parent=0 // pred_check_branch
    %13 = sbr.rel (0) target = $region9
  $region8: #{gaussian_vae_forward.6} parent=0 // pred_region
    _
  $region9: #{gaussian_vae_forward.6} parent=0 // pred_fallthru
    _
  // Predicated region
  $region10: #{gaussian_vae_forward.6} parent=0 // pred_check
    _
  $region11: #{gaussian_vae_forward.6} parent=0 // pred_check_branch
    %15 = sbr.rel (0) target = $region13
  $region12: #{gaussian_vae_forward.6} parent=0 // pred_region
    _
  $region13: #{gaussian_vae_forward.6} parent=0 // pred_fallthru
    _
  // Predicated region
  $region14: #{gaussian_vae_forward.6} parent=0 // pred_check
    _
  $region15: #{gaussian_vae_forward.6} parent=0 // pred_check_branch
    %17 = sbr.rel (0) target = $region17
  $region16: #{gaussian_vae_forward.6} parent=0 // pred_region
    _
  $region17: #{gaussian_vae_forward.6} parent=0 // pred_fallthru
    _
  // Predicated region
  $region18: #{gaussian_vae_forward.6} parent=0 // pred_check
    _
  $region19: #{gaussian_vae_forward.6} parent=0 // pred_check_branch
    %19 = sbr.rel (0) target = $region21
  $region20: #{gaussian_vae_forward.6} parent=0 // pred_region
    _
  $region21: #{gaussian_vae_forward.6} parent=0 // pred_fallthru
    _
  %v21 = vld [vmem:[%s0] sm:$0xff]
  %v22 = vld [vmem:[%s0 + $0x8] sm:$0xff]
  %v23 = vld [vmem:[%s0 + $0x10] sm:$0xff]
  %v24 = vld [vmem:[%s0 + $0x18] sm:$0xff]
  %v25 = vld [vmem:[%s1] sm:$0xf]
  %v26 = vld [vmem:[%s1 + $0x4] sm:$0xf]
  %v27 = vld [vmem:[%s1 + $0x8] sm:$0xf]
  %v28 = vld [vmem:[%s1 + $0xc] sm:$0xf]
  %v29 = vld [vmem:[%s1 + $0x10] sm:$0xf]
  %v30 = vld [vmem:[%s1 + $0x14] sm:$0xf]
  %v31 = vld [vmem:[%s1 + $0x18] sm:$0xf]
  %v32 = vld [vmem:[%s1 + $0x1c] sm:$0xf]
  %v33 = vld [vmem:[%s1 + $0x20] sm:$0xf]
  %v34 = vld [vmem:[%s1 + $0x24] sm:$0xf]
  %v35 = vld [vmem:[%s1 + $0x28] sm:$0xf]
  %v36 = vld [vmem:[%s1 + $0x2c] sm:$0xf]
  %v37 = vld [vmem:[%s1 + $0x30] sm:$0xf]
  %v38 = vld [vmem:[%s1 + $0x34] sm:$0xf]
  %v39 = vld [vmem:[%s1 + $0x38] sm:$0xf]
  %v40 = vld [vmem:[%s1 + $0x3c] sm:$0xf]
  %v41 = vld [vmem:[%s1 + $0x40] sm:$0xf]
  %v42 = vld [vmem:[%s1 + $0x44] sm:$0xf]
  %v43 = vld [vmem:[%s1 + $0x48] sm:$0xf]
  %v44 = vld [vmem:[%s1 + $0x4c] sm:$0xf]
  %v45 = vld [vmem:[%s1 + $0x50] sm:$0xf]
  %v46 = vld [vmem:[%s1 + $0x54] sm:$0xf]
  %v47 = vld [vmem:[%s1 + $0x58] sm:$0xf]
  %v48 = vld [vmem:[%s1 + $0x5c] sm:$0xf]
  %v49 = vld [vmem:[%s1 + $0x60] sm:$0xf]
  %v50 = vld [vmem:[%s2] sm:$0x1]
  %v52 = vlaneseq
  %v53 = vshrl.u32 %v52, 7
  %v54 = vsub.s32 0, %v53
  %v55 = vrot.slane %v50, %v54
  %v61 = vunpack.c.l.b16 %v21
  %v62 = vunpack.c.h.b16 %v21
  %v63 = vunpack.c.l.b16 %v22
  %v64 = vunpack.c.h.b16 %v22
  %v65 = vunpack.c.l.b16 %v23
  %v66 = vunpack.c.h.b16 %v23
  %v67 = vunpack.c.l.b16 %v24
  %v68 = vunpack.c.h.b16 %v24
  %v69 = vpack.c.b16 %v63, %v61
  %v70 = vpack.c.b16 %v64, %v62
  %v71 = vpack.c.b16 %v67, %v65
  %v72 = vpack.c.b16 %v68, %v66
  %v100 = vunpack.c.l.b16 %v25
  %v101 = vunpack.c.l.b16 %v26
  %v102 = vunpack.c.l.b16 %v27
  %v103 = vunpack.c.l.b16 %v28
  %v104 = vunpack.c.l.b16 %v29
  %v105 = vunpack.c.l.b16 %v30
  %v106 = vunpack.c.l.b16 %v31
  %v107 = vunpack.c.l.b16 %v32
  %v108 = vunpack.c.l.b16 %v33
  %v109 = vunpack.c.l.b16 %v34
  %v110 = vunpack.c.l.b16 %v35
  %v111 = vunpack.c.l.b16 %v36
  %v112 = vunpack.c.l.b16 %v37
  %v113 = vunpack.c.l.b16 %v38
  %v114 = vunpack.c.l.b16 %v39
  %v115 = vunpack.c.l.b16 %v40
  %v116 = vunpack.c.l.b16 %v41
  %v117 = vunpack.c.l.b16 %v42
  %v118 = vunpack.c.l.b16 %v43
  %v119 = vunpack.c.l.b16 %v44
  %v120 = vunpack.c.l.b16 %v45
  %v121 = vunpack.c.l.b16 %v46
  %v122 = vunpack.c.l.b16 %v47
  %v123 = vunpack.c.l.b16 %v48
  %v124 = vunpack.c.l.b16 %v49
  %v125 = vpack.c.b16 %v101, %v100
  %v126 = vpack.c.b16 %v103, %v102
  %v127 = vpack.c.b16 %v105, %v104
  %v128 = vpack.c.b16 %v107, %v106
  %v129 = vpack.c.b16 %v109, %v108
  %v130 = vpack.c.b16 %v111, %v110
  %v131 = vpack.c.b16 %v113, %v112
  %v132 = vpack.c.b16 %v115, %v114
  %v133 = vpack.c.b16 %v117, %v116
  %v134 = vpack.c.b16 %v119, %v118
  %v135 = vpack.c.b16 %v121, %v120
  %v136 = vpack.c.b16 %v123, %v122
  %v137 = vpack.c.b16 %v124, %v124
  %vm150 = vcmask 588800
  %v152 = vsel %vm150, %v70, 0
  %v155 = vsel %vm150, %v72, 0
  %vm157 = vcmask 1043456
  %v159 = vsel %vm157, %v137, 0
  %161 = vmatprep.subr.bf16.mxu0 0
  %162 = vmatpush1.bf16.msra.mxu0 %v125
  %163 = vmatprep.subr.bf16.mxu0 0
  %164 = vmatpush1.bf16.msra.mxu0 %v126
  %165 = vmatprep.subr.bf16.mxu0 0
  %166 = vmatpush1.bf16.msra.mxu0 %v127
  %167 = vmatprep.subr.bf16.mxu0 0
  %168 = vmatpush1.bf16.msra.mxu0 %v128
  %169 = vmatprep.subr.bf16.mxu0 0
  %170 = vmatpush1.bf16.msra.mxu0 %v129
  %171 = vmatprep.subr.bf16.mxu0 0
  %172 = vmatpush1.bf16.msra.mxu0 %v130
  %173 = vmatprep.subr.bf16.mxu0 0
  %174 = vmatpush1.bf16.msra.mxu0 %v131
  %175 = vmatprep.subr.bf16.mxu0 0
  %176 = vmatpush1.bf16.msra.mxu0 %v132
  %177 = vmatprep.subr.bf16.mxu0 0
  %178 = vmatpush1.bf16.msra.mxu0 %v133
  %179 = vmatprep.subr.bf16.mxu0 0
  %180 = vmatpush1.bf16.msra.mxu0 %v134
  %181 = vmatprep.subr.bf16.mxu0 0
  %182 = vmatpush1.bf16.msra.mxu0 %v135
  %183 = vmatprep.subr.bf16.mxu0 0
  %184 = vmatpush1.bf16.msra.mxu0 %v136
  %185 = vmatprep.subr.bf16.mxu0 0
  %186 = vmatpush1.bf16.msra.mxu0 %v159
  %187 = vmatprep.subr.bf16.mxu0 0
  %188 = vmatpush1.bf16.msra.mxu0 0
  %189 = vmatprep.subr.bf16.mxu0 0
  %190 = vmatpush1.bf16.msra.mxu0 0
  %191 = vmatprep.subr.bf16.mxu0 0
  %192 = vmatpush1.bf16.msra.mxu0 0
  %193 = vmatprep.mubr.bf16.mxu0 %v152
  %194 = vmatmul.mubr.bf16.gmra.mrb[0].mxu0 %v69
  %v195 = vpop.f32.mrb[0].mxu0
  %v196 = vadd.f32 %v55, %v195
  %v197 = vpop.f32.mrb[0].mxu0
  %v198 = vpop.f32.mrb[0].mxu0
  %v199 = vadd.f32 %v55, %v198
  %v200 = vpop.f32.mrb[0].mxu0
  %201 = vmatprep.mubr.bf16.mxu0 %v155
  %202 = vmatmul.mubr.bf16.gmra.mrb[0].mxu0 %v71
  %v203 = vpop.f32.mrb[0].mxu0
  %v204 = vadd.f32 %v55, %v203
  %v205 = vpop.f32.mrb[0].mxu0
  %v206 = vpop.f32.mrb[0].mxu0
  %v207 = vadd.f32 %v55, %v206
  %v208 = vpop.f32.mrb[0].mxu0
  %209 = vdwg.mxu0
  %v210 = vadd.f32 %v196, %v199
  %v211 = vadd.f32 %v210, %v204
  %v212 = vadd.f32 %v211, %v207
  %v213 = vrot.slane %v212, 4
  %v214 = vadd.f32 %v212, %v213
  %v215 = vrot.slane %v214, 2
  %v216 = vadd.f32 %v214, %v215
  %v217 = vrot.slane %v216, 1
  %v218 = vadd.f32 %v216, %v217
  %v219 = vrcp.pop 32.0
  %v220 = vmul.f32 %v218, %v219
  %v221 = vmul.f32 %v196, %v196
  %v222 = vmul.f32 %v199, %v199
  %v223 = vmul.f32 %v204, %v204
  %v224 = vmul.f32 %v207, %v207
  %v225 = vadd.f32 %v221, %v222
  %v226 = vadd.f32 %v225, %v223
  %v227 = vadd.f32 %v226, %v224
  %v228 = vrot.slane %v227, 4
  %v229 = vadd.f32 %v227, %v228
  %v230 = vrot.slane %v229, 2
  %v231 = vadd.f32 %v229, %v230
  %v232 = vrot.slane %v231, 1
  %v233 = vadd.f32 %v231, %v232
  %v234 = vmul.f32 %v233, %v219
  %v235 = vmul.f32 %v220, %v220
  %v236 = vsub.f32 %v234, %v235
  %v237 = vmax.f32 %v236, 0.0
  %v238 = vsub.f32 %v196, %v220
  %v239 = vsub.f32 %v199, %v220
  %v240 = vsub.f32 %v204, %v220
  %v241 = vsub.f32 %v207, %v220
  %v242 = vadd.f32 %v237, 1e-05
  %v243 = vrsqrt.pop %v242
  %v244 = vmul.f32 %v238, %v243
  %v245 = vmul.f32 %v239, %v243
  %v246 = vmul.f32 %v240, %v243
  %v247 = vmul.f32 %v241, %v243
  %v248 = vld [vmem:[%s3] sm:$0x1]
  %v250 = vlaneseq
  %v251 = vshrl.u32 %v250, 7
  %v252 = vsub.s32 0, %v251
  %v253 = vrot.slane %v248, %v252
  %v255 = vmul.f32 %v244, %v253
  %v256 = vmul.f32 %v245, %v253
  %v257 = vmul.f32 %v246, %v253
  %v258 = vmul.f32 %v247, %v253
  %v259 = vld [vmem:[%s4] sm:$0x1]
  %v261 = vlaneseq
  %v262 = vshrl.u32 %v261, 7
  %v263 = vsub.s32 0, %v262
  %v264 = vrot.slane %v259, %v263
  %v266 = vadd.f32 %v255, %v264
  %v267 = vadd.f32 %v256, %v264
  %v268 = vadd.f32 %v257, %v264
  %v269 = vadd.f32 %v258, %v264
  %vm270 = vcmp.ge.f32.partialorder %v266, 0.0
  %vm271 = vcmp.ge.f32.partialorder %v267, 0.0
  %vm272 = vcmp.ge.f32.partialorder %v268, 0.0
  %vm273 = vcmp.ge.f32.partialorder %v269, 0.0
  %v274 = vmul.f32 %v266, 0.01
  %v275 = vmul.f32 %v267, 0.01
  %v276 = vmul.f32 %v268, 0.01
  %v277 = vmul.f32 %v269, 0.01
  %v278 = vsel %vm270, %v266, %v274
  %v279 = vsel %vm271, %v267, %v275
  %v280 = vsel %vm272, %v268, %v276
  %v281 = vsel %vm273, %v269, %v277
  %282 = vst [vmem:[%s5] sm:$0xff] %v278
  %283 = vst [vmem:[%s5 + $0x8] sm:$0xff] %v279
  %284 = vst [vmem:[%s5 + $0x10] sm:$0xff] %v280
  %285 = vst [vmem:[%s5 + $0x18] sm:$0xff] %v281
  // Predicated region
  $region22: #{gaussian_vae_forward.6} parent=0 // pred_check
    _
  $region23: #{gaussian_vae_forward.6} parent=0 // pred_check_branch
    %287 = sbr.rel (0) target = $region25
  $region24: #{gaussian_vae_forward.6} parent=0 // pred_region
    _
  $region25: #{gaussian_vae_forward.6} parent=0 // pred_fallthru
    _
  // Predicated region
  $region26: #{gaussian_vae_forward.6} parent=0 // pred_check
    _
  $region27: #{gaussian_vae_forward.6} parent=0 // pred_check_branch
    %289 = sbr.rel (0) target = $region29
  $region28: #{gaussian_vae_forward.6} parent=0 // pred_region
    _
  $region29: #{gaussian_vae_forward.6} parent=0 // pred_fallthru
    _

// kernel: gaussian_vae_forward.7
$region0: #{gaussian_vae_forward.7}
  #allocation0 [shape = 'u32[]', space=smem, size = 0x4, offset = 0x4, fixed_abs, tag = 'smem constant byte address 0x4 - core index']
  #allocation1 [shape = 'u32[144,128]{1,0:T(1,128)}', space=vmem, size = 0x12000, scoped, tag = 'internal scratch']
  %s0 = inlined_call_operand.vmem [shape: bf16[2,256], index: 0, kind: input, shape index: {}]
  %s1 = inlined_call_operand.vmem [shape: bf16[256,256], index: 1, kind: input, shape index: {}]
  %s2 = inlined_call_operand.vmem [shape: f32[1,256], index: 2, kind: input, shape index: {}]
  %s3 = inlined_call_operand.vmem [shape: f32[2,128], index: 3, kind: input, shape index: {}]
  %s4 = inlined_call_operand.vmem [shape: bf16[128,256], index: 4, kind: input, shape index: {}]
  %s5 = inlined_call_operand.vmem [shape: f32[1,256], index: 5, kind: input, shape index: {}]
  %s6 = inlined_call_operand.hbm [shape: f32[2,128], index: 6, kind: output, shape index: {0}]
  %s7 = inlined_call_operand.hbm [shape: f32[2,128], index: 7, kind: output, shape index: {1}]
  %s8 = inlined_call_operand.vmem [shape: f32[2,256], index: 8, kind: output, shape index: {2}]
  %9 = xla_tuple %s6, %s7, %s8
  %s10 = sld [smem:[#allocation0]]
  $region50: #{gaussian_vae_forward.7} parent=0
    _
  %s12 = ssub.s32 1, %s10
  %s13 = scalar_select 0, %s12, %s10
  $region1: #{gaussian_vae_forward.7} parent=0
    #allocation2 [shape = 'u8[1024]{0}', space=vmem, size = 0x400, scoped, tag = 'output window, operand 0, single buffered']
    #allocation3 [shape = 's32[1]{0}', space=sflag, size = 0x4, scoped, tag = 'scoped memory for gaussian_vae_forward.7']
    #allocation4 [shape = 'u8[1024]{0}', space=vmem, size = 0x400, scoped, tag = 'output window, operand 1, single buffered']
    #allocation5 [shape = 's32[1]{0}', space=sflag, size = 0x4, scoped, tag = 'scoped memory for gaussian_vae_forward.7']
    %14 = vsyncpa [#allocation3], 0
    %15 = vsyncpa [#allocation5], 0
    // Predicated region
    $region2: #{gaussian_vae_forward.7} parent=1 // pred_check
      _
    $region3: #{gaussian_vae_forward.7} parent=1 // pred_check_branch
      %17 = sbr.rel (0) target = $region5
    $region4: #{gaussian_vae_forward.7} parent=1 // pred_region
      _
    $region5: #{gaussian_vae_forward.7} parent=1 // pred_fallthru
      _
    // Predicated region
    $region6: #{gaussian_vae_forward.7} parent=1 // pred_check
      _
    $region7: #{gaussian_vae_forward.7} parent=1 // pred_check_branch
      %19 = sbr.rel (0) target = $region9
    $region8: #{gaussian_vae_forward.7} parent=1 // pred_region
      _
    $region9: #{gaussian_vae_forward.7} parent=1 // pred_fallthru
      _
    // Predicated region
    $region10: #{gaussian_vae_forward.7} parent=1 // pred_check
      _
    $region11: #{gaussian_vae_forward.7} parent=1 // pred_check_branch
      %21 = sbr.rel (0) target = $region13
    $region12: #{gaussian_vae_forward.7} parent=1 // pred_region
      _
    $region13: #{gaussian_vae_forward.7} parent=1 // pred_fallthru
      _
    // Predicated region
    $region14: #{gaussian_vae_forward.7} parent=1 // pred_check
      _
    $region15: #{gaussian_vae_forward.7} parent=1 // pred_check_branch
      %23 = sbr.rel (0) target = $region17
    $region16: #{gaussian_vae_forward.7} parent=1 // pred_region
      _
    $region17: #{gaussian_vae_forward.7} parent=1 // pred_fallthru
      _
    // Predicated region
    $region18: #{gaussian_vae_forward.7} parent=1 // pred_check
      _
    $region19: #{gaussian_vae_forward.7} parent=1 // pred_check_branch
      %25 = sbr.rel (0) target = $region21
    $region20: #{gaussian_vae_forward.7} parent=1 // pred_region
      _
    $region21: #{gaussian_vae_forward.7} parent=1 // pred_fallthru
      _
    // Predicated region
    $region22: #{gaussian_vae_forward.7} parent=1 // pred_check
      _
    $region23: #{gaussian_vae_forward.7} parent=1 // pred_check_branch
      %27 = sbr.rel (0) target = $region25
    $region24: #{gaussian_vae_forward.7} parent=1 // pred_region
      _
    $region25: #{gaussian_vae_forward.7} parent=1 // pred_fallthru
      _
    %v29 = vld [vmem:[%s0] sm:$0x3]
    %v30 = vld [vmem:[%s1] sm:$0xff]
    %v31 = vld [vmem:[%s1 + $0x8] sm:$0xff]
    %v32 = vld [vmem:[%s1 + $0x10] sm:$0xff]
    %v33 = vld [vmem:[%s1 + $0x18] sm:$0xff]
    %v34 = vld [vmem:[%s1 + $0x20] sm:$0xff]
    %v35 = vld [vmem:[%s1 + $0x28] sm:$0xff]
    %v36 = vld [vmem:[%s1 + $0x30] sm:$0xff]
    %v37 = vld [vmem:[%s1 + $0x38] sm:$0xff]
    %v38 = vld [vmem:[%s1 + $0x40] sm:$0xff]
    %v39 = vld [vmem:[%s1 + $0x48] sm:$0xff]
    %v40 = vld [vmem:[%s1 + $0x50] sm:$0xff]
    %v41 = vld [vmem:[%s1 + $0x58] sm:$0xff]
    %v42 = vld [vmem:[%s1 + $0x60] sm:$0xff]
    %v43 = vld [vmem:[%s1 + $0x68] sm:$0xff]
    %v44 = vld [vmem:[%s1 + $0x70] sm:$0xff]
    %v45 = vld [vmem:[%s1 + $0x78] sm:$0xff]
    %v46 = vld [vmem:[%s1 + $0x80] sm:$0xff]
    %v47 = vld [vmem:[%s1 + $0x88] sm:$0xff]
    %v48 = vld [vmem:[%s1 + $0x90] sm:$0xff]
    %v49 = vld [vmem:[%s1 + $0x98] sm:$0xff]
    %v50 = vld [vmem:[%s1 + $0xa0] sm:$0xff]
    %v51 = vld [vmem:[%s1 + $0xa8] sm:$0xff]
    %v52 = vld [vmem:[%s1 + $0xb0] sm:$0xff]
    %v53 = vld [vmem:[%s1 + $0xb8] sm:$0xff]
    %v54 = vld [vmem:[%s1 + $0xc0] sm:$0xff]
    %v55 = vld [vmem:[%s1 + $0xc8] sm:$0xff]
    %v56 = vld [vmem:[%s1 + $0xd0] sm:$0xff]
    %v57 = vld [vmem:[%s1 + $0xd8] sm:$0xff]
    %v58 = vld [vmem:[%s1 + $0xe0] sm:$0xff]
    %v59 = vld [vmem:[%s1 + $0xe8] sm:$0xff]
    %v60 = vld [vmem:[%s1 + $0xf0] sm:$0xff]
    %v61 = vld [vmem:[%s1 + $0xf8] sm:$0xff]
    %v62 = vld [vmem:[%s2] sm:$0x3]
    %v64 = vlaneseq
    %v65 = vshrl.u32 %v64, 7
    %v66 = vsub.s32 0, %v65
    %v67 = vrot.slane %v62, %v66
    %v68 = vlaneseq
    %v69 = vshrl.u32 %v68, 7
    %v70 = vsub.s32 1, %v69
    %v71 = vrot.slane %v62, %v70
    %v76 = vunpack.c.l.s4 1966171168
    %v77 = vunpack.c.0.s8 %v76
    %v78 = vlaneseq
    %v79 = vshrl.u32 %v78, 7
    %v80 = vsub.s32 %v77, %v79
    %v81 = vrot.slane %v29, %v80
    %v82 = vcombine.high %v81, %v81
    %v84 = vunpack.c.l.s4 1966171168
    %v85 = vunpack.c.0.s8 %v84
    %v86 = vlaneseq
    %v87 = vshrl.u32 %v86, 7
    %v88 = vsub.s32 %v85, %v87
    %v89 = vrot.slane %v81, %v88
    %v91 = vunpack.c.l.s4 1966171168
    %v92 = vunpack.c.0.s8 %v91
    %v93 = vlaneseq
    %v94 = vshrl.u32 %v93, 7
    %v95 = vsub.s32 %v92, %v94
    %v96 = vrot.slane %v82, %v95
    %v131 = vunpack.c.l.b16 %v30
    %v132 = vunpack.c.h.b16 %v30
    %v133 = vunpack.c.l.b16 %v31
    %v134 = vunpack.c.h.b16 %v31
    %v135 = vunpack.c.l.b16 %v32
    %v136 = vunpack.c.h.b16 %v32
    %v137 = vunpack.c.l.b16 %v33
    %v138 = vunpack.c.h.b16 %v33
    %v139 = vunpack.c.l.b16 %v34
    %v140 = vunpack.c.h.b16 %v34
    %v141 = vunpack.c.l.b16 %v35
    %v142 = vunpack.c.h.b16 %v35
    %v143 = vunpack.c.l.b16 %v36
    %v144 = vunpack.c.h.b16 %v36
    %v145 = vunpack.c.l.b16 %v37
    %v146 = vunpack.c.h.b16 %v37
    %v147 = vunpack.c.l.b16 %v38
    %v148 = vunpack.c.h.b16 %v38
    %v149 = vunpack.c.l.b16 %v39
    %v150 = vunpack.c.h.b16 %v39
    %v151 = vunpack.c.l.b16 %v40
    %v152 = vunpack.c.h.b16 %v40
    %v153 = vunpack.c.l.b16 %v41
    %v154 = vunpack.c.h.b16 %v41
    %v155 = vunpack.c.l.b16 %v42
    %v156 = vunpack.c.h.b16 %v42
    %v157 = vunpack.c.l.b16 %v43
    %v158 = vunpack.c.h.b16 %v43
    %v159 = vunpack.c.l.b16 %v44
    %v160 = vunpack.c.h.b16 %v44
    %v161 = vunpack.c.l.b16 %v45
    %v162 = vunpack.c.h.b16 %v45
    %v163 = vunpack.c.l.b16 %v46
    %v164 = vunpack.c.h.b16 %v46
    %v165 = vunpack.c.l.b16 %v47
    %v166 = vunpack.c.h.b16 %v47
    %v167 = vunpack.c.l.b16 %v48
    %v168 = vunpack.c.h.b16 %v48
    %v169 = vunpack.c.l.b16 %v49
    %v170 = vunpack.c.h.b16 %v49
    %v171 = vunpack.c.l.b16 %v50
    %v172 = vunpack.c.h.b16 %v50
    %v173 = vunpack.c.l.b16 %v51
    %v174 = vunpack.c.h.b16 %v51
    %v175 = vunpack.c.l.b16 %v52
    %v176 = vunpack.c.h.b16 %v52
    %v177 = vunpack.c.l.b16 %v53
    %v178 = vunpack.c.h.b16 %v53
    %v179 = vunpack.c.l.b16 %v54
    %v180 = vunpack.c.h.b16 %v54
    %v181 = vunpack.c.l.b16 %v55
    %v182 = vunpack.c.h.b16 %v55
    %v183 = vunpack.c.l.b16 %v56
    %v184 = vunpack.c.h.b16 %v56
    %v185 = vunpack.c.l.b16 %v57
    %v186 = vunpack.c.h.b16 %v57
    %v187 = vunpack.c.l.b16 %v58
    %v188 = vunpack.c.h.b16 %v58
    %v189 = vunpack.c.l.b16 %v59
    %v190 = vunpack.c.h.b16 %v59
    %v191 = vunpack.c.l.b16 %v60
    %v192 = vunpack.c.h.b16 %v60
    %v193 = vunpack.c.l.b16 %v61
    %v194 = vunpack.c.h.b16 %v61
    %v195 = vpack.c.b16 %v133, %v131
    %v196 = vpack.c.b16 %v134, %v132
    %v197 = vpack.c.b16 %v137, %v135
    %v198 = vpack.c.b16 %v138, %v136
    %v199 = vpack.c.b16 %v141, %v139
    %v200 = vpack.c.b16 %v142, %v140
    %v201 = vpack.c.b16 %v145, %v143
    %v202 = vpack.c.b16 %v146, %v144
    %v203 = vpack.c.b16 %v149, %v147
    %v204 = vpack.c.b16 %v150, %v148
    %v205 = vpack.c.b16 %v153, %v151
    %v206 = vpack.c.b16 %v154, %v152
    %v207 = vpack.c.b16 %v157, %v155
    %v208 = vpack.c.b16 %v158, %v156
    %v209 = vpack.c.b16 %v161, %v159
    %v210 = vpack.c.b16 %v162, %v160
    %v211 = vpack.c.b16 %v165, %v163
    %v212 = vpack.c.b16 %v166, %v164
    %v213 = vpack.c.b16 %v169, %v167
    %v214 = vpack.c.b16 %v170, %v168
    %v215 = vpack.c.b16 %v173, %v171
    %v216 = vpack.c.b16 %v174, %v172
    %v217 = vpack.c.b16 %v177, %v175
    %v218 = vpack.c.b16 %v178, %v176
    %v219 = vpack.c.b16 %v181, %v179
    %v220 = vpack.c.b16 %v182, %v180
    %v221 = vpack.c.b16 %v185, %v183
    %v222 = vpack.c.b16 %v186, %v184
    %v223 = vpack.c.b16 %v189, %v187
    %v224 = vpack.c.b16 %v190, %v188
    %v225 = vpack.c.b16 %v193, %v191
    %v226 = vpack.c.b16 %v194, %v192
    %259 = vmatprep.subr.bf16.mxu0 %v196
    %260 = vmatpush1.bf16.msra.mxu0 %v195
    %261 = vmatprep.subr.bf16.mxu0 %v198
    %262 = vmatpush1.bf16.msra.mxu0 %v197
    %263 = vmatprep.subr.bf16.mxu0 %v200
    %264 = vmatpush1.bf16.msra.mxu0 %v199
    %265 = vmatprep.subr.bf16.mxu0 %v202
    %266 = vmatpush1.bf16.msra.mxu0 %v201
    %267 = vmatprep.subr.bf16.mxu0 %v204
    %268 = vmatpush1.bf16.msra.mxu0 %v203
    %269 = vmatprep.subr.bf16.mxu0 %v206
    %270 = vmatpush1.bf16.msra.mxu0 %v205
    %271 = vmatprep.subr.bf16.mxu0 %v208
    %272 = vmatpush1.bf16.msra.mxu0 %v207
    %273 = vmatprep.subr.bf16.mxu0 %v210
    %274 = vmatpush1.bf16.msra.mxu0 %v209
    %275 = vmatprep.subr.bf16.mxu0 %v212
    %276 = vmatpush1.bf16.msra.mxu0 %v211
    %277 = vmatprep.subr.bf16.mxu0 %v214
    %278 = vmatpush1.bf16.msra.mxu0 %v213
    %279 = vmatprep.subr.bf16.mxu0 %v216
    %280 = vmatpush1.bf16.msra.mxu0 %v215
    %281 = vmatprep.subr.bf16.mxu0 %v218
    %282 = vmatpush1.bf16.msra.mxu0 %v217
    %283 = vmatprep.subr.bf16.mxu0 %v220
    %284 = vmatpush1.bf16.msra.mxu0 %v219
    %285 = vmatprep.subr.bf16.mxu0 %v222
    %286 = vmatpush1.bf16.msra.mxu0 %v221
    %287 = vmatprep.subr.bf16.mxu0 %v224
    %288 = vmatpush1.bf16.msra.mxu0 %v223
    %289 = vmatprep.subr.bf16.mxu0 %v226
    %290 = vmatpush1.bf16.msra.mxu0 %v225
    %291 = vmatprep.mubr.bf16.mxu0 %v96
    %292 = vmatmul.mubr.bf16.gmra.mrb[0].mxu0 %v89
    %v293 = vpop.f32.mrb[0].mxu0
    %v294 = vadd.f32 %v67, %v293
    %v295 = vpop.f32.mrb[0].mxu0
    %v296 = vadd.f32 %v71, %v295
    %v297 = vpop.f32.mrb[0].mxu0
    %v298 = vpop.f32.mrb[0].mxu0
    %299 = vdwg.mxu0
    %v300 = vmul.f32 %v296, 1.442695
    %v301 = vpow.pop %v300
    %v302 = vld [vmem:[%s3] sm:$0x3]
    %v303 = vmul.f32 %v301, %v302
    %v304 = vadd.f32 %v303, %v294
    %v305 = vpack.c.bf16 %v304, %v304
    %v306 = vld [vmem:[%s4] sm:$0xff]
    %v307 = vld [vmem:[%s4 + $0x8] sm:$0xff]
    %v308 = vld [vmem:[%s4 + $0x10] sm:$0xff]
    %v309 = vld [vmem:[%s4 + $0x18] sm:$0xff]
    %v310 = vld [vmem:[%s4 + $0x20] sm:$0xff]
    %v311 = vld [vmem:[%s4 + $0x28] sm:$0xff]
    %v312 = vld [vmem:[%s4 + $0x30] sm:$0xff]
    %v313 = vld [vmem:[%s4 + $0x38] sm:$0xff]
    %v314 = vld [vmem:[%s4 + $0x40] sm:$0xff]
    %v315 = vld [vmem:[%s4 + $0x48] sm:$0xff]
    %v316 = vld [vmem:[%s4 + $0x50] sm:$0xff]
    %v317 = vld [vmem:[%s4 + $0x58] sm:$0xff]
    %v318 = vld [vmem:[%s4 + $0x60] sm:$0xff]
    %v319 = vld [vmem:[%s4 + $0x68] sm:$0xff]
    %v320 = vld [vmem:[%s4 + $0x70] sm:$0xff]
    %v321 = vld [vmem:[%s4 + $0x78] sm:$0xff]
    %v322 = vld [vmem:[%s5] sm:$0x3]
    %v324 = vlaneseq
    %v325 = vshrl.u32 %v324, 7
    %v326 = vsub.s32 0, %v325
    %v327 = vrot.slane %v322, %v326
    %v328 = vlaneseq
    %v329 = vshrl.u32 %v328, 7
    %v330 = vsub.s32 1, %v329
    %v331 = vrot.slane %v322, %v330
    %v350 = vunpack.c.l.b16 %v306
    %v351 = vunpack.c.h.b16 %v306
    %v352 = vunpack.c.l.b16 %v307
    %v353 = vunpack.c.h.b16 %v307
    %v354 = vunpack.c.l.b16 %v308
    %v355 = vunpack.c.h.b16 %v308
    %v356 = vunpack.c.l.b16 %v309
    %v357 = vunpack.c.h.b16 %v309
    %v358 = vunpack.c.l.b16 %v310
    %v359 = vunpack.c.h.b16 %v310
    %v360 = vunpack.c.l.b16 %v311
    %v361 = vunpack.c.h.b16 %v311
    %v362 = vunpack.c.l.b16 %v312
    %v363 = vunpack.c.h.b16 %v312
    %v364 = vunpack.c.l.b16 %v313
    %v365 = vunpack.c.h.b16 %v313
    %v366 = vunpack.c.l.b16 %v314
    %v367 = vunpack.c.h.b16 %v314
    %v368 = vunpack.c.l.b16 %v315
    %v369 = vunpack.c.h.b16 %v315
    %v370 = vunpack.c.l.b16 %v316
    %v371 = vunpack.c.h.b16 %v316
    %v372 = vunpack.c.l.b16 %v317
    %v373 = vunpack.c.h.b16 %v317
    %v374 = vunpack.c.l.b16 %v318
    %v375 = vunpack.c.h.b16 %v318
    %v376 = vunpack.c.l.b16 %v319
    %v377 = vunpack.c.h.b16 %v319
    %v378 = vunpack.c.l.b16 %v320
    %v379 = vunpack.c.h.b16 %v320
    %v380 = vunpack.c.l.b16 %v321
    %v381 = vunpack.c.h.b16 %v321
    %v382 = vpack.c.b16 %v352, %v350
    %v383 = vpack.c.b16 %v353, %v351
    %v384 = vpack.c.b16 %v356, %v354
    %v385 = vpack.c.b16 %v357, %v355
    %v386 = vpack.c.b16 %v360, %v358
    %v387 = vpack.c.b16 %v361, %v359
    %v388 = vpack.c.b16 %v364, %v362
    %v389 = vpack.c.b16 %v365, %v363
    %v390 = vpack.c.b16 %v368, %v366
    %v391 = vpack.c.b16 %v369, %v367
    %v392 = vpack.c.b16 %v372, %v370
    %v393 = vpack.c.b16 %v373, %v371
    %v394 = vpack.c.b16 %v376, %v374
    %v395 = vpack.c.b16 %v377, %v375
    %v396 = vpack.c.b16 %v380, %v378
    %v397 = vpack.c.b16 %v381, %v379
    %414 = vmatprep.subr.bf16.mxu0 %v383
    %415 = vmatpush1.bf16.msra.mxu0 %v382
    %416 = vmatprep.subr.bf16.mxu0 %v385
    %417 = vmatpush1.bf16.msra.mxu0 %v384
    %418 = vmatprep.subr.bf16.mxu0 %v387
    %419 = vmatpush1.bf16.msra.mxu0 %v386
    %420 = vmatprep.subr.bf16.mxu0 %v389
    %421 = vmatpush1.bf16.msra.mxu0 %v388
    %422 = vmatprep.subr.bf16.mxu0 %v391
    %423 = vmatpush1.bf16.msra.mxu0 %v390
    %424 = vmatprep.subr.bf16.mxu0 %v393
    %425 = vmatpush1.bf16.msra.mxu0 %v392
    %426 = vmatprep.subr.bf16.mxu0 %v395
    %427 = vmatpush1.bf16.msra.mxu0 %v394
    %428 = vmatprep.subr.bf16.mxu0 %v397
    %429 = vmatpush1.bf16.msra.mxu0 %v396
    %430 = vmatprep.subr.bf16.mxu0 0
    %431 = vmatpush1.bf16.msra.mxu0 0
    %432 = vmatprep.subr.bf16.mxu0 0
    %433 = vmatpush1.bf16.msra.mxu0 0
    %434 = vmatprep.subr.bf16.mxu0 0
    %435 = vmatpush1.bf16.msra.mxu0 0
    %436 = vmatprep.subr.bf16.mxu0 0
    %437 = vmatpush1.bf16.msra.mxu0 0
    %438 = vmatprep.subr.bf16.mxu0 0
    %439 = vmatpush1.bf16.msra.mxu0 0
    %440 = vmatprep.subr.bf16.mxu0 0
    %441 = vmatpush1.bf16.msra.mxu0 0
    %442 = vmatprep.subr.bf16.mxu0 0
    %443 = vmatpush1.bf16.msra.mxu0 0
    %444 = vmatprep.subr.bf16.mxu0 0
    %445 = vmatpush1.bf16.msra.mxu0 0
    %446 = vmatprep.mubr.bf16.mxu0 0
    %447 = vmatmul.mubr.bf16.gmra.mrb[0].mxu0 %v305
    %v448 = vpop.f32.mrb[0].mxu0
    %v449 = vadd.f32 %v327, %v448
    %v450 = vpop.f32.mrb[0].mxu0
    %v451 = vadd.f32 %v331, %v450
    %v452 = vpop.f32.mrb[0].mxu0
    %v453 = vpop.f32.mrb[0].mxu0
    %454 = vdwg.mxu0
    %455 = vst [vmem:[#allocation2] sm:$0x3] %v294
    %456 = vst [vmem:[#allocation4] sm:$0x3] %v296
    %v459 = vcombine.low %v449, %v451
    %v461 = vunpack.c.l.s4 1983009808
    %v462 = vunpack.c.0.s8 %v461
    %v463 = vlaneseq
    %v464 = vshrl.u32 %v463, 7
    %v465 = vsub.s32 %v462, %v464
    %v466 = vrot.slane %v459, %v465
    %468 = vst [vmem:[%s8] sm:$0xf] %v466
    // Predicated region
    $region26: #{gaussian_vae_forward.7} parent=1 // pred_check
      _
    $region27: #{gaussian_vae_forward.7} parent=1 // pred_check_branch
      %470 = sbr.rel (0) target = $region29
    $region28: #{gaussian_vae_forward.7} parent=1 // pred_region
      %s472 = ssub.s32 32, 32
      %473 = vsyncadd [#allocation3], %s472
      %s475 = sshll.u32 [#allocation2], 4
      %s476 = int_to_ptr.vmem [resolvable:$true] %s475
      %478 = dma.vmem_to_hbm [thread:$0]  %s476, 32, %s6, [#allocation3]
    $region29: #{gaussian_vae_forward.7} parent=1 // pred_fallthru
      _
    // Predicated region
    $region30: #{gaussian_vae_forward.7} parent=1 // pred_check
      _
    $region31: #{gaussian_vae_forward.7} parent=1 // pred_check_branch
      %480 = sbr.rel (0) target = $region33
    $region32: #{gaussian_vae_forward.7} parent=1 // pred_region
      %s482 = ssub.s32 32, 32
      %483 = vsyncadd [#allocation5], %s482
      %s485 = sshll.u32 [#allocation4], 4
      %s486 = int_to_ptr.vmem [resolvable:$true] %s485
      %488 = dma.vmem_to_hbm [thread:$0]  %s486, 32, %s7, [#allocation5]
    $region33: #{gaussian_vae_forward.7} parent=1 // pred_fallthru
      _
    // Predicated region
    $region34: #{gaussian_vae_forward.7} parent=1 // pred_check
      _
    $region35: #{gaussian_vae_forward.7} parent=1 // pred_check_branch
      %490 = sbr.rel (0) target = $region37
    $region36: #{gaussian_vae_forward.7} parent=1 // pred_region
      _
    $region37: #{gaussian_vae_forward.7} parent=1 // pred_fallthru
      _
    // Predicated region
    $region38: #{gaussian_vae_forward.7} parent=1 // pred_check
      _
    $region39: #{gaussian_vae_forward.7} parent=1 // pred_check_branch
      %492 = sbr.rel (0) target = $region41
    $region40: #{gaussian_vae_forward.7} parent=1 // pred_region
      %493 = dma.done [#allocation3], 32
    $region41: #{gaussian_vae_forward.7} parent=1 // pred_fallthru
      _
    // Predicated region
    $region42: #{gaussian_vae_forward.7} parent=1 // pred_check
      _
    $region43: #{gaussian_vae_forward.7} parent=1 // pred_check_branch
      %495 = sbr.rel (0) target = $region45
    $region44: #{gaussian_vae_forward.7} parent=1 // pred_region
      %496 = dma.done [#allocation5], 32
    $region45: #{gaussian_vae_forward.7} parent=1 // pred_fallthru
      _
    // Predicated region
    $region46: #{gaussian_vae_forward.7} parent=1 // pred_check
      _
    $region47: #{gaussian_vae_forward.7} parent=1 // pred_check_branch
      %498 = sbr.rel (0) target = $region49
    $region48: #{gaussian_vae_forward.7} parent=1 // pred_region
      _
    $region49: #{gaussian_vae_forward.7} parent=1 // pred_fallthru
      _
    %499 = vsyncpa [#allocation3], 1
    %500 = vsyncpa [#allocation5], 1

// kernel: gaussian_vae_forward.8
$region0: #{gaussian_vae_forward.8}
  #allocation0 [shape = 'u32[]', space=smem, size = 0x4, offset = 0x4, fixed_abs, tag = 'smem constant byte address 0x4 - core index']
  #allocation1 [shape = 'u32[144,128]{1,0:T(1,128)}', space=vmem, size = 0x12000, scoped, tag = 'internal scratch']
  %s0 = inlined_call_operand.vmem [shape: bf16[128,400], index: 0, kind: input, shape index: {}]
  %s1 = inlined_call_operand.vmem [shape: bf16[400,128], index: 1, kind: input, shape index: {}]
  %s2 = inlined_call_operand.vmem [shape: f32[1,128], index: 2, kind: input, shape index: {}]
  %s3 = inlined_call_operand.vmem [shape: f32[1,128], index: 3, kind: input, shape index: {}]
  %s4 = inlined_call_operand.vmem [shape: f32[1,128], index: 4, kind: input, shape index: {}]
  %s5 = inlined_call_operand.vmem [shape: f32[128,128], index: 5, kind: output, shape index: {}]
  %s6 = sld [smem:[#allocation0]]
  $region30: #{gaussian_vae_forward.8} parent=0
    _
  %s8 = ssub.s32 1, %s6
  %s9 = scalar_select 0, %s8, %s6
  // Predicated region
  $region2: #{gaussian_vae_forward.8} parent=0 // pred_check
    _
  $region3: #{gaussian_vae_forward.8} parent=0 // pred_check_branch
    %11 = sbr.rel (0) target = $region5
  $region4: #{gaussian_vae_forward.8} parent=0 // pred_region
    _
  $region5: #{gaussian_vae_forward.8} parent=0 // pred_fallthru
    _
  // Predicated region
  $region6: #{gaussian_vae_forward.8} parent=0 // pred_check
    _
  $region7: #{gaussian_vae_forward.8} parent=0 // pred_check_branch
    %13 = sbr.rel (0) target = $region9
  $region8: #{gaussian_vae_forward.8} parent=0 // pred_region
    _
  $region9: #{gaussian_vae_forward.8} parent=0 // pred_fallthru
    _
  // Predicated region
  $region10: #{gaussian_vae_forward.8} parent=0 // pred_check
    _
  $region11: #{gaussian_vae_forward.8} parent=0 // pred_check_branch
    %15 = sbr.rel (0) target = $region13
  $region12: #{gaussian_vae_forward.8} parent=0 // pred_region
    _
  $region13: #{gaussian_vae_forward.8} parent=0 // pred_fallthru
    _
  // Predicated region
  $region14: #{gaussian_vae_forward.8} parent=0 // pred_check
    _
  $region15: #{gaussian_vae_forward.8} parent=0 // pred_check_branch
    %17 = sbr.rel (0) target = $region17
  $region16: #{gaussian_vae_forward.8} parent=0 // pred_region
    _
  $region17: #{gaussian_vae_forward.8} parent=0 // pred_fallthru
    _
  // Predicated region
  $region18: #{gaussian_vae_forward.8} parent=0 // pred_check
    _
  $region19: #{gaussian_vae_forward.8} parent=0 // pred_check_branch
    %19 = sbr.rel (0) target = $region21
  $region20: #{gaussian_vae_forward.8} parent=0 // pred_region
    _
  $region21: #{gaussian_vae_forward.8} parent=0 // pred_fallthru
    _
  %v21 = vld [vmem:[%s0] sm:$0xff]
  %v22 = vld [vmem:[%s0 + $0x8] sm:$0xff]
  %v23 = vld [vmem:[%s0 + $0x10] sm:$0xff]
  %v24 = vld [vmem:[%s0 + $0x18] sm:$0xff]
  %v25 = vld [vmem:[%s0 + $0x20] sm:$0xff]
  %v26 = vld [vmem:[%s0 + $0x28] sm:$0xff]
  %v27 = vld [vmem:[%s0 + $0x30] sm:$0xff]
  %v28 = vld [vmem:[%s0 + $0x38] sm:$0xff]
  %v29 = vld [vmem:[%s0 + $0x40] sm:$0xff]
  %v30 = vld [vmem:[%s0 + $0x48] sm:$0xff]
  %v31 = vld [vmem:[%s0 + $0x50] sm:$0xff]
  %v32 = vld [vmem:[%s0 + $0x58] sm:$0xff]
  %v33 = vld [vmem:[%s0 + $0x60] sm:$0xff]
  %v34 = vld [vmem:[%s0 + $0x68] sm:$0xff]
  %v35 = vld [vmem:[%s0 + $0x70] sm:$0xff]
  %v36 = vld [vmem:[%s0 + $0x78] sm:$0xff]
  %v37 = vld [vmem:[%s0 + $0x80] sm:$0xff]
  %v38 = vld [vmem:[%s0 + $0x88] sm:$0xff]
  %v39 = vld [vmem:[%s0 + $0x90] sm:$0xff]
  %v40 = vld [vmem:[%s0 + $0x98] sm:$0xff]
  %v41 = vld [vmem:[%s0 + $0xa0] sm:$0xff]
  %v42 = vld [vmem:[%s0 + $0xa8] sm:$0xff]
  %v43 = vld [vmem:[%s0 + $0xb0] sm:$0xff]
  %v44 = vld [vmem:[%s0 + $0xb8] sm:$0xff]
  %v45 = vld [vmem:[%s0 + $0xc0] sm:$0xff]
  %v46 = vld [vmem:[%s0 + $0xc8] sm:$0xff]
  %v47 = vld [vmem:[%s0 + $0xd0] sm:$0xff]
  %v48 = vld [vmem:[%s0 + $0xd8] sm:$0xff]
  %v49 = vld [vmem:[%s0 + $0xe0] sm:$0xff]
  %v50 = vld [vmem:[%s0 + $0xe8] sm:$0xff]
  %v51 = vld [vmem:[%s0 + $0xf0] sm:$0xff]
  %v52 = vld [vmem:[%s0 + $0xf8] sm:$0xff]
  %v53 = vld [vmem:[%s1] sm:$0xf]
  %v54 = vld [vmem:[%s1 + $0x4] sm:$0xf]
  %v55 = vld [vmem:[%s1 + $0x8] sm:$0xf]
  %v56 = vld [vmem:[%s1 + $0xc] sm:$0xf]
  %v57 = vld [vmem:[%s1 + $0x10] sm:$0xf]
  %v58 = vld [vmem:[%s1 + $0x14] sm:$0xf]
  %v59 = vld [vmem:[%s1 + $0x18] sm:$0xf]
  %v60 = vld [vmem:[%s1 + $0x1c] sm:$0xf]
  %v61 = vld [vmem:[%s1 + $0x20] sm:$0xf]
  %v62 = vld [vmem:[%s1 + $0x24] sm:$0xf]
  %v63 = vld [vmem:[%s1 + $0x28] sm:$0xf]
  %v64 = vld [vmem:[%s1 + $0x2c] sm:$0xf]
  %v65 = vld [vmem:[%s1 + $0x30] sm:$0xf]
  %v66 = vld [vmem:[%s1 + $0x34] sm:$0xf]
  %v67 = vld [vmem:[%s1 + $0x38] sm:$0xf]
  %v68 = vld [vmem:[%s1 + $0x3c] sm:$0xf]
  %v69 = vld [vmem:[%s1 + $0x40] sm:$0xf]
  %v70 = vld [vmem:[%s1 + $0x44] sm:$0xf]
  %v71 = vld [vmem:[%s1 + $0x48] sm:$0xf]
  %v72 = vld [vmem:[%s1 + $0x4c] sm:$0xf]
  %v73 = vld [vmem:[%s1 + $0x50] sm:$0xf]
  %v74 = vld [vmem:[%s1 + $0x54] sm:$0xf]
  %v75 = vld [vmem:[%s1 + $0x58] sm:$0xf]
  %v76 = vld [vmem:[%s1 + $0x5c] sm:$0xf]
  %v77 = vld [vmem:[%s1 + $0x60] sm:$0xf]
  %v78 = vld [vmem:[%s1 + $0x64] sm:$0xf]
  %v79 = vld [vmem:[%s1 + $0x68] sm:$0xf]
  %v80 = vld [vmem:[%s1 + $0x6c] sm:$0xf]
  %v81 = vld [vmem:[%s1 + $0x70] sm:$0xf]
  %v82 = vld [vmem:[%s1 + $0x74] sm:$0xf]
  %v83 = vld [vmem:[%s1 + $0x78] sm:$0xf]
  %v84 = vld [vmem:[%s1 + $0x7c] sm:$0xf]
  %v85 = vld [vmem:[%s1 + $0x80] sm:$0xf]
  %v86 = vld [vmem:[%s1 + $0x84] sm:$0xf]
  %v87 = vld [vmem:[%s1 + $0x88] sm:$0xf]
  %v88 = vld [vmem:[%s1 + $0x8c] sm:$0xf]
  %v89 = vld [vmem:[%s1 + $0x90] sm:$0xf]
  %v90 = vld [vmem:[%s1 + $0x94] sm:$0xf]
  %v91 = vld [vmem:[%s1 + $0x98] sm:$0xf]
  %v92 = vld [vmem:[%s1 + $0x9c] sm:$0xf]
  %v93 = vld [vmem:[%s1 + $0xa0] sm:$0xf]
  %v94 = vld [vmem:[%s1 + $0xa4] sm:$0xf]
  %v95 = vld [vmem:[%s1 + $0xa8] sm:$0xf]
  %v96 = vld [vmem:[%s1 + $0xac] sm:$0xf]
  %v97 = vld [vmem:[%s1 + $0xb0] sm:$0xf]
  %v98 = vld [vmem:[%s1 + $0xb4] sm:$0xf]
  %v99 = vld [vmem:[%s1 + $0xb8] sm:$0xf]
  %v100 = vld [vmem:[%s1 + $0xbc] sm:$0xf]
  %v101 = vld [vmem:[%s1 + $0xc0] sm:$0xf]
  %v102 = vld [vmem:[%s1 + $0xc4] sm:$0xf]
  %v103 = vld [vmem:[%s2] sm:$0x1]
  %v105 = vlaneseq
  %v106 = vshrl.u32 %v105, 7
  %v107 = vsub.s32 0, %v106
  %v108 = vrot.slane %v103, %v107
  %v142 = vunpack.c.l.b16 %v21
  %v143 = vunpack.c.h.b16 %v21
  %v144 = vunpack.c.l.b16 %v22
  %v145 = vunpack.c.h.b16 %v22
  %v146 = vunpack.c.l.b16 %v23
  %v147 = vunpack.c.h.b16 %v23
  %v148 = vunpack.c.l.b16 %v24
  %v149 = vunpack.c.h.b16 %v24
  %v150 = vunpack.c.l.b16 %v25
  %v151 = vunpack.c.h.b16 %v25
  %v152 = vunpack.c.l.b16 %v26
  %v153 = vunpack.c.h.b16 %v26
  %v154 = vunpack.c.l.b16 %v27
  %v155 = vunpack.c.h.b16 %v27
  %v156 = vunpack.c.l.b16 %v28
  %v157 = vunpack.c.h.b16 %v28
  %v158 = vunpack.c.l.b16 %v29
  %v159 = vunpack.c.h.b16 %v29
  %v160 = vunpack.c.l.b16 %v30
  %v161 = vunpack.c.h.b16 %v30
  %v162 = vunpack.c.l.b16 %v31
  %v163 = vunpack.c.h.b16 %v31
  %v164 = vunpack.c.l.b16 %v32
  %v165 = vunpack.c.h.b16 %v32
  %v166 = vunpack.c.l.b16 %v33
  %v167 = vunpack.c.h.b16 %v33
  %v168 = vunpack.c.l.b16 %v34
  %v169 = vunpack.c.h.b16 %v34
  %v170 = vunpack.c.l.b16 %v35
  %v171 = vunpack.c.h.b16 %v35
  %v172 = vunpack.c.l.b16 %v36
  %v173 = vunpack.c.h.b16 %v36
  %v174 = vunpack.c.l.b16 %v37
  %v175 = vunpack.c.h.b16 %v37
  %v176 = vunpack.c.l.b16 %v38
  %v177 = vunpack.c.h.b16 %v38
  %v178 = vunpack.c.l.b16 %v39
  %v179 = vunpack.c.h.b16 %v39
  %v180 = vunpack.c.l.b16 %v40
  %v181 = vunpack.c.h.b16 %v40
  %v182 = vunpack.c.l.b16 %v41
  %v183 = vunpack.c.h.b16 %v41
  %v184 = vunpack.c.l.b16 %v42
  %v185 = vunpack.c.h.b16 %v42
  %v186 = vunpack.c.l.b16 %v43
  %v187 = vunpack.c.h.b16 %v43
  %v188 = vunpack.c.l.b16 %v44
  %v189 = vunpack.c.h.b16 %v44
  %v190 = vunpack.c.l.b16 %v45
  %v191 = vunpack.c.h.b16 %v45
  %v192 = vunpack.c.l.b16 %v46
  %v193 = vunpack.c.h.b16 %v46
  %v194 = vunpack.c.l.b16 %v47
  %v195 = vunpack.c.h.b16 %v47
  %v196 = vunpack.c.l.b16 %v48
  %v197 = vunpack.c.h.b16 %v48
  %v198 = vunpack.c.l.b16 %v49
  %v199 = vunpack.c.h.b16 %v49
  %v200 = vunpack.c.l.b16 %v50
  %v201 = vunpack.c.h.b16 %v50
  %v202 = vunpack.c.l.b16 %v51
  %v203 = vunpack.c.h.b16 %v51
  %v204 = vunpack.c.l.b16 %v52
  %v205 = vunpack.c.h.b16 %v52
  %v206 = vpack.c.b16 %v146, %v142
  %v207 = vpack.c.b16 %v147, %v143
  %v208 = vpack.c.b16 %v148, %v144
  %v209 = vpack.c.b16 %v149, %v145
  %v210 = vpack.c.b16 %v154, %v150
  %v211 = vpack.c.b16 %v155, %v151
  %v212 = vpack.c.b16 %v156, %v152
  %v213 = vpack.c.b16 %v157, %v153
  %v214 = vpack.c.b16 %v162, %v158
  %v215 = vpack.c.b16 %v163, %v159
  %v216 = vpack.c.b16 %v164, %v160
  %v217 = vpack.c.b16 %v165, %v161
  %v218 = vpack.c.b16 %v170, %v166
  %v219 = vpack.c.b16 %v171, %v167
  %v220 = vpack.c.b16 %v172, %v168
  %v221 = vpack.c.b16 %v173, %v169
  %v222 = vpack.c.b16 %v178, %v174
  %v223 = vpack.c.b16 %v179, %v175
  %v224 = vpack.c.b16 %v180, %v176
  %v225 = vpack.c.b16 %v181, %v177
  %v226 = vpack.c.b16 %v186, %v182
  %v227 = vpack.c.b16 %v187, %v183
  %v228 = vpack.c.b16 %v188, %v184
  %v229 = vpack.c.b16 %v189, %v185
  %v230 = vpack.c.b16 %v194, %v190
  %v231 = vpack.c.b16 %v195, %v191
  %v232 = vpack.c.b16 %v196, %v192
  %v233 = vpack.c.b16 %v197, %v193
  %v234 = vpack.c.b16 %v202, %v198
  %v235 = vpack.c.b16 %v203, %v199
  %v236 = vpack.c.b16 %v204, %v200
  %v237 = vpack.c.b16 %v205, %v201
  %v312 = vunpack.c.l.b16 %v53
  %v313 = vunpack.c.l.b16 %v54
  %v314 = vunpack.c.l.b16 %v55
  %v315 = vunpack.c.l.b16 %v56
  %v316 = vunpack.c.l.b16 %v57
  %v317 = vunpack.c.l.b16 %v58
  %v318 = vunpack.c.l.b16 %v59
  %v319 = vunpack.c.l.b16 %v60
  %v320 = vunpack.c.l.b16 %v61
  %v321 = vunpack.c.l.b16 %v62
  %v322 = vunpack.c.l.b16 %v63
  %v323 = vunpack.c.l.b16 %v64
  %v324 = vunpack.c.l.b16 %v65
  %v325 = vunpack.c.l.b16 %v66
  %v326 = vunpack.c.l.b16 %v67
  %v327 = vunpack.c.l.b16 %v68
  %v328 = vunpack.c.l.b16 %v69
  %v329 = vunpack.c.l.b16 %v70
  %v330 = vunpack.c.l.b16 %v71
  %v331 = vunpack.c.l.b16 %v72
  %v332 = vunpack.c.l.b16 %v73
  %v333 = vunpack.c.l.b16 %v74
  %v334 = vunpack.c.l.b16 %v75
  %v335 = vunpack.c.l.b16 %v76
  %v336 = vunpack.c.l.b16 %v77
  %v337 = vunpack.c.l.b16 %v78
  %v338 = vunpack.c.l.b16 %v79
  %v339 = vunpack.c.l.b16 %v80
  %v340 = vunpack.c.l.b16 %v81
  %v341 = vunpack.c.l.b16 %v82
  %v342 = vunpack.c.l.b16 %v83
  %v343 = vunpack.c.l.b16 %v84
  %v344 = vunpack.c.l.b16 %v85
  %v345 = vunpack.c.l.b16 %v86
  %v346 = vunpack.c.l.b16 %v87
  %v347 = vunpack.c.l.b16 %v88
  %v348 = vunpack.c.l.b16 %v89
  %v349 = vunpack.c.l.b16 %v90
  %v350 = vunpack.c.l.b16 %v91
  %v351 = vunpack.c.l.b16 %v92
  %v352 = vunpack.c.l.b16 %v93
  %v353 = vunpack.c.l.b16 %v94
  %v354 = vunpack.c.l.b16 %v95
  %v355 = vunpack.c.l.b16 %v96
  %v356 = vunpack.c.l.b16 %v97
  %v357 = vunpack.c.l.b16 %v98
  %v358 = vunpack.c.l.b16 %v99
  %v359 = vunpack.c.l.b16 %v100
  %v360 = vunpack.c.l.b16 %v101
  %v361 = vunpack.c.l.b16 %v102
  %v362 = vpack.c.b16 %v313, %v312
  %v363 = vpack.c.b16 %v315, %v314
  %v364 = vpack.c.b16 %v317, %v316
  %v365 = vpack.c.b16 %v319, %v318
  %v366 = vpack.c.b16 %v321, %v320
  %v367 = vpack.c.b16 %v323, %v322
  %v368 = vpack.c.b16 %v325, %v324
  %v369 = vpack.c.b16 %v327, %v326
  %v370 = vpack.c.b16 %v329, %v328
  %v371 = vpack.c.b16 %v331, %v330
  %v372 = vpack.c.b16 %v333, %v332
  %v373 = vpack.c.b16 %v335, %v334
  %v374 = vpack.c.b16 %v337, %v336
  %v375 = vpack.c.b16 %v339, %v338
  %v376 = vpack.c.b16 %v341, %v340
  %v377 = vpack.c.b16 %v343, %v342
  %v378 = vpack.c.b16 %v345, %v344
  %v379 = vpack.c.b16 %v347, %v346
  %v380 = vpack.c.b16 %v349, %v348
  %v381 = vpack.c.b16 %v351, %v350
  %v382 = vpack.c.b16 %v353, %v352
  %v383 = vpack.c.b16 %v355, %v354
  %v384 = vpack.c.b16 %v357, %v356
  %v385 = vpack.c.b16 %v359, %v358
  %v386 = vpack.c.b16 %v361, %v360
  %vm412 = vcmask 130048
  %v414 = vsel %vm412, %v209, 0
  %v417 = vsel %vm412, %v213, 0
  %v420 = vsel %vm412, %v217, 0
  %v423 = vsel %vm412, %v221, 0
  %v426 = vsel %vm412, %v225, 0
  %v429 = vsel %vm412, %v229, 0
  %v432 = vsel %vm412, %v233, 0
  %v435 = vsel %vm412, %v237, 0
  %437 = vmatprep.subr.bf16.mxu0 0
  %438 = vmatpush1.bf16.msra.mxu0 %v362
  %439 = vmatprep.subr.bf16.mxu0 0
  %440 = vmatpush1.bf16.msra.mxu0 %v363
  %441 = vmatprep.subr.bf16.mxu0 0
  %442 = vmatpush1.bf16.msra.mxu0 %v364
  %443 = vmatprep.subr.bf16.mxu0 0
  %444 = vmatpush1.bf16.msra.mxu0 %v365
  %445 = vmatprep.subr.bf16.mxu0 0
  %446 = vmatpush1.bf16.msra.mxu0 %v366
  %447 = vmatprep.subr.bf16.mxu0 0
  %448 = vmatpush1.bf16.msra.mxu0 %v367
  %449 = vmatprep.subr.bf16.mxu0 0
  %450 = vmatpush1.bf16.msra.mxu0 %v368
  %451 = vmatprep.subr.bf16.mxu0 0
  %452 = vmatpush1.bf16.msra.mxu0 %v369
  %453 = vmatprep.subr.bf16.mxu0 0
  %454 = vmatpush1.bf16.msra.mxu0 %v370
  %455 = vmatprep.subr.bf16.mxu0 0
  %456 = vmatpush1.bf16.msra.mxu0 %v371
  %457 = vmatprep.subr.bf16.mxu0 0
  %458 = vmatpush1.bf16.msra.mxu0 %v372
  %459 = vmatprep.subr.bf16.mxu0 0
  %460 = vmatpush1.bf16.msra.mxu0 %v373
  %461 = vmatprep.subr.bf16.mxu0 0
  %462 = vmatpush1.bf16.msra.mxu0 %v374
  %463 = vmatprep.subr.bf16.mxu0 0
  %464 = vmatpush1.bf16.msra.mxu0 %v375
  %465 = vmatprep.subr.bf16.mxu0 0
  %466 = vmatpush1.bf16.msra.mxu0 %v376
  %467 = vmatprep.subr.bf16.mxu0 0
  %468 = vmatpush1.bf16.msra.mxu0 %v377
  %469 = vmatprep.mubr.bf16.mxu0 %v207
  %470 = vmatmul.mubr.bf16.gmra.mrb[0].mxu0 %v206
  %v471 = vpop.f32.mrb[0].mxu0
  %v472 = vadd.f32 %v108, %v471
  %v473 = vpop.f32.mrb[0].mxu0
  %v474 = vpop.f32.mrb[0].mxu0
  %v475 = vadd.f32 %v108, %v474
  %v476 = vpop.f32.mrb[0].mxu0
  %477 = vmatprep.mubr.bf16.mxu0 %v211
  %478 = vmatmul.mubr.bf16.gmra.mrb[0].mxu0 %v210
  %v479 = vpop.f32.mrb[0].mxu0
  %v480 = vadd.f32 %v108, %v479
  %v481 = vpop.f32.mrb[0].mxu0
  %v482 = vpop.f32.mrb[0].mxu0
  %v483 = vadd.f32 %v108, %v482
  %v484 = vpop.f32.mrb[0].mxu0
  %485 = vmatprep.mubr.bf16.mxu0 %v215
  %486 = vmatmul.mubr.bf16.gmra.mrb[0].mxu0 %v214
  %v487 = vpop.f32.mrb[0].mxu0
  %v488 = vadd.f32 %v108, %v487
  %v489 = vpop.f32.mrb[0].mxu0
  %v490 = vpop.f32.mrb[0].mxu0
  %v491 = vadd.f32 %v108, %v490
  %v492 = vpop.f32.mrb[0].mxu0
  %493 = vmatprep.mubr.bf16.mxu0 %v219
  %494 = vmatmul.mubr.bf16.gmra.mrb[0].mxu0 %v218
  %v495 = vpop.f32.mrb[0].mxu0
  %v496 = vadd.f32 %v108, %v495
  %v497 = vpop.f32.mrb[0].mxu0
  %v498 = vpop.f32.mrb[0].mxu0
  %v499 = vadd.f32 %v108, %v498
  %v500 = vpop.f32.mrb[0].mxu0
  %501 = vmatprep.mubr.bf16.mxu0 %v223
  %502 = vmatmul.mubr.bf16.gmra.mrb[0].mxu0 %v222
  %v503 = vpop.f32.mrb[0].mxu0
  %v504 = vadd.f32 %v108, %v503
  %v505 = vpop.f32.mrb[0].mxu0
  %v506 = vpop.f32.mrb[0].mxu0
  %v507 = vadd.f32 %v108, %v506
  %v508 = vpop.f32.mrb[0].mxu0
  %509 = vmatprep.mubr.bf16.mxu0 %v227
  %510 = vmatmul.mubr.bf16.gmra.mrb[0].mxu0 %v226
  %v511 = vpop.f32.mrb[0].mxu0
  %v512 = vadd.f32 %v108, %v511
  %v513 = vpop.f32.mrb[0].mxu0
  %v514 = vpop.f32.mrb[0].mxu0
  %v515 = vadd.f32 %v108, %v514
  %v516 = vpop.f32.mrb[0].mxu0
  %517 = vmatprep.mubr.bf16.mxu0 %v231
  %518 = vmatmul.mubr.bf16.gmra.mrb[0].mxu0 %v230
  %v519 = vpop.f32.mrb[0].mxu0
  %v520 = vadd.f32 %v108, %v519
  %v521 = vpop.f32.mrb[0].mxu0
  %v522 = vpop.f32.mrb[0].mxu0
  %v523 = vadd.f32 %v108, %v522
  %v524 = vpop.f32.mrb[0].mxu0
  %525 = vmatprep.mubr.bf16.mxu0 %v235
  %526 = vmatmul.mubr.bf16.gmra.mrb[0].mxu0 %v234
  %v527 = vpop.f32.mrb[0].mxu0
  %v528 = vadd.f32 %v108, %v527
  %v529 = vpop.f32.mrb[0].mxu0
  %v530 = vpop.f32.mrb[0].mxu0
  %v531 = vadd.f32 %v108, %v530
  %v532 = vpop.f32.mrb[0].mxu0
  %533 = vdwg.mxu0
  %534 = vmatprep.subr.bf16.mxu0 0
  %535 = vmatpush1.bf16.msra.mxu0 %v378
  %536 = vmatprep.subr.bf16.mxu0 0
  %537 = vmatpush1.bf16.msra.mxu0 %v379
  %538 = vmatprep.subr.bf16.mxu0 0
  %539 = vmatpush1.bf16.msra.mxu0 %v380
  %540 = vmatprep.subr.bf16.mxu0 0
  %541 = vmatpush1.bf16.msra.mxu0 %v381
  %542 = vmatprep.subr.bf16.mxu0 0
  %543 = vmatpush1.bf16.msra.mxu0 %v382
  %544 = vmatprep.subr.bf16.mxu0 0
  %545 = vmatpush1.bf16.msra.mxu0 %v383
  %546 = vmatprep.subr.bf16.mxu0 0
  %547 = vmatpush1.bf16.msra.mxu0 %v384
  %548 = vmatprep.subr.bf16.mxu0 0
  %549 = vmatpush1.bf16.msra.mxu0 %v385
  %550 = vmatprep.subr.bf16.mxu0 0
  %551 = vmatpush1.bf16.msra.mxu0 %v386
  %552 = vmatprep.subr.bf16.mxu0 0
  %553 = vmatpush1.bf16.msra.mxu0 0
  %554 = vmatprep.subr.bf16.mxu0 0
  %555 = vmatpush1.bf16.msra.mxu0 0
  %556 = vmatprep.subr.bf16.mxu0 0
  %557 = vmatpush1.bf16.msra.mxu0 0
  %558 = vmatprep.subr.bf16.mxu0 0
  %559 = vmatpush1.bf16.msra.mxu0 0
  %560 = vmatprep.subr.bf16.mxu0 0
  %561 = vmatpush1.bf16.msra.mxu0 0
  %562 = vmatprep.subr.bf16.mxu0 0
  %563 = vmatpush1.bf16.msra.mxu0 0
  %564 = vmatprep.subr.bf16.mxu0 0
  %565 = vmatpush1.bf16.msra.mxu0 0
  %566 = vmatprep.mubr.bf16.mxu0 %v414
  %567 = vmatmul.mubr.bf16.gmra.mrb[0].mxu0 %v208
  %v568 = vpop.f32.mrb[0].mxu0
  %v569 = vadd.f32 %v472, %v568
  %v570 = vpop.f32.mrb[0].mxu0
  %v571 = vpop.f32.mrb[0].mxu0
  %v572 = vadd.f32 %v475, %v571
  %v573 = vpop.f32.mrb[0].mxu0
  %574 = vmatprep.mubr.bf16.mxu0 %v417
  %575 = vmatmul.mubr.bf16.gmra.mrb[0].mxu0 %v212
  %v576 = vpop.f32.mrb[0].mxu0
  %v577 = vadd.f32 %v480, %v576
  %v578 = vpop.f32.mrb[0].mxu0
  %v579 = vpop.f32.mrb[0].mxu0
  %v580 = vadd.f32 %v483, %v579
  %v581 = vpop.f32.mrb[0].mxu0
  %582 = vmatprep.mubr.bf16.mxu0 %v420
  %583 = vmatmul.mubr.bf16.gmra.mrb[0].mxu0 %v216
  %v584 = vpop.f32.mrb[0].mxu0
  %v585 = vadd.f32 %v488, %v584
  %v586 = vpop.f32.mrb[0].mxu0
  %v587 = vpop.f32.mrb[0].mxu0
  %v588 = vadd.f32 %v491, %v587
  %v589 = vpop.f32.mrb[0].mxu0
  %590 = vmatprep.mubr.bf16.mxu0 %v423
  %591 = vmatmul.mubr.bf16.gmra.mrb[0].mxu0 %v220
  %v592 = vpop.f32.mrb[0].mxu0
  %v593 = vadd.f32 %v496, %v592
  %v594 = vpop.f32.mrb[0].mxu0
  %v595 = vpop.f32.mrb[0].mxu0
  %v596 = vadd.f32 %v499, %v595
  %v597 = vpop.f32.mrb[0].mxu0
  %598 = vmatprep.mubr.bf16.mxu0 %v426
  %599 = vmatmul.mubr.bf16.gmra.mrb[0].mxu0 %v224
  %v600 = vpop.f32.mrb[0].mxu0
  %v601 = vadd.f32 %v504, %v600
  %v602 = vpop.f32.mrb[0].mxu0
  %v603 = vpop.f32.mrb[0].mxu0
  %v604 = vadd.f32 %v507, %v603
  %v605 = vpop.f32.mrb[0].mxu0
  %606 = vmatprep.mubr.bf16.mxu0 %v429
  %607 = vmatmul.mubr.bf16.gmra.mrb[0].mxu0 %v228
  %v608 = vpop.f32.mrb[0].mxu0
  %v609 = vadd.f32 %v512, %v608
  %v610 = vpop.f32.mrb[0].mxu0
  %v611 = vpop.f32.mrb[0].mxu0
  %v612 = vadd.f32 %v515, %v611
  %v613 = vpop.f32.mrb[0].mxu0
  %614 = vmatprep.mubr.bf16.mxu0 %v432
  %615 = vmatmul.mubr.bf16.gmra.mrb[0].mxu0 %v232
  %v616 = vpop.f32.mrb[0].mxu0
  %v617 = vadd.f32 %v520, %v616
  %v618 = vpop.f32.mrb[0].mxu0
  %v619 = vpop.f32.mrb[0].mxu0
  %v620 = vadd.f32 %v523, %v619
  %v621 = vpop.f32.mrb[0].mxu0
  %622 = vmatprep.mubr.bf16.mxu0 %v435
  %623 = vmatmul.mubr.bf16.gmra.mrb[0].mxu0 %v236
  %v624 = vpop.f32.mrb[0].mxu0
  %v625 = vadd.f32 %v528, %v624
  %v626 = vpop.f32.mrb[0].mxu0
  %v627 = vpop.f32.mrb[0].mxu0
  %v628 = vadd.f32 %v531, %v627
  %v629 = vpop.f32.mrb[0].mxu0
  %630 = vdwg.mxu0
  %v631 = vadd.f32 %v569, %v572
  %v632 = vadd.f32 %v631, %v577
  %v633 = vadd.f32 %v632, %v580
  %v634 = vadd.f32 %v633, %v585
  %v635 = vadd.f32 %v634, %v588
  %v636 = vadd.f32 %v635, %v593
  %v637 = vadd.f32 %v636, %v596
  %v638 = vadd.f32 %v637, %v601
  %v639 = vadd.f32 %v638, %v604
  %v640 = vadd.f32 %v639, %v609
  %v641 = vadd.f32 %v640, %v612
  %v642 = vadd.f32 %v641, %v617
  %v643 = vadd.f32 %v642, %v620
  %v644 = vadd.f32 %v643, %v625
  %v645 = vadd.f32 %v644, %v628
  %v646 = vrot.slane %v645, 4
  %v647 = vadd.f32 %v645, %v646
  %v648 = vrot.slane %v647, 2
  %v649 = vadd.f32 %v647, %v648
  %v650 = vrot.slane %v649, 1
  %v651 = vadd.f32 %v649, %v650
  %v652 = vrcp.pop 128.0
  %v653 = vmul.f32 %v651, %v652
  %v654 = vmul.f32 %v569, %v569
  %v655 = vmul.f32 %v572, %v572
  %v656 = vmul.f32 %v577, %v577
  %v657 = vmul.f32 %v580, %v580
  %v658 = vmul.f32 %v585, %v585
  %v659 = vmul.f32 %v588, %v588
  %v660 = vmul.f32 %v593, %v593
  %v661 = vmul.f32 %v596, %v596
  %v662 = vmul.f32 %v601, %v601
  %v663 = vmul.f32 %v604, %v604
  %v664 = vmul.f32 %v609, %v609
  %v665 = vmul.f32 %v612, %v612
  %v666 = vmul.f32 %v617, %v617
  %v667 = vmul.f32 %v620, %v620
  %v668 = vmul.f32 %v625, %v625
  %v669 = vmul.f32 %v628, %v628
  %v670 = vadd.f32 %v654, %v655
  %v671 = vadd.f32 %v670, %v656
  %v672 = vadd.f32 %v671, %v657
  %v673 = vadd.f32 %v672, %v658
  %v674 = vadd.f32 %v673, %v659
  %v675 = vadd.f32 %v674, %v660
  %v676 = vadd.f32 %v675, %v661
  %v677 = vadd.f32 %v676, %v662
  %v678 = vadd.f32 %v677, %v663
  %v679 = vadd.f32 %v678, %v664
  %v680 = vadd.f32 %v679, %v665
  %v681 = vadd.f32 %v680, %v666
  %v682 = vadd.f32 %v681, %v667
  %v683 = vadd.f32 %v682, %v668
  %v684 = vadd.f32 %v683, %v669
  %v685 = vrot.slane %v684, 4
  %v686 = vadd.f32 %v684, %v685
  %v687 = vrot.slane %v686, 2
  %v688 = vadd.f32 %v686, %v687
  %v689 = vrot.slane %v688, 1
  %v690 = vadd.f32 %v688, %v689
  %v691 = vmul.f32 %v690, %v652
  %v692 = vmul.f32 %v653, %v653
  %v693 = vsub.f32 %v691, %v692
  %v694 = vmax.f32 %v693, 0.0
  %v695 = vsub.f32 %v569, %v653
  %v696 = vsub.f32 %v572, %v653
  %v697 = vsub.f32 %v577, %v653
  %v698 = vsub.f32 %v580, %v653
  %v699 = vsub.f32 %v585, %v653
  %v700 = vsub.f32 %v588, %v653
  %v701 = vsub.f32 %v593, %v653
  %v702 = vsub.f32 %v596, %v653
  %v703 = vsub.f32 %v601, %v653
  %v704 = vsub.f32 %v604, %v653
  %v705 = vsub.f32 %v609, %v653
  %v706 = vsub.f32 %v612, %v653
  %v707 = vsub.f32 %v617, %v653
  %v708 = vsub.f32 %v620, %v653
  %v709 = vsub.f32 %v625, %v653
  %v710 = vsub.f32 %v628, %v653
  %v711 = vadd.f32 %v694, 1e-05
  %v712 = vrsqrt.pop %v711
  %v713 = vmul.f32 %v695, %v712
  %v714 = vmul.f32 %v696, %v712
  %v715 = vmul.f32 %v697, %v712
  %v716 = vmul.f32 %v698, %v712
  %v717 = vmul.f32 %v699, %v712
  %v718 = vmul.f32 %v700, %v712
  %v719 = vmul.f32 %v701, %v712
  %v720 = vmul.f32 %v702, %v712
  %v721 = vmul.f32 %v703, %v712
  %v722 = vmul.f32 %v704, %v712
  %v723 = vmul.f32 %v705, %v712
  %v724 = vmul.f32 %v706, %v712
  %v725 = vmul.f32 %v707, %v712
  %v726 = vmul.f32 %v708, %v712
  %v727 = vmul.f32 %v709, %v712
  %v728 = vmul.f32 %v710, %v712
  %v729 = vld [vmem:[%s3] sm:$0x1]
  %v731 = vlaneseq
  %v732 = vshrl.u32 %v731, 7
  %v733 = vsub.s32 0, %v732
  %v734 = vrot.slane %v729, %v733
  %v736 = vmul.f32 %v713, %v734
  %v737 = vmul.f32 %v714, %v734
  %v738 = vmul.f32 %v715, %v734
  %v739 = vmul.f32 %v716, %v734
  %v740 = vmul.f32 %v717, %v734
  %v741 = vmul.f32 %v718, %v734
  %v742 = vmul.f32 %v719, %v734
  %v743 = vmul.f32 %v720, %v734
  %v744 = vmul.f32 %v721, %v734
  %v745 = vmul.f32 %v722, %v734
  %v746 = vmul.f32 %v723, %v734
  %v747 = vmul.f32 %v724, %v734
  %v748 = vmul.f32 %v725, %v734
  %v749 = vmul.f32 %v726, %v734
  %v750 = vmul.f32 %v727, %v734
  %v751 = vmul.f32 %v728, %v734
  %v752 = vld [vmem:[%s4] sm:$0x1]
  %v754 = vlaneseq
  %v755 = vshrl.u32 %v754, 7
  %v756 = vsub.s32 0, %v755
  %v757 = vrot.slane %v752, %v756
  %v759 = vadd.f32 %v736, %v757
  %v760 = vadd.f32 %v737, %v757
  %v761 = vadd.f32 %v738, %v757
  %v762 = vadd.f32 %v739, %v757
  %v763 = vadd.f32 %v740, %v757
  %v764 = vadd.f32 %v741, %v757
  %v765 = vadd.f32 %v742, %v757
  %v766 = vadd.f32 %v743, %v757
  %v767 = vadd.f32 %v744, %v757
  %v768 = vadd.f32 %v745, %v757
  %v769 = vadd.f32 %v746, %v757
  %v770 = vadd.f32 %v747, %v757
  %v771 = vadd.f32 %v748, %v757
  %v772 = vadd.f32 %v749, %v757
  %v773 = vadd.f32 %v750, %v757
  %v774 = vadd.f32 %v751, %v757
  %vm775 = vcmp.ge.f32.partialorder %v759, 0.0
  %vm776 = vcmp.ge.f32.partialorder %v760, 0.0
  %vm777 = vcmp.ge.f32.partialorder %v761, 0.0
  %vm778 = vcmp.ge.f32.partialorder %v762, 0.0
  %vm779 = vcmp.ge.f32.partialorder %v763, 0.0
  %vm780 = vcmp.ge.f32.partialorder %v764, 0.0
  %vm781 = vcmp.ge.f32.partialorder %v765, 0.0
  %vm782 = vcmp.ge.f32.partialorder %v766, 0.0
  %vm783 = vcmp.ge.f32.partialorder %v767, 0.0
  %vm784 = vcmp.ge.f32.partialorder %v768, 0.0
  %vm785 = vcmp.ge.f32.partialorder %v769, 0.0
  %vm786 = vcmp.ge.f32.partialorder %v770, 0.0
  %vm787 = vcmp.ge.f32.partialorder %v771, 0.0
  %vm788 = vcmp.ge.f32.partialorder %v772, 0.0
  %vm789 = vcmp.ge.f32.partialorder %v773, 0.0
  %vm790 = vcmp.ge.f32.partialorder %v774, 0.0
  %v791 = vmul.f32 %v759, 0.01
  %v792 = vmul.f32 %v760, 0.01
  %v793 = vmul.f32 %v761, 0.01
  %v794 = vmul.f32 %v762, 0.01
  %v795 = vmul.f32 %v763, 0.01
  %v796 = vmul.f32 %v764, 0.01
  %v797 = vmul.f32 %v765, 0.01
  %v798 = vmul.f32 %v766, 0.01
  %v799 = vmul.f32 %v767, 0.01
  %v800 = vmul.f32 %v768, 0.01
  %v801 = vmul.f32 %v769, 0.01
  %v802 = vmul.f32 %v770, 0.01
  %v803 = vmul.f32 %v771, 0.01
  %v804 = vmul.f32 %v772, 0.01
  %v805 = vmul.f32 %v773, 0.01
  %v806 = vmul.f32 %v774, 0.01
  %v807 = vsel %vm775, %v759, %v791
  %v808 = vsel %vm776, %v760, %v792
  %v809 = vsel %vm777, %v761, %v793
  %v810 = vsel %vm778, %v762, %v794
  %v811 = vsel %vm779, %v763, %v795
  %v812 = vsel %vm780, %v764, %v796
  %v813 = vsel %vm781, %v765, %v797
  %v814 = vsel %vm782, %v766, %v798
  %v815 = vsel %vm783, %v767, %v799
  %v816 = vsel %vm784, %v768, %v800
  %v817 = vsel %vm785, %v769, %v801
  %v818 = vsel %vm786, %v770, %v802
  %v819 = vsel %vm787, %v771, %v803
  %v820 = vsel %vm788, %v772, %v804
  %v821 = vsel %vm789, %v773, %v805
  %v822 = vsel %vm790, %v774, %v806
  %823 = vst [vmem:[%s5] sm:$0xff] %v807
  %824 = vst [vmem:[%s5 + $0x8] sm:$0xff] %v808
  %825 = vst [vmem:[%s5 + $0x10] sm:$0xff] %v809
  %826 = vst [vmem:[%s5 + $0x18] sm:$0xff] %v810
  %827 = vst [vmem:[%s5 + $0x20] sm:$0xff] %v811
  %828 = vst [vmem:[%s5 + $0x28] sm:$0xff] %v812
  %829 = vst [vmem:[%s5 + $0x30] sm:$0xff] %v813
  %830 = vst [vmem:[%s5 + $0x38] sm:$0xff] %v814
  %831 = vst [vmem:[%s5 + $0x40] sm:$0xff] %v815
  %832 = vst [vmem:[%s5 + $0x48] sm:$0xff] %v816
  %833 = vst [vmem:[%s5 + $0x50] sm:$0xff] %v817
  %834 = vst [vmem:[%s5 + $0x58] sm:$0xff] %v818
  %835 = vst [vmem:[%s5 + $0x60] sm:$0xff] %v819
  %836 = vst [vmem:[%s5 + $0x68] sm:$0xff] %v820
  %837 = vst [vmem:[%s5 + $0x70] sm:$0xff] %v821
  %838 = vst [vmem:[%s5 + $0x78] sm:$0xff] %v822
  // Predicated region
  $region22: #{gaussian_vae_forward.8} parent=0 // pred_check
    _
  $region23: #{gaussian_vae_forward.8} parent=0 // pred_check_branch
    %840 = sbr.rel (0) target = $region25
  $region24: #{gaussian_vae_forward.8} parent=0 // pred_region
    _
  $region25: #{gaussian_vae_forward.8} parent=0 // pred_fallthru
    _
  // Predicated region
  $region26: #{gaussian_vae_forward.8} parent=0 // pred_check
    _
  $region27: #{gaussian_vae_forward.8} parent=0 // pred_check_branch
    %842 = sbr.rel (0) target = $region29
  $region28: #{gaussian_vae_forward.8} parent=0 // pred_region
    _
  $region29: #{gaussian_vae_forward.8} parent=0 // pred_fallthru
    _

// kernel: gaussian_vae_forward.9
$region0: #{gaussian_vae_forward.9}
  #allocation0 [shape = 'u32[]', space=smem, size = 0x4, offset = 0x4, fixed_abs, tag = 'smem constant byte address 0x4 - core index']
  #allocation1 [shape = 'u32[144,128]{1,0:T(1,128)}', space=vmem, size = 0x12000, scoped, tag = 'internal scratch']
  %s0 = inlined_call_operand.vmem [shape: bf16[512,200], index: 0, kind: input, shape index: {}]
  %s1 = inlined_call_operand.vmem [shape: bf16[200,128], index: 1, kind: input, shape index: {}]
  %s2 = inlined_call_operand.vmem [shape: f32[1,128], index: 2, kind: input, shape index: {}]
  %s3 = inlined_call_operand.vmem [shape: f32[1,128], index: 3, kind: input, shape index: {}]
  %s4 = inlined_call_operand.vmem [shape: f32[1,128], index: 4, kind: input, shape index: {}]
  %s5 = inlined_call_operand.vmem [shape: f32[512,128], index: 5, kind: output, shape index: {}]
  %s6 = sld [smem:[#allocation0]]
  $region30: #{gaussian_vae_forward.9} parent=0
    _
  %s8 = ssub.s32 1, %s6
  %s9 = scalar_select 0, %s8, %s6
  // Predicated region
  $region2: #{gaussian_vae_forward.9} parent=0 // pred_check
    _
  $region3: #{gaussian_vae_forward.9} parent=0 // pred_check_branch
    %11 = sbr.rel (0) target = $region5
  $region4: #{gaussian_vae_forward.9} parent=0 // pred_region
    _
  $region5: #{gaussian_vae_forward.9} parent=0 // pred_fallthru
    _
  // Predicated region
  $region6: #{gaussian_vae_forward.9} parent=0 // pred_check
    _
  $region7: #{gaussian_vae_forward.9} parent=0 // pred_check_branch
    %13 = sbr.rel (0) target = $region9
  $region8: #{gaussian_vae_forward.9} parent=0 // pred_region
    _
  $region9: #{gaussian_vae_forward.9} parent=0 // pred_fallthru
    _
  // Predicated region
  $region10: #{gaussian_vae_forward.9} parent=0 // pred_check
    _
  $region11: #{gaussian_vae_forward.9} parent=0 // pred_check_branch
    %15 = sbr.rel (0) target = $region13
  $region12: #{gaussian_vae_forward.9} parent=0 // pred_region
    _
  $region13: #{gaussian_vae_forward.9} parent=0 // pred_fallthru
    _
  // Predicated region
  $region14: #{gaussian_vae_forward.9} parent=0 // pred_check
    _
  $region15: #{gaussian_vae_forward.9} parent=0 // pred_check_branch
    %17 = sbr.rel (0) target = $region17
  $region16: #{gaussian_vae_forward.9} parent=0 // pred_region
    _
  $region17: #{gaussian_vae_forward.9} parent=0 // pred_fallthru
    _
  // Predicated region
  $region18: #{gaussian_vae_forward.9} parent=0 // pred_check
    _
  $region19: #{gaussian_vae_forward.9} parent=0 // pred_check_branch
    %19 = sbr.rel (0) target = $region21
  $region20: #{gaussian_vae_forward.9} parent=0 // pred_region
    _
  $region21: #{gaussian_vae_forward.9} parent=0 // pred_fallthru
    _
  %v21 = vld [vmem:[%s0] sm:$0xff]
  %v22 = vld [vmem:[%s0 + $0x8] sm:$0xff]
  %v23 = vld [vmem:[%s0 + $0x10] sm:$0xff]
  %v24 = vld [vmem:[%s0 + $0x18] sm:$0xff]
  %v25 = vld [vmem:[%s0 + $0x20] sm:$0xff]
  %v26 = vld [vmem:[%s0 + $0x28] sm:$0xff]
  %v27 = vld [vmem:[%s0 + $0x30] sm:$0xff]
  %v28 = vld [vmem:[%s0 + $0x38] sm:$0xff]
  %v29 = vld [vmem:[%s0 + $0x40] sm:$0xff]
  %v30 = vld [vmem:[%s0 + $0x48] sm:$0xff]
  %v31 = vld [vmem:[%s0 + $0x50] sm:$0xff]
  %v32 = vld [vmem:[%s0 + $0x58] sm:$0xff]
  %v33 = vld [vmem:[%s0 + $0x60] sm:$0xff]
  %v34 = vld [vmem:[%s0 + $0x68] sm:$0xff]
  %v35 = vld [vmem:[%s0 + $0x70] sm:$0xff]
  %v36 = vld [vmem:[%s0 + $0x78] sm:$0xff]
  %v37 = vld [vmem:[%s0 + $0x80] sm:$0xff]
  %v38 = vld [vmem:[%s0 + $0x88] sm:$0xff]
  %v39 = vld [vmem:[%s0 + $0x90] sm:$0xff]
  %v40 = vld [vmem:[%s0 + $0x98] sm:$0xff]
  %v41 = vld [vmem:[%s0 + $0xa0] sm:$0xff]
  %v42 = vld [vmem:[%s0 + $0xa8] sm:$0xff]
  %v43 = vld [vmem:[%s0 + $0xb0] sm:$0xff]
  %v44 = vld [vmem:[%s0 + $0xb8] sm:$0xff]
  %v45 = vld [vmem:[%s0 + $0xc0] sm:$0xff]
  %v46 = vld [vmem:[%s0 + $0xc8] sm:$0xff]
  %v47 = vld [vmem:[%s0 + $0xd0] sm:$0xff]
  %v48 = vld [vmem:[%s0 + $0xd8] sm:$0xff]
  %v49 = vld [vmem:[%s0 + $0xe0] sm:$0xff]
  %v50 = vld [vmem:[%s0 + $0xe8] sm:$0xff]
  %v51 = vld [vmem:[%s0 + $0xf0] sm:$0xff]
  %v52 = vld [vmem:[%s0 + $0xf8] sm:$0xff]
  %v53 = vld [vmem:[%s0 + $0x100] sm:$0xff]
  %v54 = vld [vmem:[%s0 + $0x108] sm:$0xff]
  %v55 = vld [vmem:[%s0 + $0x110] sm:$0xff]
  %v56 = vld [vmem:[%s0 + $0x118] sm:$0xff]
  %v57 = vld [vmem:[%s0 + $0x120] sm:$0xff]
  %v58 = vld [vmem:[%s0 + $0x128] sm:$0xff]
  %v59 = vld [vmem:[%s0 + $0x130] sm:$0xff]
  %v60 = vld [vmem:[%s0 + $0x138] sm:$0xff]
  %v61 = vld [vmem:[%s0 + $0x140] sm:$0xff]
  %v62 = vld [vmem:[%s0 + $0x148] sm:$0xff]
  %v63 = vld [vmem:[%s0 + $0x150] sm:$0xff]
  %v64 = vld [vmem:[%s0 + $0x158] sm:$0xff]
  %v65 = vld [vmem:[%s0 + $0x160] sm:$0xff]
  %v66 = vld [vmem:[%s0 + $0x168] sm:$0xff]
  %v67 = vld [vmem:[%s0 + $0x170] sm:$0xff]
  %v68 = vld [vmem:[%s0 + $0x178] sm:$0xff]
  %v69 = vld [vmem:[%s0 + $0x180] sm:$0xff]
  %v70 = vld [vmem:[%s0 + $0x188] sm:$0xff]
  %v71 = vld [vmem:[%s0 + $0x190] sm:$0xff]
  %v72 = vld [vmem:[%s0 + $0x198] sm:$0xff]
  %v73 = vld [vmem:[%s0 + $0x1a0] sm:$0xff]
  %v74 = vld [vmem:[%s0 + $0x1a8] sm:$0xff]
  %v75 = vld [vmem:[%s0 + $0x1b0] sm:$0xff]
  %v76 = vld [vmem:[%s0 + $0x1b8] sm:$0xff]
  %v77 = vld [vmem:[%s0 + $0x1c0] sm:$0xff]
  %v78 = vld [vmem:[%s0 + $0x1c8] sm:$0xff]
  %v79 = vld [vmem:[%s0 + $0x1d0] sm:$0xff]
  %v80 = vld [vmem:[%s0 + $0x1d8] sm:$0xff]
  %v81 = vld [vmem:[%s0 + $0x1e0] sm:$0xff]
  %v82 = vld [vmem:[%s0 + $0x1e8] sm:$0xff]
  %v83 = vld [vmem:[%s0 + $0x1f0] sm:$0xff]
  %v84 = vld [vmem:[%s0 + $0x1f8] sm:$0xff]
  %v85 = vld [vmem:[%s1] sm:$0xf]
  %v86 = vld [vmem:[%s1 + $0x4] sm:$0xf]
  %v87 = vld [vmem:[%s1 + $0x8] sm:$0xf]
  %v88 = vld [vmem:[%s1 + $0xc] sm:$0xf]
  %v89 = vld [vmem:[%s1 + $0x10] sm:$0xf]
  %v90 = vld [vmem:[%s1 + $0x14] sm:$0xf]
  %v91 = vld [vmem:[%s1 + $0x18] sm:$0xf]
  %v92 = vld [vmem:[%s1 + $0x1c] sm:$0xf]
  %v93 = vld [vmem:[%s1 + $0x20] sm:$0xf]
  %v94 = vld [vmem:[%s1 + $0x24] sm:$0xf]
  %v95 = vld [vmem:[%s1 + $0x28] sm:$0xf]
  %v96 = vld [vmem:[%s1 + $0x2c] sm:$0xf]
  %v97 = vld [vmem:[%s1 + $0x30] sm:$0xf]
  %v98 = vld [vmem:[%s1 + $0x34] sm:$0xf]
  %v99 = vld [vmem:[%s1 + $0x38] sm:$0xf]
  %v100 = vld [vmem:[%s1 + $0x3c] sm:$0xf]
  %v101 = vld [vmem:[%s1 + $0x40] sm:$0xf]
  %v102 = vld [vmem:[%s1 + $0x44] sm:$0xf]
  %v103 = vld [vmem:[%s1 + $0x48] sm:$0xf]
  %v104 = vld [vmem:[%s1 + $0x4c] sm:$0xf]
  %v105 = vld [vmem:[%s1 + $0x50] sm:$0xf]
  %v106 = vld [vmem:[%s1 + $0x54] sm:$0xf]
  %v107 = vld [vmem:[%s1 + $0x58] sm:$0xf]
  %v108 = vld [vmem:[%s1 + $0x5c] sm:$0xf]
  %v109 = vld [vmem:[%s1 + $0x60] sm:$0xf]
  %v110 = vld [vmem:[%s2] sm:$0x1]
  %v112 = vlaneseq
  %v113 = vshrl.u32 %v112, 7
  %v114 = vsub.s32 0, %v113
  %v115 = vrot.slane %v110, %v114
  %v181 = vunpack.c.l.b16 %v21
  %v182 = vunpack.c.h.b16 %v21
  %v183 = vunpack.c.l.b16 %v22
  %v184 = vunpack.c.h.b16 %v22
  %v185 = vunpack.c.l.b16 %v23
  %v186 = vunpack.c.h.b16 %v23
  %v187 = vunpack.c.l.b16 %v24
  %v188 = vunpack.c.h.b16 %v24
  %v189 = vunpack.c.l.b16 %v25
  %v190 = vunpack.c.h.b16 %v25
  %v191 = vunpack.c.l.b16 %v26
  %v192 = vunpack.c.h.b16 %v26
  %v193 = vunpack.c.l.b16 %v27
  %v194 = vunpack.c.h.b16 %v27
  %v195 = vunpack.c.l.b16 %v28
  %v196 = vunpack.c.h.b16 %v28
  %v197 = vunpack.c.l.b16 %v29
  %v198 = vunpack.c.h.b16 %v29
  %v199 = vunpack.c.l.b16 %v30
  %v200 = vunpack.c.h.b16 %v30
  %v201 = vunpack.c.l.b16 %v31
  %v202 = vunpack.c.h.b16 %v31
  %v203 = vunpack.c.l.b16 %v32
  %v204 = vunpack.c.h.b16 %v32
  %v205 = vunpack.c.l.b16 %v33
  %v206 = vunpack.c.h.b16 %v33
  %v207 = vunpack.c.l.b16 %v34
  %v208 = vunpack.c.h.b16 %v34
  %v209 = vunpack.c.l.b16 %v35
  %v210 = vunpack.c.h.b16 %v35
  %v211 = vunpack.c.l.b16 %v36
  %v212 = vunpack.c.h.b16 %v36
  %v213 = vunpack.c.l.b16 %v37
  %v214 = vunpack.c.h.b16 %v37
  %v215 = vunpack.c.l.b16 %v38
  %v216 = vunpack.c.h.b16 %v38
  %v217 = vunpack.c.l.b16 %v39
  %v218 = vunpack.c.h.b16 %v39
  %v219 = vunpack.c.l.b16 %v40
  %v220 = vunpack.c.h.b16 %v40
  %v221 = vunpack.c.l.b16 %v41
  %v222 = vunpack.c.h.b16 %v41
  %v223 = vunpack.c.l.b16 %v42
  %v224 = vunpack.c.h.b16 %v42
  %v225 = vunpack.c.l.b16 %v43
  %v226 = vunpack.c.h.b16 %v43
  %v227 = vunpack.c.l.b16 %v44
  %v228 = vunpack.c.h.b16 %v44
  %v229 = vunpack.c.l.b16 %v45
  %v230 = vunpack.c.h.b16 %v45
  %v231 = vunpack.c.l.b16 %v46
  %v232 = vunpack.c.h.b16 %v46
  %v233 = vunpack.c.l.b16 %v47
  %v234 = vunpack.c.h.b16 %v47
  %v235 = vunpack.c.l.b16 %v48
  %v236 = vunpack.c.h.b16 %v48
  %v237 = vunpack.c.l.b16 %v49
  %v238 = vunpack.c.h.b16 %v49
  %v239 = vunpack.c.l.b16 %v50
  %v240 = vunpack.c.h.b16 %v50
  %v241 = vunpack.c.l.b16 %v51
  %v242 = vunpack.c.h.b16 %v51
  %v243 = vunpack.c.l.b16 %v52
  %v244 = vunpack.c.h.b16 %v52
  %v245 = vunpack.c.l.b16 %v53
  %v246 = vunpack.c.h.b16 %v53
  %v247 = vunpack.c.l.b16 %v54
  %v248 = vunpack.c.h.b16 %v54
  %v249 = vunpack.c.l.b16 %v55
  %v250 = vunpack.c.h.b16 %v55
  %v251 = vunpack.c.l.b16 %v56
  %v252 = vunpack.c.h.b16 %v56
  %v253 = vunpack.c.l.b16 %v57
  %v254 = vunpack.c.h.b16 %v57
  %v255 = vunpack.c.l.b16 %v58
  %v256 = vunpack.c.h.b16 %v58
  %v257 = vunpack.c.l.b16 %v59
  %v258 = vunpack.c.h.b16 %v59
  %v259 = vunpack.c.l.b16 %v60
  %v260 = vunpack.c.h.b16 %v60
  %v261 = vunpack.c.l.b16 %v61
  %v262 = vunpack.c.h.b16 %v61
  %v263 = vunpack.c.l.b16 %v62
  %v264 = vunpack.c.h.b16 %v62
  %v265 = vunpack.c.l.b16 %v63
  %v266 = vunpack.c.h.b16 %v63
  %v267 = vunpack.c.l.b16 %v64
  %v268 = vunpack.c.h.b16 %v64
  %v269 = vunpack.c.l.b16 %v65
  %v270 = vunpack.c.h.b16 %v65
  %v271 = vunpack.c.l.b16 %v66
  %v272 = vunpack.c.h.b16 %v66
  %v273 = vunpack.c.l.b16 %v67
  %v274 = vunpack.c.h.b16 %v67
  %v275 = vunpack.c.l.b16 %v68
  %v276 = vunpack.c.h.b16 %v68
  %v277 = vunpack.c.l.b16 %v69
  %v278 = vunpack.c.h.b16 %v69
  %v279 = vunpack.c.l.b16 %v70
  %v280 = vunpack.c.h.b16 %v70
  %v281 = vunpack.c.l.b16 %v71
  %v282 = vunpack.c.h.b16 %v71
  %v283 = vunpack.c.l.b16 %v72
  %v284 = vunpack.c.h.b16 %v72
  %v285 = vunpack.c.l.b16 %v73
  %v286 = vunpack.c.h.b16 %v73
  %v287 = vunpack.c.l.b16 %v74
  %v288 = vunpack.c.h.b16 %v74
  %v289 = vunpack.c.l.b16 %v75
  %v290 = vunpack.c.h.b16 %v75
  %v291 = vunpack.c.l.b16 %v76
  %v292 = vunpack.c.h.b16 %v76
  %v293 = vunpack.c.l.b16 %v77
  %v294 = vunpack.c.h.b16 %v77
  %v295 = vunpack.c.l.b16 %v78
  %v296 = vunpack.c.h.b16 %v78
  %v297 = vunpack.c.l.b16 %v79
  %v298 = vunpack.c.h.b16 %v79
  %v299 = vunpack.c.l.b16 %v80
  %v300 = vunpack.c.h.b16 %v80
  %v301 = vunpack.c.l.b16 %v81
  %v302 = vunpack.c.h.b16 %v81
  %v303 = vunpack.c.l.b16 %v82
  %v304 = vunpack.c.h.b16 %v82
  %v305 = vunpack.c.l.b16 %v83
  %v306 = vunpack.c.h.b16 %v83
  %v307 = vunpack.c.l.b16 %v84
  %v308 = vunpack.c.h.b16 %v84
  %v309 = vpack.c.b16 %v183, %v181
  %v310 = vpack.c.b16 %v184, %v182
  %v311 = vpack.c.b16 %v187, %v185
  %v312 = vpack.c.b16 %v188, %v186
  %v313 = vpack.c.b16 %v191, %v189
  %v314 = vpack.c.b16 %v192, %v190
  %v315 = vpack.c.b16 %v195, %v193
  %v316 = vpack.c.b16 %v196, %v194
  %v317 = vpack.c.b16 %v199, %v197
  %v318 = vpack.c.b16 %v200, %v198
  %v319 = vpack.c.b16 %v203, %v201
  %v320 = vpack.c.b16 %v204, %v202
  %v321 = vpack.c.b16 %v207, %v205
  %v322 = vpack.c.b16 %v208, %v206
  %v323 = vpack.c.b16 %v211, %v209
  %v324 = vpack.c.b16 %v212, %v210
  %v325 = vpack.c.b16 %v215, %v213
  %v326 = vpack.c.b16 %v216, %v214
  %v327 = vpack.c.b16 %v219, %v217
  %v328 = vpack.c.b16 %v220, %v218
  %v329 = vpack.c.b16 %v223, %v221
  %v330 = vpack.c.b16 %v224, %v222
  %v331 = vpack.c.b16 %v227, %v225
  %v332 = vpack.c.b16 %v228, %v226
  %v333 = vpack.c.b16 %v231, %v229
  %v334 = vpack.c.b16 %v232, %v230
  %v335 = vpack.c.b16 %v235, %v233
  %v336 = vpack.c.b16 %v236, %v234
  %v337 = vpack.c.b16 %v239, %v237
  %v338 = vpack.c.b16 %v240, %v238
  %v339 = vpack.c.b16 %v243, %v241
  %v340 = vpack.c.b16 %v244, %v242
  %v341 = vpack.c.b16 %v247, %v245
  %v342 = vpack.c.b16 %v248, %v246
  %v343 = vpack.c.b16 %v251, %v249
  %v344 = vpack.c.b16 %v252, %v250
  %v345 = vpack.c.b16 %v255, %v253
  %v346 = vpack.c.b16 %v256, %v254
  %v347 = vpack.c.b16 %v259, %v257
  %v348 = vpack.c.b16 %v260, %v258
  %v349 = vpack.c.b16 %v263, %v261
  %v350 = vpack.c.b16 %v264, %v262
  %v351 = vpack.c.b16 %v267, %v265
  %v352 = vpack.c.b16 %v268, %v266
  %v353 = vpack.c.b16 %v271, %v269
  %v354 = vpack.c.b16 %v272, %v270
  %v355 = vpack.c.b16 %v275, %v273
  %v356 = vpack.c.b16 %v276, %v274
  %v357 = vpack.c.b16 %v279, %v277
  %v358 = vpack.c.b16 %v280, %v278
  %v359 = vpack.c.b16 %v283, %v281
  %v360 = vpack.c.b16 %v284, %v282
  %v361 = vpack.c.b16 %v287, %v285
  %v362 = vpack.c.b16 %v288, %v286
  %v363 = vpack.c.b16 %v291, %v289
  %v364 = vpack.c.b16 %v292, %v290
  %v365 = vpack.c.b16 %v295, %v293
  %v366 = vpack.c.b16 %v296, %v294
  %v367 = vpack.c.b16 %v299, %v297
  %v368 = vpack.c.b16 %v300, %v298
  %v369 = vpack.c.b16 %v303, %v301
  %v370 = vpack.c.b16 %v304, %v302
  %v371 = vpack.c.b16 %v307, %v305
  %v372 = vpack.c.b16 %v308, %v306
  %v430 = vunpack.c.l.b16 %v85
  %v431 = vunpack.c.l.b16 %v86
  %v432 = vunpack.c.l.b16 %v87
  %v433 = vunpack.c.l.b16 %v88
  %v434 = vunpack.c.l.b16 %v89
  %v435 = vunpack.c.l.b16 %v90
  %v436 = vunpack.c.l.b16 %v91
  %v437 = vunpack.c.l.b16 %v92
  %v438 = vunpack.c.l.b16 %v93
  %v439 = vunpack.c.l.b16 %v94
  %v440 = vunpack.c.l.b16 %v95
  %v441 = vunpack.c.l.b16 %v96
  %v442 = vunpack.c.l.b16 %v97
  %v443 = vunpack.c.l.b16 %v98
  %v444 = vunpack.c.l.b16 %v99
  %v445 = vunpack.c.l.b16 %v100
  %v446 = vunpack.c.l.b16 %v101
  %v447 = vunpack.c.l.b16 %v102
  %v448 = vunpack.c.l.b16 %v103
  %v449 = vunpack.c.l.b16 %v104
  %v450 = vunpack.c.l.b16 %v105
  %v451 = vunpack.c.l.b16 %v106
  %v452 = vunpack.c.l.b16 %v107
  %v453 = vunpack.c.l.b16 %v108
  %v454 = vunpack.c.l.b16 %v109
  %v455 = vpack.c.b16 %v431, %v430
  %v456 = vpack.c.b16 %v433, %v432
  %v457 = vpack.c.b16 %v435, %v434
  %v458 = vpack.c.b16 %v437, %v436
  %v459 = vpack.c.b16 %v439, %v438
  %v460 = vpack.c.b16 %v441, %v440
  %v461 = vpack.c.b16 %v443, %v442
  %v462 = vpack.c.b16 %v445, %v444
  %v463 = vpack.c.b16 %v447, %v446
  %v464 = vpack.c.b16 %v449, %v448
  %v465 = vpack.c.b16 %v451, %v450
  %v466 = vpack.c.b16 %v453, %v452
  %v467 = vpack.c.b16 %v454, %v454
  %vm480 = vcmask 588800
  %v482 = vsel %vm480, %v310, 0
  %v485 = vsel %vm480, %v312, 0
  %v488 = vsel %vm480, %v314, 0
  %v491 = vsel %vm480, %v316, 0
  %v494 = vsel %vm480, %v318, 0
  %v497 = vsel %vm480, %v320, 0
  %v500 = vsel %vm480, %v322, 0
  %v503 = vsel %vm480, %v324, 0
  %v506 = vsel %vm480, %v326, 0
  %v509 = vsel %vm480, %v328, 0
  %v512 = vsel %vm480, %v330, 0
  %v515 = vsel %vm480, %v332, 0
  %v518 = vsel %vm480, %v334, 0
  %v521 = vsel %vm480, %v336, 0
  %v524 = vsel %vm480, %v338, 0
  %v527 = vsel %vm480, %v340, 0
  %v530 = vsel %vm480, %v342, 0
  %v533 = vsel %vm480, %v344, 0
  %v536 = vsel %vm480, %v346, 0
  %v539 = vsel %vm480, %v348, 0
  %v542 = vsel %vm480, %v350, 0
  %v545 = vsel %vm480, %v352, 0
  %v548 = vsel %vm480, %v354, 0
  %v551 = vsel %vm480, %v356, 0
  %v554 = vsel %vm480, %v358, 0
  %v557 = vsel %vm480, %v360, 0
  %v560 = vsel %vm480, %v362, 0
  %v563 = vsel %vm480, %v364, 0
  %v566 = vsel %vm480, %v366, 0
  %v569 = vsel %vm480, %v368, 0
  %v572 = vsel %vm480, %v370, 0
  %v575 = vsel %vm480, %v372, 0
  %vm577 = vcmask 1043456
  %v579 = vsel %vm577, %v467, 0
  %581 = vmatprep.subr.bf16.mxu0 0
  %582 = vmatpush1.bf16.msra.mxu0 %v455
  %583 = vmatprep.subr.bf16.mxu0 0
  %584 = vmatpush1.bf16.msra.mxu0 %v456
  %585 = vmatprep.subr.bf16.mxu0 0
  %586 = vmatpush1.bf16.msra.mxu0 %v457
  %587 = vmatprep.subr.bf16.mxu0 0
  %588 = vmatpush1.bf16.msra.mxu0 %v458
  %589 = vmatprep.subr.bf16.mxu0 0
  %590 = vmatpush1.bf16.msra.mxu0 %v459
  %591 = vmatprep.subr.bf16.mxu0 0
  %592 = vmatpush1.bf16.msra.mxu0 %v460
  %593 = vmatprep.subr.bf16.mxu0 0
  %594 = vmatpush1.bf16.msra.mxu0 %v461
  %595 = vmatprep.subr.bf16.mxu0 0
  %596 = vmatpush1.bf16.msra.mxu0 %v462
  %597 = vmatprep.subr.bf16.mxu0 0
  %598 = vmatpush1.bf16.msra.mxu0 %v463
  %599 = vmatprep.subr.bf16.mxu0 0
  %600 = vmatpush1.bf16.msra.mxu0 %v464
  %601 = vmatprep.subr.bf16.mxu0 0
  %602 = vmatpush1.bf16.msra.mxu0 %v465
  %603 = vmatprep.subr.bf16.mxu0 0
  %604 = vmatpush1.bf16.msra.mxu0 %v466
  %605 = vmatprep.subr.bf16.mxu0 0
  %606 = vmatpush1.bf16.msra.mxu0 %v579
  %607 = vmatprep.subr.bf16.mxu0 0
  %608 = vmatpush1.bf16.msra.mxu0 0
  %609 = vmatprep.subr.bf16.mxu0 0
  %610 = vmatpush1.bf16.msra.mxu0 0
  %611 = vmatprep.subr.bf16.mxu0 0
  %612 = vmatpush1.bf16.msra.mxu0 0
  %613 = vmatprep.mubr.bf16.mxu0 %v482
  %614 = vmatmul.mubr.bf16.gmra.mrb[0].mxu0 %v309
  %v615 = vpop.f32.mrb[0].mxu0
  %v616 = vadd.f32 %v115, %v615
  %v617 = vpop.f32.mrb[0].mxu0
  %v618 = vpop.f32.mrb[0].mxu0
  %v619 = vadd.f32 %v115, %v618
  %v620 = vpop.f32.mrb[0].mxu0
  %621 = vmatprep.mubr.bf16.mxu0 %v485
  %622 = vmatmul.mubr.bf16.gmra.mrb[0].mxu0 %v311
  %v623 = vpop.f32.mrb[0].mxu0
  %v624 = vadd.f32 %v115, %v623
  %v625 = vpop.f32.mrb[0].mxu0
  %v626 = vpop.f32.mrb[0].mxu0
  %v627 = vadd.f32 %v115, %v626
  %v628 = vpop.f32.mrb[0].mxu0
  %629 = vmatprep.mubr.bf16.mxu0 %v488
  %630 = vmatmul.mubr.bf16.gmra.mrb[0].mxu0 %v313
  %v631 = vpop.f32.mrb[0].mxu0
  %v632 = vadd.f32 %v115, %v631
  %v633 = vpop.f32.mrb[0].mxu0
  %v634 = vpop.f32.mrb[0].mxu0
  %v635 = vadd.f32 %v115, %v634
  %v636 = vpop.f32.mrb[0].mxu0
  %637 = vmatprep.mubr.bf16.mxu0 %v491
  %638 = vmatmul.mubr.bf16.gmra.mrb[0].mxu0 %v315
  %v639 = vpop.f32.mrb[0].mxu0
  %v640 = vadd.f32 %v115, %v639
  %v641 = vpop.f32.mrb[0].mxu0
  %v642 = vpop.f32.mrb[0].mxu0
  %v643 = vadd.f32 %v115, %v642
  %v644 = vpop.f32.mrb[0].mxu0
  %645 = vmatprep.mubr.bf16.mxu0 %v494
  %646 = vmatmul.mubr.bf16.gmra.mrb[0].mxu0 %v317
  %v647 = vpop.f32.mrb[0].mxu0
  %v648 = vadd.f32 %v115, %v647
  %v649 = vpop.f32.mrb[0].mxu0
  %v650 = vpop.f32.mrb[0].mxu0
  %v651 = vadd.f32 %v115, %v650
  %v652 = vpop.f32.mrb[0].mxu0
  %653 = vmatprep.mubr.bf16.mxu0 %v497
  %654 = vmatmul.mubr.bf16.gmra.mrb[0].mxu0 %v319
  %v655 = vpop.f32.mrb[0].mxu0
  %v656 = vadd.f32 %v115, %v655
  %v657 = vpop.f32.mrb[0].mxu0
  %v658 = vpop.f32.mrb[0].mxu0
  %v659 = vadd.f32 %v115, %v658
  %v660 = vpop.f32.mrb[0].mxu0
  %661 = vmatprep.mubr.bf16.mxu0 %v500
  %662 = vmatmul.mubr.bf16.gmra.mrb[0].mxu0 %v321
  %v663 = vpop.f32.mrb[0].mxu0
  %v664 = vadd.f32 %v115, %v663
  %v665 = vpop.f32.mrb[0].mxu0
  %v666 = vpop.f32.mrb[0].mxu0
  %v667 = vadd.f32 %v115, %v666
  %v668 = vpop.f32.mrb[0].mxu0
  %669 = vmatprep.mubr.bf16.mxu0 %v503
  %670 = vmatmul.mubr.bf16.gmra.mrb[0].mxu0 %v323
  %v671 = vpop.f32.mrb[0].mxu0
  %v672 = vadd.f32 %v115, %v671
  %v673 = vpop.f32.mrb[0].mxu0
  %v674 = vpop.f32.mrb[0].mxu0
  %v675 = vadd.f32 %v115, %v674
  %v676 = vpop.f32.mrb[0].mxu0
  %677 = vmatprep.mubr.bf16.mxu0 %v506
  %678 = vmatmul.mubr.bf16.gmra.mrb[0].mxu0 %v325
  %v679 = vpop.f32.mrb[0].mxu0
  %v680 = vadd.f32 %v115, %v679
  %v681 = vpop.f32.mrb[0].mxu0
  %v682 = vpop.f32.mrb[0].mxu0
  %v683 = vadd.f32 %v115, %v682
  %v684 = vpop.f32.mrb[0].mxu0
  %685 = vmatprep.mubr.bf16.mxu0 %v509
  %686 = vmatmul.mubr.bf16.gmra.mrb[0].mxu0 %v327
  %v687 = vpop.f32.mrb[0].mxu0
  %v688 = vadd.f32 %v115, %v687
  %v689 = vpop.f32.mrb[0].mxu0
  %v690 = vpop.f32.mrb[0].mxu0
  %v691 = vadd.f32 %v115, %v690
  %v692 = vpop.f32.mrb[0].mxu0
  %693 = vmatprep.mubr.bf16.mxu0 %v512
  %694 = vmatmul.mubr.bf16.gmra.mrb[0].mxu0 %v329
  %v695 = vpop.f32.mrb[0].mxu0
  %v696 = vadd.f32 %v115, %v695
  %v697 = vpop.f32.mrb[0].mxu0
  %v698 = vpop.f32.mrb[0].mxu0
  %v699 = vadd.f32 %v115, %v698
  %v700 = vpop.f32.mrb[0].mxu0
  %701 = vmatprep.mubr.bf16.mxu0 %v515
  %702 = vmatmul.mubr.bf16.gmra.mrb[0].mxu0 %v331
  %v703 = vpop.f32.mrb[0].mxu0
  %v704 = vadd.f32 %v115, %v703
  %v705 = vpop.f32.mrb[0].mxu0
  %v706 = vpop.f32.mrb[0].mxu0
  %v707 = vadd.f32 %v115, %v706
  %v708 = vpop.f32.mrb[0].mxu0
  %709 = vmatprep.mubr.bf16.mxu0 %v518
  %710 = vmatmul.mubr.bf16.gmra.mrb[0].mxu0 %v333
  %v711 = vpop.f32.mrb[0].mxu0
  %v712 = vadd.f32 %v115, %v711
  %v713 = vpop.f32.mrb[0].mxu0
  %v714 = vpop.f32.mrb[0].mxu0
  %v715 = vadd.f32 %v115, %v714
  %v716 = vpop.f32.mrb[0].mxu0
  %717 = vmatprep.mubr.bf16.mxu0 %v521
  %718 = vmatmul.mubr.bf16.gmra.mrb[0].mxu0 %v335
  %v719 = vpop.f32.mrb[0].mxu0
  %v720 = vadd.f32 %v115, %v719
  %v721 = vpop.f32.mrb[0].mxu0
  %v722 = vpop.f32.mrb[0].mxu0
  %v723 = vadd.f32 %v115, %v722
  %v724 = vpop.f32.mrb[0].mxu0
  %725 = vmatprep.mubr.bf16.mxu0 %v524
  %726 = vmatmul.mubr.bf16.gmra.mrb[0].mxu0 %v337
  %v727 = vpop.f32.mrb[0].mxu0
  %v728 = vadd.f32 %v115, %v727
  %v729 = vpop.f32.mrb[0].mxu0
  %v730 = vpop.f32.mrb[0].mxu0
  %v731 = vadd.f32 %v115, %v730
  %v732 = vpop.f32.mrb[0].mxu0
  %733 = vmatprep.mubr.bf16.mxu0 %v527
  %734 = vmatmul.mubr.bf16.gmra.mrb[0].mxu0 %v339
  %v735 = vpop.f32.mrb[0].mxu0
  %v736 = vadd.f32 %v115, %v735
  %v737 = vpop.f32.mrb[0].mxu0
  %v738 = vpop.f32.mrb[0].mxu0
  %v739 = vadd.f32 %v115, %v738
  %v740 = vpop.f32.mrb[0].mxu0
  %741 = vmatprep.mubr.bf16.mxu0 %v530
  %742 = vmatmul.mubr.bf16.gmra.mrb[0].mxu0 %v341
  %v743 = vpop.f32.mrb[0].mxu0
  %v744 = vadd.f32 %v115, %v743
  %v745 = vpop.f32.mrb[0].mxu0
  %v746 = vpop.f32.mrb[0].mxu0
  %v747 = vadd.f32 %v115, %v746
  %v748 = vpop.f32.mrb[0].mxu0
  %749 = vmatprep.mubr.bf16.mxu0 %v533
  %750 = vmatmul.mubr.bf16.gmra.mrb[0].mxu0 %v343
  %v751 = vpop.f32.mrb[0].mxu0
  %v752 = vadd.f32 %v115, %v751
  %v753 = vpop.f32.mrb[0].mxu0
  %v754 = vpop.f32.mrb[0].mxu0
  %v755 = vadd.f32 %v115, %v754
  %v756 = vpop.f32.mrb[0].mxu0
  %757 = vmatprep.mubr.bf16.mxu0 %v536
  %758 = vmatmul.mubr.bf16.gmra.mrb[0].mxu0 %v345
  %v759 = vpop.f32.mrb[0].mxu0
  %v760 = vadd.f32 %v115, %v759
  %v761 = vpop.f32.mrb[0].mxu0
  %v762 = vpop.f32.mrb[0].mxu0
  %v763 = vadd.f32 %v115, %v762
  %v764 = vpop.f32.mrb[0].mxu0
  %765 = vmatprep.mubr.bf16.mxu0 %v539
  %766 = vmatmul.mubr.bf16.gmra.mrb[0].mxu0 %v347
  %v767 = vpop.f32.mrb[0].mxu0
  %v768 = vadd.f32 %v115, %v767
  %v769 = vpop.f32.mrb[0].mxu0
  %v770 = vpop.f32.mrb[0].mxu0
  %v771 = vadd.f32 %v115, %v770
  %v772 = vpop.f32.mrb[0].mxu0
  %773 = vmatprep.mubr.bf16.mxu0 %v542
  %774 = vmatmul.mubr.bf16.gmra.mrb[0].mxu0 %v349
  %v775 = vpop.f32.mrb[0].mxu0
  %v776 = vadd.f32 %v115, %v775
  %v777 = vpop.f32.mrb[0].mxu0
  %v778 = vpop.f32.mrb[0].mxu0
  %v779 = vadd.f32 %v115, %v778
  %v780 = vpop.f32.mrb[0].mxu0
  %781 = vmatprep.mubr.bf16.mxu0 %v545
  %782 = vmatmul.mubr.bf16.gmra.mrb[0].mxu0 %v351
  %v783 = vpop.f32.mrb[0].mxu0
  %v784 = vadd.f32 %v115, %v783
  %v785 = vpop.f32.mrb[0].mxu0
  %v786 = vpop.f32.mrb[0].mxu0
  %v787 = vadd.f32 %v115, %v786
  %v788 = vpop.f32.mrb[0].mxu0
  %789 = vmatprep.mubr.bf16.mxu0 %v548
  %790 = vmatmul.mubr.bf16.gmra.mrb[0].mxu0 %v353
  %v791 = vpop.f32.mrb[0].mxu0
  %v792 = vadd.f32 %v115, %v791
  %v793 = vpop.f32.mrb[0].mxu0
  %v794 = vpop.f32.mrb[0].mxu0
  %v795 = vadd.f32 %v115, %v794
  %v796 = vpop.f32.mrb[0].mxu0
  %797 = vmatprep.mubr.bf16.mxu0 %v551
  %798 = vmatmul.mubr.bf16.gmra.mrb[0].mxu0 %v355
  %v799 = vpop.f32.mrb[0].mxu0
  %v800 = vadd.f32 %v115, %v799
  %v801 = vpop.f32.mrb[0].mxu0
  %v802 = vpop.f32.mrb[0].mxu0
  %v803 = vadd.f32 %v115, %v802
  %v804 = vpop.f32.mrb[0].mxu0
  %805 = vmatprep.mubr.bf16.mxu0 %v554
  %806 = vmatmul.mubr.bf16.gmra.mrb[0].mxu0 %v357
  %v807 = vpop.f32.mrb[0].mxu0
  %v808 = vadd.f32 %v115, %v807
  %v809 = vpop.f32.mrb[0].mxu0
  %v810 = vpop.f32.mrb[0].mxu0
  %v811 = vadd.f32 %v115, %v810
  %v812 = vpop.f32.mrb[0].mxu0
  %813 = vmatprep.mubr.bf16.mxu0 %v557
  %814 = vmatmul.mubr.bf16.gmra.mrb[0].mxu0 %v359
  %v815 = vpop.f32.mrb[0].mxu0
  %v816 = vadd.f32 %v115, %v815
  %v817 = vpop.f32.mrb[0].mxu0
  %v818 = vpop.f32.mrb[0].mxu0
  %v819 = vadd.f32 %v115, %v818
  %v820 = vpop.f32.mrb[0].mxu0
  %821 = vmatprep.mubr.bf16.mxu0 %v560
  %822 = vmatmul.mubr.bf16.gmra.mrb[0].mxu0 %v361
  %v823 = vpop.f32.mrb[0].mxu0
  %v824 = vadd.f32 %v115, %v823
  %v825 = vpop.f32.mrb[0].mxu0
  %v826 = vpop.f32.mrb[0].mxu0
  %v827 = vadd.f32 %v115, %v826
  %v828 = vpop.f32.mrb[0].mxu0
  %829 = vmatprep.mubr.bf16.mxu0 %v563
  %830 = vmatmul.mubr.bf16.gmra.mrb[0].mxu0 %v363
  %v831 = vpop.f32.mrb[0].mxu0
  %v832 = vadd.f32 %v115, %v831
  %v833 = vpop.f32.mrb[0].mxu0
  %v834 = vpop.f32.mrb[0].mxu0
  %v835 = vadd.f32 %v115, %v834
  %v836 = vpop.f32.mrb[0].mxu0
  %837 = vmatprep.mubr.bf16.mxu0 %v566
  %838 = vmatmul.mubr.bf16.gmra.mrb[0].mxu0 %v365
  %v839 = vpop.f32.mrb[0].mxu0
  %v840 = vadd.f32 %v115, %v839
  %v841 = vpop.f32.mrb[0].mxu0
  %v842 = vpop.f32.mrb[0].mxu0
  %v843 = vadd.f32 %v115, %v842
  %v844 = vpop.f32.mrb[0].mxu0
  %845 = vmatprep.mubr.bf16.mxu0 %v569
  %846 = vmatmul.mubr.bf16.gmra.mrb[0].mxu0 %v367
  %v847 = vpop.f32.mrb[0].mxu0
  %v848 = vadd.f32 %v115, %v847
  %v849 = vpop.f32.mrb[0].mxu0
  %v850 = vpop.f32.mrb[0].mxu0
  %v851 = vadd.f32 %v115, %v850
  %v852 = vpop.f32.mrb[0].mxu0
  %853 = vmatprep.mubr.bf16.mxu0 %v572
  %854 = vmatmul.mubr.bf16.gmra.mrb[0].mxu0 %v369
  %v855 = vpop.f32.mrb[0].mxu0
  %v856 = vadd.f32 %v115, %v855
  %v857 = vpop.f32.mrb[0].mxu0
  %v858 = vpop.f32.mrb[0].mxu0
  %v859 = vadd.f32 %v115, %v858
  %v860 = vpop.f32.mrb[0].mxu0
  %861 = vmatprep.mubr.bf16.mxu0 %v575
  %862 = vmatmul.mubr.bf16.gmra.mrb[0].mxu0 %v371
  %v863 = vpop.f32.mrb[0].mxu0
  %v864 = vadd.f32 %v115, %v863
  %v865 = vpop.f32.mrb[0].mxu0
  %v866 = vpop.f32.mrb[0].mxu0
  %v867 = vadd.f32 %v115, %v866
  %v868 = vpop.f32.mrb[0].mxu0
  %869 = vdwg.mxu0
  %v870 = vadd.f32 %v616, %v619
  %v871 = vadd.f32 %v870, %v624
  %v872 = vadd.f32 %v871, %v627
  %v873 = vadd.f32 %v872, %v632
  %v874 = vadd.f32 %v873, %v635
  %v875 = vadd.f32 %v874, %v640
  %v876 = vadd.f32 %v875, %v643
  %v877 = vadd.f32 %v876, %v648
  %v878 = vadd.f32 %v877, %v651
  %v879 = vadd.f32 %v878, %v656
  %v880 = vadd.f32 %v879, %v659
  %v881 = vadd.f32 %v880, %v664
  %v882 = vadd.f32 %v881, %v667
  %v883 = vadd.f32 %v882, %v672
  %v884 = vadd.f32 %v883, %v675
  %v885 = vadd.f32 %v884, %v680
  %v886 = vadd.f32 %v885, %v683
  %v887 = vadd.f32 %v886, %v688
  %v888 = vadd.f32 %v887, %v691
  %v889 = vadd.f32 %v888, %v696
  %v890 = vadd.f32 %v889, %v699
  %v891 = vadd.f32 %v890, %v704
  %v892 = vadd.f32 %v891, %v707
  %v893 = vadd.f32 %v892, %v712
  %v894 = vadd.f32 %v893, %v715
  %v895 = vadd.f32 %v894, %v720
  %v896 = vadd.f32 %v895, %v723
  %v897 = vadd.f32 %v896, %v728
  %v898 = vadd.f32 %v897, %v731
  %v899 = vadd.f32 %v898, %v736
  %v900 = vadd.f32 %v899, %v739
  %v901 = vadd.f32 %v900, %v744
  %v902 = vadd.f32 %v901, %v747
  %v903 = vadd.f32 %v902, %v752
  %v904 = vadd.f32 %v903, %v755
  %v905 = vadd.f32 %v904, %v760
  %v906 = vadd.f32 %v905, %v763
  %v907 = vadd.f32 %v906, %v768
  %v908 = vadd.f32 %v907, %v771
  %v909 = vadd.f32 %v908, %v776
  %v910 = vadd.f32 %v909, %v779
  %v911 = vadd.f32 %v910, %v784
  %v912 = vadd.f32 %v911, %v787
  %v913 = vadd.f32 %v912, %v792
  %v914 = vadd.f32 %v913, %v795
  %v915 = vadd.f32 %v914, %v800
  %v916 = vadd.f32 %v915, %v803
  %v917 = vadd.f32 %v916, %v808
  %v918 = vadd.f32 %v917, %v811
  %v919 = vadd.f32 %v918, %v816
  %v920 = vadd.f32 %v919, %v819
  %v921 = vadd.f32 %v920, %v824
  %v922 = vadd.f32 %v921, %v827
  %v923 = vadd.f32 %v922, %v832
  %v924 = vadd.f32 %v923, %v835
  %v925 = vadd.f32 %v924, %v840
  %v926 = vadd.f32 %v925, %v843
  %v927 = vadd.f32 %v926, %v848
  %v928 = vadd.f32 %v927, %v851
  %v929 = vadd.f32 %v928, %v856
  %v930 = vadd.f32 %v929, %v859
  %v931 = vadd.f32 %v930, %v864
  %v932 = vadd.f32 %v931, %v867
  %v933 = vrot.slane %v932, 4
  %v934 = vadd.f32 %v932, %v933
  %v935 = vrot.slane %v934, 2
  %v936 = vadd.f32 %v934, %v935
  %v937 = vrot.slane %v936, 1
  %v938 = vadd.f32 %v936, %v937
  %v939 = vrcp.pop 512.0
  %v940 = vmul.f32 %v938, %v939
  %v941 = vmul.f32 %v616, %v616
  %v942 = vmul.f32 %v619, %v619
  %v943 = vmul.f32 %v624, %v624
  %v944 = vmul.f32 %v627, %v627
  %v945 = vmul.f32 %v632, %v632
  %v946 = vmul.f32 %v635, %v635
  %v947 = vmul.f32 %v640, %v640
  %v948 = vmul.f32 %v643, %v643
  %v949 = vmul.f32 %v648, %v648
  %v950 = vmul.f32 %v651, %v651
  %v951 = vmul.f32 %v656, %v656
  %v952 = vmul.f32 %v659, %v659
  %v953 = vmul.f32 %v664, %v664
  %v954 = vmul.f32 %v667, %v667
  %v955 = vmul.f32 %v672, %v672
  %v956 = vmul.f32 %v675, %v675
  %v957 = vmul.f32 %v680, %v680
  %v958 = vmul.f32 %v683, %v683
  %v959 = vmul.f32 %v688, %v688
  %v960 = vmul.f32 %v691, %v691
  %v961 = vmul.f32 %v696, %v696
  %v962 = vmul.f32 %v699, %v699
  %v963 = vmul.f32 %v704, %v704
  %v964 = vmul.f32 %v707, %v707
  %v965 = vmul.f32 %v712, %v712
  %v966 = vmul.f32 %v715, %v715
  %v967 = vmul.f32 %v720, %v720
  %v968 = vmul.f32 %v723, %v723
  %v969 = vmul.f32 %v728, %v728
  %v970 = vmul.f32 %v731, %v731
  %v971 = vmul.f32 %v736, %v736
  %v972 = vmul.f32 %v739, %v739
  %v973 = vmul.f32 %v744, %v744
  %v974 = vmul.f32 %v747, %v747
  %v975 = vmul.f32 %v752, %v752
  %v976 = vmul.f32 %v755, %v755
  %v977 = vmul.f32 %v760, %v760
  %v978 = vmul.f32 %v763, %v763
  %v979 = vmul.f32 %v768, %v768
  %v980 = vmul.f32 %v771, %v771
  %v981 = vmul.f32 %v776, %v776
  %v982 = vmul.f32 %v779, %v779
  %v983 = vmul.f32 %v784, %v784
  %v984 = vmul.f32 %v787, %v787
  %v985 = vmul.f32 %v792, %v792
  %v986 = vmul.f32 %v795, %v795
  %v987 = vmul.f32 %v800, %v800
  %v988 = vmul.f32 %v803, %v803
  %v989 = vmul.f32 %v808, %v808
  %v990 = vmul.f32 %v811, %v811
  %v991 = vmul.f32 %v816, %v816
  %v992 = vmul.f32 %v819, %v819
  %v993 = vmul.f32 %v824, %v824
  %v994 = vmul.f32 %v827, %v827
  %v995 = vmul.f32 %v832, %v832
  %v996 = vmul.f32 %v835, %v835
  %v997 = vmul.f32 %v840, %v840
  %v998 = vmul.f32 %v843, %v843
  %v999 = vmul.f32 %v848, %v848
  %v1000 = vmul.f32 %v851, %v851
  %v1001 = vmul.f32 %v856, %v856
  %v1002 = vmul.f32 %v859, %v859
  %v1003 = vmul.f32 %v864, %v864
  %v1004 = vmul.f32 %v867, %v867
  %v1005 = vadd.f32 %v941, %v942
  %v1006 = vadd.f32 %v1005, %v943
  %v1007 = vadd.f32 %v1006, %v944
  %v1008 = vadd.f32 %v1007, %v945
  %v1009 = vadd.f32 %v1008, %v946
  %v1010 = vadd.f32 %v1009, %v947
  %v1011 = vadd.f32 %v1010, %v948
  %v1012 = vadd.f32 %v1011, %v949
  %v1013 = vadd.f32 %v1012, %v950
  %v1014 = vadd.f32 %v1013, %v951
  %v1015 = vadd.f32 %v1014, %v952
  %v1016 = vadd.f32 %v1015, %v953
  %v1017 = vadd.f32 %v1016, %v954
  %v1018 = vadd.f32 %v1017, %v955
  %v1019 = vadd.f32 %v1018, %v956
  %v1020 = vadd.f32 %v1019, %v957
  %v1021 = vadd.f32 %v1020, %v958
  %v1022 = vadd.f32 %v1021, %v959
  %v1023 = vadd.f32 %v1022, %v960
  %v1024 = vadd.f32 %v1023, %v961
  %v1025 = vadd.f32 %v1024, %v962
  %v1026 = vadd.f32 %v1025, %v963
  %v1027 = vadd.f32 %v1026, %v964
  %v1028 = vadd.f32 %v1027, %v965
  %v1029 = vadd.f32 %v1028, %v966
  %v1030 = vadd.f32 %v1029, %v967
  %v1031 = vadd.f32 %v1030, %v968
  %v1032 = vadd.f32 %v1031, %v969
  %v1033 = vadd.f32 %v1032, %v970
  %v1034 = vadd.f32 %v1033, %v971
  %v1035 = vadd.f32 %v1034, %v972
  %v1036 = vadd.f32 %v1035, %v973
  %v1037 = vadd.f32 %v1036, %v974
  %v1038 = vadd.f32 %v1037, %v975
  %v1039 = vadd.f32 %v1038, %v976
  %v1040 = vadd.f32 %v1039, %v977
  %v1041 = vadd.f32 %v1040, %v978
  %v1042 = vadd.f32 %v1041, %v979
  %v1043 = vadd.f32 %v1042, %v980
  %v1044 = vadd.f32 %v1043, %v981
  %v1045 = vadd.f32 %v1044, %v982
  %v1046 = vadd.f32 %v1045, %v983
  %v1047 = vadd.f32 %v1046, %v984
  %v1048 = vadd.f32 %v1047, %v985
  %v1049 = vadd.f32 %v1048, %v986
  %v1050 = vadd.f32 %v1049, %v987
  %v1051 = vadd.f32 %v1050, %v988
  %v1052 = vadd.f32 %v1051, %v989
  %v1053 = vadd.f32 %v1052, %v990
  %v1054 = vadd.f32 %v1053, %v991
  %v1055 = vadd.f32 %v1054, %v992
  %v1056 = vadd.f32 %v1055, %v993
  %v1057 = vadd.f32 %v1056, %v994
  %v1058 = vadd.f32 %v1057, %v995
  %v1059 = vadd.f32 %v1058, %v996
  %v1060 = vadd.f32 %v1059, %v997
  %v1061 = vadd.f32 %v1060, %v998
  %v1062 = vadd.f32 %v1061, %v999
  %v1063 = vadd.f32 %v1062, %v1000
  %v1064 = vadd.f32 %v1063, %v1001
  %v1065 = vadd.f32 %v1064, %v1002
  %v1066 = vadd.f32 %v1065, %v1003
  %v1067 = vadd.f32 %v1066, %v1004
  %v1068 = vrot.slane %v1067, 4
  %v1069 = vadd.f32 %v1067, %v1068
  %v1070 = vrot.slane %v1069, 2
  %v1071 = vadd.f32 %v1069, %v1070
  %v1072 = vrot.slane %v1071, 1
  %v1073 = vadd.f32 %v1071, %v1072
  %v1074 = vmul.f32 %v1073, %v939
  %v1075 = vmul.f32 %v940, %v940
  %v1076 = vsub.f32 %v1074, %v1075
  %v1077 = vmax.f32 %v1076, 0.0
  %v1078 = vsub.f32 %v616, %v940
  %v1079 = vsub.f32 %v619, %v940
  %v1080 = vsub.f32 %v624, %v940
  %v1081 = vsub.f32 %v627, %v940
  %v1082 = vsub.f32 %v632, %v940
  %v1083 = vsub.f32 %v635, %v940
  %v1084 = vsub.f32 %v640, %v940
  %v1085 = vsub.f32 %v643, %v940
  %v1086 = vsub.f32 %v648, %v940
  %v1087 = vsub.f32 %v651, %v940
  %v1088 = vsub.f32 %v656, %v940
  %v1089 = vsub.f32 %v659, %v940
  %v1090 = vsub.f32 %v664, %v940
  %v1091 = vsub.f32 %v667, %v940
  %v1092 = vsub.f32 %v672, %v940
  %v1093 = vsub.f32 %v675, %v940
  %v1094 = vsub.f32 %v680, %v940
  %v1095 = vsub.f32 %v683, %v940
  %v1096 = vsub.f32 %v688, %v940
  %v1097 = vsub.f32 %v691, %v940
  %v1098 = vsub.f32 %v696, %v940
  %v1099 = vsub.f32 %v699, %v940
  %v1100 = vsub.f32 %v704, %v940
  %v1101 = vsub.f32 %v707, %v940
  %v1102 = vsub.f32 %v712, %v940
  %v1103 = vsub.f32 %v715, %v940
  %v1104 = vsub.f32 %v720, %v940
  %v1105 = vsub.f32 %v723, %v940
  %v1106 = vsub.f32 %v728, %v940
  %v1107 = vsub.f32 %v731, %v940
  %v1108 = vsub.f32 %v736, %v940
  %v1109 = vsub.f32 %v739, %v940
  %v1110 = vsub.f32 %v744, %v940
  %v1111 = vsub.f32 %v747, %v940
  %v1112 = vsub.f32 %v752, %v940
  %v1113 = vsub.f32 %v755, %v940
  %v1114 = vsub.f32 %v760, %v940
  %v1115 = vsub.f32 %v763, %v940
  %v1116 = vsub.f32 %v768, %v940
  %v1117 = vsub.f32 %v771, %v940
  %v1118 = vsub.f32 %v776, %v940
  %v1119 = vsub.f32 %v779, %v940
  %v1120 = vsub.f32 %v784, %v940
  %v1121 = vsub.f32 %v787, %v940
  %v1122 = vsub.f32 %v792, %v940
  %v1123 = vsub.f32 %v795, %v940
  %v1124 = vsub.f32 %v800, %v940
  %v1125 = vsub.f32 %v803, %v940
  %v1126 = vsub.f32 %v808, %v940
  %v1127 = vsub.f32 %v811, %v940
  %v1128 = vsub.f32 %v816, %v940
  %v1129 = vsub.f32 %v819, %v940
  %v1130 = vsub.f32 %v824, %v940
  %v1131 = vsub.f32 %v827, %v940
  %v1132 = vsub.f32 %v832, %v940
  %v1133 = vsub.f32 %v835, %v940
  %v1134 = vsub.f32 %v840, %v940
  %v1135 = vsub.f32 %v843, %v940
  %v1136 = vsub.f32 %v848, %v940
  %v1137 = vsub.f32 %v851, %v940
  %v1138 = vsub.f32 %v856, %v940
  %v1139 = vsub.f32 %v859, %v940
  %v1140 = vsub.f32 %v864, %v940
  %v1141 = vsub.f32 %v867, %v940
  %v1142 = vadd.f32 %v1077, 1e-05
  %v1143 = vrsqrt.pop %v1142
  %v1144 = vmul.f32 %v1078, %v1143
  %v1145 = vmul.f32 %v1079, %v1143
  %v1146 = vmul.f32 %v1080, %v1143
  %v1147 = vmul.f32 %v1081, %v1143
  %v1148 = vmul.f32 %v1082, %v1143
  %v1149 = vmul.f32 %v1083, %v1143
  %v1150 = vmul.f32 %v1084, %v1143
  %v1151 = vmul.f32 %v1085, %v1143
  %v1152 = vmul.f32 %v1086, %v1143
  %v1153 = vmul.f32 %v1087, %v1143
  %v1154 = vmul.f32 %v1088, %v1143
  %v1155 = vmul.f32 %v1089, %v1143
  %v1156 = vmul.f32 %v1090, %v1143
  %v1157 = vmul.f32 %v1091, %v1143
  %v1158 = vmul.f32 %v1092, %v1143
  %v1159 = vmul.f32 %v1093, %v1143
  %v1160 = vmul.f32 %v1094, %v1143
  %v1161 = vmul.f32 %v1095, %v1143
  %v1162 = vmul.f32 %v1096, %v1143
  %v1163 = vmul.f32 %v1097, %v1143
  %v1164 = vmul.f32 %v1098, %v1143
  %v1165 = vmul.f32 %v1099, %v1143
  %v1166 = vmul.f32 %v1100, %v1143
  %v1167 = vmul.f32 %v1101, %v1143
  %v1168 = vmul.f32 %v1102, %v1143
  %v1169 = vmul.f32 %v1103, %v1143
  %v1170 = vmul.f32 %v1104, %v1143
  %v1171 = vmul.f32 %v1105, %v1143
  %v1172 = vmul.f32 %v1106, %v1143
  %v1173 = vmul.f32 %v1107, %v1143
  %v1174 = vmul.f32 %v1108, %v1143
  %v1175 = vmul.f32 %v1109, %v1143
  %v1176 = vmul.f32 %v1110, %v1143
  %v1177 = vmul.f32 %v1111, %v1143
  %v1178 = vmul.f32 %v1112, %v1143
  %v1179 = vmul.f32 %v1113, %v1143
  %v1180 = vmul.f32 %v1114, %v1143
  %v1181 = vmul.f32 %v1115, %v1143
  %v1182 = vmul.f32 %v1116, %v1143
  %v1183 = vmul.f32 %v1117, %v1143
  %v1184 = vmul.f32 %v1118, %v1143
  %v1185 = vmul.f32 %v1119, %v1143
  %v1186 = vmul.f32 %v1120, %v1143
  %v1187 = vmul.f32 %v1121, %v1143
  %v1188 = vmul.f32 %v1122, %v1143
  %v1189 = vmul.f32 %v1123, %v1143
  %v1190 = vmul.f32 %v1124, %v1143
  %v1191 = vmul.f32 %v1125, %v1143
  %v1192 = vmul.f32 %v1126, %v1143
  %v1193 = vmul.f32 %v1127, %v1143
  %v1194 = vmul.f32 %v1128, %v1143
  %v1195 = vmul.f32 %v1129, %v1143
  %v1196 = vmul.f32 %v1130, %v1143
  %v1197 = vmul.f32 %v1131, %v1143
  %v1198 = vmul.f32 %v1132, %v1143
  %v1199 = vmul.f32 %v1133, %v1143
  %v1200 = vmul.f32 %v1134, %v1143
  %v1201 = vmul.f32 %v1135, %v1143
  %v1202 = vmul.f32 %v1136, %v1143
  %v1203 = vmul.f32 %v1137, %v1143
  %v1204 = vmul.f32 %v1138, %v1143
  %v1205 = vmul.f32 %v1139, %v1143
  %v1206 = vmul.f32 %v1140, %v1143
  %v1207 = vmul.f32 %v1141, %v1143
  %v1208 = vld [vmem:[%s3] sm:$0x1]
  %v1210 = vlaneseq
  %v1211 = vshrl.u32 %v1210, 7
  %v1212 = vsub.s32 0, %v1211
  %v1213 = vrot.slane %v1208, %v1212
  %v1215 = vmul.f32 %v1144, %v1213
  %v1216 = vmul.f32 %v1145, %v1213
  %v1217 = vmul.f32 %v1146, %v1213
  %v1218 = vmul.f32 %v1147, %v1213
  %v1219 = vmul.f32 %v1148, %v1213
  %v1220 = vmul.f32 %v1149, %v1213
  %v1221 = vmul.f32 %v1150, %v1213
  %v1222 = vmul.f32 %v1151, %v1213
  %v1223 = vmul.f32 %v1152, %v1213
  %v1224 = vmul.f32 %v1153, %v1213
  %v1225 = vmul.f32 %v1154, %v1213
  %v1226 = vmul.f32 %v1155, %v1213
  %v1227 = vmul.f32 %v1156, %v1213
  %v1228 = vmul.f32 %v1157, %v1213
  %v1229 = vmul.f32 %v1158, %v1213
  %v1230 = vmul.f32 %v1159, %v1213
  %v1231 = vmul.f32 %v1160, %v1213
  %v1232 = vmul.f32 %v1161, %v1213
  %v1233 = vmul.f32 %v1162, %v1213
  %v1234 = vmul.f32 %v1163, %v1213
  %v1235 = vmul.f32 %v1164, %v1213
  %v1236 = vmul.f32 %v1165, %v1213
  %v1237 = vmul.f32 %v1166, %v1213
  %v1238 = vmul.f32 %v1167, %v1213
  %v1239 = vmul.f32 %v1168, %v1213
  %v1240 = vmul.f32 %v1169, %v1213
  %v1241 = vmul.f32 %v1170, %v1213
  %v1242 = vmul.f32 %v1171, %v1213
  %v1243 = vmul.f32 %v1172, %v1213
  %v1244 = vmul.f32 %v1173, %v1213
  %v1245 = vmul.f32 %v1174, %v1213
  %v1246 = vmul.f32 %v1175, %v1213
  %v1247 = vmul.f32 %v1176, %v1213
  %v1248 = vmul.f32 %v1177, %v1213
  %v1249 = vmul.f32 %v1178, %v1213
  %v1250 = vmul.f32 %v1179, %v1213
  %v1251 = vmul.f32 %v1180, %v1213
  %v1252 = vmul.f32 %v1181, %v1213
  %v1253 = vmul.f32 %v1182, %v1213
  %v1254 = vmul.f32 %v1183, %v1213
  %v1255 = vmul.f32 %v1184, %v1213
  %v1256 = vmul.f32 %v1185, %v1213
  %v1257 = vmul.f32 %v1186, %v1213
  %v1258 = vmul.f32 %v1187, %v1213
  %v1259 = vmul.f32 %v1188, %v1213
  %v1260 = vmul.f32 %v1189, %v1213
  %v1261 = vmul.f32 %v1190, %v1213
  %v1262 = vmul.f32 %v1191, %v1213
  %v1263 = vmul.f32 %v1192, %v1213
  %v1264 = vmul.f32 %v1193, %v1213
  %v1265 = vmul.f32 %v1194, %v1213
  %v1266 = vmul.f32 %v1195, %v1213
  %v1267 = vmul.f32 %v1196, %v1213
  %v1268 = vmul.f32 %v1197, %v1213
  %v1269 = vmul.f32 %v1198, %v1213
  %v1270 = vmul.f32 %v1199, %v1213
  %v1271 = vmul.f32 %v1200, %v1213
  %v1272 = vmul.f32 %v1201, %v1213
  %v1273 = vmul.f32 %v1202, %v1213
  %v1274 = vmul.f32 %v1203, %v1213
  %v1275 = vmul.f32 %v1204, %v1213
  %v1276 = vmul.f32 %v1205, %v1213
  %v1277 = vmul.f32 %v1206, %v1213
  %v1278 = vmul.f32 %v1207, %v1213
  %v1279 = vld [vmem:[%s4] sm:$0x1]
  %v1281 = vlaneseq
  %v1282 = vshrl.u32 %v1281, 7
  %v1283 = vsub.s32 0, %v1282
  %v1284 = vrot.slane %v1279, %v1283
  %v1286 = vadd.f32 %v1215, %v1284
  %v1287 = vadd.f32 %v1216, %v1284
  %v1288 = vadd.f32 %v1217, %v1284
  %v1289 = vadd.f32 %v1218, %v1284
  %v1290 = vadd.f32 %v1219, %v1284
  %v1291 = vadd.f32 %v1220, %v1284
  %v1292 = vadd.f32 %v1221, %v1284
  %v1293 = vadd.f32 %v1222, %v1284
  %v1294 = vadd.f32 %v1223, %v1284
  %v1295 = vadd.f32 %v1224, %v1284
  %v1296 = vadd.f32 %v1225, %v1284
  %v1297 = vadd.f32 %v1226, %v1284
  %v1298 = vadd.f32 %v1227, %v1284
  %v1299 = vadd.f32 %v1228, %v1284
  %v1300 = vadd.f32 %v1229, %v1284
  %v1301 = vadd.f32 %v1230, %v1284
  %v1302 = vadd.f32 %v1231, %v1284
  %v1303 = vadd.f32 %v1232, %v1284
  %v1304 = vadd.f32 %v1233, %v1284
  %v1305 = vadd.f32 %v1234, %v1284
  %v1306 = vadd.f32 %v1235, %v1284
  %v1307 = vadd.f32 %v1236, %v1284
  %v1308 = vadd.f32 %v1237, %v1284
  %v1309 = vadd.f32 %v1238, %v1284
  %v1310 = vadd.f32 %v1239, %v1284
  %v1311 = vadd.f32 %v1240, %v1284
  %v1312 = vadd.f32 %v1241, %v1284
  %v1313 = vadd.f32 %v1242, %v1284
  %v1314 = vadd.f32 %v1243, %v1284
  %v1315 = vadd.f32 %v1244, %v1284
  %v1316 = vadd.f32 %v1245, %v1284
  %v1317 = vadd.f32 %v1246, %v1284
  %v1318 = vadd.f32 %v1247, %v1284
  %v1319 = vadd.f32 %v1248, %v1284
  %v1320 = vadd.f32 %v1249, %v1284
  %v1321 = vadd.f32 %v1250, %v1284
  %v1322 = vadd.f32 %v1251, %v1284
  %v1323 = vadd.f32 %v1252, %v1284
  %v1324 = vadd.f32 %v1253, %v1284
  %v1325 = vadd.f32 %v1254, %v1284
  %v1326 = vadd.f32 %v1255, %v1284
  %v1327 = vadd.f32 %v1256, %v1284
  %v1328 = vadd.f32 %v1257, %v1284
  %v1329 = vadd.f32 %v1258, %v1284
  %v1330 = vadd.f32 %v1259, %v1284
  %v1331 = vadd.f32 %v1260, %v1284
  %v1332 = vadd.f32 %v1261, %v1284
  %v1333 = vadd.f32 %v1262, %v1284
  %v1334 = vadd.f32 %v1263, %v1284
  %v1335 = vadd.f32 %v1264, %v1284
  %v1336 = vadd.f32 %v1265, %v1284
  %v1337 = vadd.f32 %v1266, %v1284
  %v1338 = vadd.f32 %v1267, %v1284
  %v1339 = vadd.f32 %v1268, %v1284
  %v1340 = vadd.f32 %v1269, %v1284
  %v1341 = vadd.f32 %v1270, %v1284
  %v1342 = vadd.f32 %v1271, %v1284
  %v1343 = vadd.f32 %v1272, %v1284
  %v1344 = vadd.f32 %v1273, %v1284
  %v1345 = vadd.f32 %v1274, %v1284
  %v1346 = vadd.f32 %v1275, %v1284
  %v1347 = vadd.f32 %v1276, %v1284
  %v1348 = vadd.f32 %v1277, %v1284
  %v1349 = vadd.f32 %v1278, %v1284
  %v1350 = vmul.f32 %v1286, 0.5
  %v1351 = vmul.f32 %v1287, 0.5
  %v1352 = vmul.f32 %v1288, 0.5
  %v1353 = vmul.f32 %v1289, 0.5
  %v1354 = vmul.f32 %v1290, 0.5
  %v1355 = vmul.f32 %v1291, 0.5
  %v1356 = vmul.f32 %v1292, 0.5
  %v1357 = vmul.f32 %v1293, 0.5
  %v1358 = vmul.f32 %v1294, 0.5
  %v1359 = vmul.f32 %v1295, 0.5
  %v1360 = vmul.f32 %v1296, 0.5
  %v1361 = vmul.f32 %v1297, 0.5
  %v1362 = vmul.f32 %v1298, 0.5
  %v1363 = vmul.f32 %v1299, 0.5
  %v1364 = vmul.f32 %v1300, 0.5
  %v1365 = vmul.f32 %v1301, 0.5
  %v1366 = vmul.f32 %v1302, 0.5
  %v1367 = vmul.f32 %v1303, 0.5
  %v1368 = vmul.f32 %v1304, 0.5
  %v1369 = vmul.f32 %v1305, 0.5
  %v1370 = vmul.f32 %v1306, 0.5
  %v1371 = vmul.f32 %v1307, 0.5
  %v1372 = vmul.f32 %v1308, 0.5
  %v1373 = vmul.f32 %v1309, 0.5
  %v1374 = vmul.f32 %v1310, 0.5
  %v1375 = vmul.f32 %v1311, 0.5
  %v1376 = vmul.f32 %v1312, 0.5
  %v1377 = vmul.f32 %v1313, 0.5
  %v1378 = vmul.f32 %v1314, 0.5
  %v1379 = vmul.f32 %v1315, 0.5
  %v1380 = vmul.f32 %v1316, 0.5
  %v1381 = vmul.f32 %v1317, 0.5
  %v1382 = vmul.f32 %v1318, 0.5
  %v1383 = vmul.f32 %v1319, 0.5
  %v1384 = vmul.f32 %v1320, 0.5
  %v1385 = vmul.f32 %v1321, 0.5
  %v1386 = vmul.f32 %v1322, 0.5
  %v1387 = vmul.f32 %v1323, 0.5
  %v1388 = vmul.f32 %v1324, 0.5
  %v1389 = vmul.f32 %v1325, 0.5
  %v1390 = vmul.f32 %v1326, 0.5
  %v1391 = vmul.f32 %v1327, 0.5
  %v1392 = vmul.f32 %v1328, 0.5
  %v1393 = vmul.f32 %v1329, 0.5
  %v1394 = vmul.f32 %v1330, 0.5
  %v1395 = vmul.f32 %v1331, 0.5
  %v1396 = vmul.f32 %v1332, 0.5
  %v1397 = vmul.f32 %v1333, 0.5
  %v1398 = vmul.f32 %v1334, 0.5
  %v1399 = vmul.f32 %v1335, 0.5
  %v1400 = vmul.f32 %v1336, 0.5
  %v1401 = vmul.f32 %v1337, 0.5
  %v1402 = vmul.f32 %v1338, 0.5
  %v1403 = vmul.f32 %v1339, 0.5
  %v1404 = vmul.f32 %v1340, 0.5
  %v1405 = vmul.f32 %v1341, 0.5
  %v1406 = vmul.f32 %v1342, 0.5
  %v1407 = vmul.f32 %v1343, 0.5
  %v1408 = vmul.f32 %v1344, 0.5
  %v1409 = vmul.f32 %v1345, 0.5
  %v1410 = vmul.f32 %v1346, 0.5
  %v1411 = vmul.f32 %v1347, 0.5
  %v1412 = vmul.f32 %v1348, 0.5
  %v1413 = vmul.f32 %v1349, 0.5
  %v1414 = vtanh.pop %v1350
  %v1415 = vtanh.pop %v1351
  %v1416 = vtanh.pop %v1352
  %v1417 = vtanh.pop %v1353
  %v1418 = vtanh.pop %v1354
  %v1419 = vtanh.pop %v1355
  %v1420 = vtanh.pop %v1356
  %v1421 = vtanh.pop %v1357
  %v1422 = vtanh.pop %v1358
  %v1423 = vtanh.pop %v1359
  %v1424 = vtanh.pop %v1360
  %v1425 = vtanh.pop %v1361
  %v1426 = vtanh.pop %v1362
  %v1427 = vtanh.pop %v1363
  %v1428 = vtanh.pop %v1364
  %v1429 = vtanh.pop %v1365
  %v1430 = vtanh.pop %v1366
  %v1431 = vtanh.pop %v1367
  %v1432 = vtanh.pop %v1368
  %v1433 = vtanh.pop %v1369
  %v1434 = vtanh.pop %v1370
  %v1435 = vtanh.pop %v1371
  %v1436 = vtanh.pop %v1372
  %v1437 = vtanh.pop %v1373
  %v1438 = vtanh.pop %v1374
  %v1439 = vtanh.pop %v1375
  %v1440 = vtanh.pop %v1376
  %v1441 = vtanh.pop %v1377
  %v1442 = vtanh.pop %v1378
  %v1443 = vtanh.pop %v1379
  %v1444 = vtanh.pop %v1380
  %v1445 = vtanh.pop %v1381
  %v1446 = vtanh.pop %v1382
  %v1447 = vtanh.pop %v1383
  %v1448 = vtanh.pop %v1384
  %v1449 = vtanh.pop %v1385
  %v1450 = vtanh.pop %v1386
  %v1451 = vtanh.pop %v1387
  %v1452 = vtanh.pop %v1388
  %v1453 = vtanh.pop %v1389
  %v1454 = vtanh.pop %v1390
  %v1455 = vtanh.pop %v1391
  %v1456 = vtanh.pop %v1392
  %v1457 = vtanh.pop %v1393
  %v1458 = vtanh.pop %v1394
  %v1459 = vtanh.pop %v1395
  %v1460 = vtanh.pop %v1396
  %v1461 = vtanh.pop %v1397
  %v1462 = vtanh.pop %v1398
  %v1463 = vtanh.pop %v1399
  %v1464 = vtanh.pop %v1400
  %v1465 = vtanh.pop %v1401
  %v1466 = vtanh.pop %v1402
  %v1467 = vtanh.pop %v1403
  %v1468 = vtanh.pop %v1404
  %v1469 = vtanh.pop %v1405
  %v1470 = vtanh.pop %v1406
  %v1471 = vtanh.pop %v1407
  %v1472 = vtanh.pop %v1408
  %v1473 = vtanh.pop %v1409
  %v1474 = vtanh.pop %v1410
  %v1475 = vtanh.pop %v1411
  %v1476 = vtanh.pop %v1412
  %v1477 = vtanh.pop %v1413
  %v1478 = vadd.f32 %v1414, 1.0
  %v1479 = vadd.f32 %v1415, 1.0
  %v1480 = vadd.f32 %v1416, 1.0
  %v1481 = vadd.f32 %v1417, 1.0
  %v1482 = vadd.f32 %v1418, 1.0
  %v1483 = vadd.f32 %v1419, 1.0
  %v1484 = vadd.f32 %v1420, 1.0
  %v1485 = vadd.f32 %v1421, 1.0
  %v1486 = vadd.f32 %v1422, 1.0
  %v1487 = vadd.f32 %v1423, 1.0
  %v1488 = vadd.f32 %v1424, 1.0
  %v1489 = vadd.f32 %v1425, 1.0
  %v1490 = vadd.f32 %v1426, 1.0
  %v1491 = vadd.f32 %v1427, 1.0
  %v1492 = vadd.f32 %v1428, 1.0
  %v1493 = vadd.f32 %v1429, 1.0
  %v1494 = vadd.f32 %v1430, 1.0
  %v1495 = vadd.f32 %v1431, 1.0
  %v1496 = vadd.f32 %v1432, 1.0
  %v1497 = vadd.f32 %v1433, 1.0
  %v1498 = vadd.f32 %v1434, 1.0
  %v1499 = vadd.f32 %v1435, 1.0
  %v1500 = vadd.f32 %v1436, 1.0
  %v1501 = vadd.f32 %v1437, 1.0
  %v1502 = vadd.f32 %v1438, 1.0
  %v1503 = vadd.f32 %v1439, 1.0
  %v1504 = vadd.f32 %v1440, 1.0
  %v1505 = vadd.f32 %v1441, 1.0
  %v1506 = vadd.f32 %v1442, 1.0
  %v1507 = vadd.f32 %v1443, 1.0
  %v1508 = vadd.f32 %v1444, 1.0
  %v1509 = vadd.f32 %v1445, 1.0
  %v1510 = vadd.f32 %v1446, 1.0
  %v1511 = vadd.f32 %v1447, 1.0
  %v1512 = vadd.f32 %v1448, 1.0
  %v1513 = vadd.f32 %v1449, 1.0
  %v1514 = vadd.f32 %v1450, 1.0
  %v1515 = vadd.f32 %v1451, 1.0
  %v1516 = vadd.f32 %v1452, 1.0
  %v1517 = vadd.f32 %v1453, 1.0
  %v1518 = vadd.f32 %v1454, 1.0
  %v1519 = vadd.f32 %v1455, 1.0
  %v1520 = vadd.f32 %v1456, 1.0
  %v1521 = vadd.f32 %v1457, 1.0
  %v1522 = vadd.f32 %v1458, 1.0
  %v1523 = vadd.f32 %v1459, 1.0
  %v1524 = vadd.f32 %v1460, 1.0
  %v1525 = vadd.f32 %v1461, 1.0
  %v1526 = vadd.f32 %v1462, 1.0
  %v1527 = vadd.f32 %v1463, 1.0
  %v1528 = vadd.f32 %v1464, 1.0
  %v1529 = vadd.f32 %v1465, 1.0
  %v1530 = vadd.f32 %v1466, 1.0
  %v1531 = vadd.f32 %v1467, 1.0
  %v1532 = vadd.f32 %v1468, 1.0
  %v1533 = vadd.f32 %v1469, 1.0
  %v1534 = vadd.f32 %v1470, 1.0
  %v1535 = vadd.f32 %v1471, 1.0
  %v1536 = vadd.f32 %v1472, 1.0
  %v1537 = vadd.f32 %v1473, 1.0
  %v1538 = vadd.f32 %v1474, 1.0
  %v1539 = vadd.f32 %v1475, 1.0
  %v1540 = vadd.f32 %v1476, 1.0
  %v1541 = vadd.f32 %v1477, 1.0
  %v1542 = vmul.f32 %v1478, 0.5
  %v1543 = vmul.f32 %v1479, 0.5
  %v1544 = vmul.f32 %v1480, 0.5
  %v1545 = vmul.f32 %v1481, 0.5
  %v1546 = vmul.f32 %v1482, 0.5
  %v1547 = vmul.f32 %v1483, 0.5
  %v1548 = vmul.f32 %v1484, 0.5
  %v1549 = vmul.f32 %v1485, 0.5
  %v1550 = vmul.f32 %v1486, 0.5
  %v1551 = vmul.f32 %v1487, 0.5
  %v1552 = vmul.f32 %v1488, 0.5
  %v1553 = vmul.f32 %v1489, 0.5
  %v1554 = vmul.f32 %v1490, 0.5
  %v1555 = vmul.f32 %v1491, 0.5
  %v1556 = vmul.f32 %v1492, 0.5
  %v1557 = vmul.f32 %v1493, 0.5
  %v1558 = vmul.f32 %v1494, 0.5
  %v1559 = vmul.f32 %v1495, 0.5
  %v1560 = vmul.f32 %v1496, 0.5
  %v1561 = vmul.f32 %v1497, 0.5
  %v1562 = vmul.f32 %v1498, 0.5
  %v1563 = vmul.f32 %v1499, 0.5
  %v1564 = vmul.f32 %v1500, 0.5
  %v1565 = vmul.f32 %v1501, 0.5
  %v1566 = vmul.f32 %v1502, 0.5
  %v1567 = vmul.f32 %v1503, 0.5
  %v1568 = vmul.f32 %v1504, 0.5
  %v1569 = vmul.f32 %v1505, 0.5
  %v1570 = vmul.f32 %v1506, 0.5
  %v1571 = vmul.f32 %v1507, 0.5
  %v1572 = vmul.f32 %v1508, 0.5
  %v1573 = vmul.f32 %v1509, 0.5
  %v1574 = vmul.f32 %v1510, 0.5
  %v1575 = vmul.f32 %v1511, 0.5
  %v1576 = vmul.f32 %v1512, 0.5
  %v1577 = vmul.f32 %v1513, 0.5
  %v1578 = vmul.f32 %v1514, 0.5
  %v1579 = vmul.f32 %v1515, 0.5
  %v1580 = vmul.f32 %v1516, 0.5
  %v1581 = vmul.f32 %v1517, 0.5
  %v1582 = vmul.f32 %v1518, 0.5
  %v1583 = vmul.f32 %v1519, 0.5
  %v1584 = vmul.f32 %v1520, 0.5
  %v1585 = vmul.f32 %v1521, 0.5
  %v1586 = vmul.f32 %v1522, 0.5
  %v1587 = vmul.f32 %v1523, 0.5
  %v1588 = vmul.f32 %v1524, 0.5
  %v1589 = vmul.f32 %v1525, 0.5
  %v1590 = vmul.f32 %v1526, 0.5
  %v1591 = vmul.f32 %v1527, 0.5
  %v1592 = vmul.f32 %v1528, 0.5
  %v1593 = vmul.f32 %v1529, 0.5
  %v1594 = vmul.f32 %v1530, 0.5
  %v1595 = vmul.f32 %v1531, 0.5
  %v1596 = vmul.f32 %v1532, 0.5
  %v1597 = vmul.f32 %v1533, 0.5
  %v1598 = vmul.f32 %v1534, 0.5
  %v1599 = vmul.f32 %v1535, 0.5
  %v1600 = vmul.f32 %v1536, 0.5
  %v1601 = vmul.f32 %v1537, 0.5
  %v1602 = vmul.f32 %v1538, 0.5
  %v1603 = vmul.f32 %v1539, 0.5
  %v1604 = vmul.f32 %v1540, 0.5
  %v1605 = vmul.f32 %v1541, 0.5
  %1606 = vst [vmem:[%s5] sm:$0xff] %v1542
  %1607 = vst [vmem:[%s5 + $0x8] sm:$0xff] %v1543
  %1608 = vst [vmem:[%s5 + $0x10] sm:$0xff] %v1544
  %1609 = vst [vmem:[%s5 + $0x18] sm:$0xff] %v1545
  %1610 = vst [vmem:[%s5 + $0x20] sm:$0xff] %v1546
  %1611 = vst [vmem:[%s5 + $0x28] sm:$0xff] %v1547
  %1612 = vst [vmem:[%s5 + $0x30] sm:$0xff] %v1548
  %1613 = vst [vmem:[%s5 + $0x38] sm:$0xff] %v1549
  %1614 = vst [vmem:[%s5 + $0x40] sm:$0xff] %v1550
  %1615 = vst [vmem:[%s5 + $0x48] sm:$0xff] %v1551
  %1616 = vst [vmem:[%s5 + $0x50] sm:$0xff] %v1552
  %1617 = vst [vmem:[%s5 + $0x58] sm:$0xff] %v1553
  %1618 = vst [vmem:[%s5 + $0x60] sm:$0xff] %v1554
  %1619 = vst [vmem:[%s5 + $0x68] sm:$0xff] %v1555
  %1620 = vst [vmem:[%s5 + $0x70] sm:$0xff] %v1556
  %1621 = vst [vmem:[%s5 + $0x78] sm:$0xff] %v1557
  %1622 = vst [vmem:[%s5 + $0x80] sm:$0xff] %v1558
  %1623 = vst [vmem:[%s5 + $0x88] sm:$0xff] %v1559
  %1624 = vst [vmem:[%s5 + $0x90] sm:$0xff] %v1560
  %1625 = vst [vmem:[%s5 + $0x98] sm:$0xff] %v1561
  %1626 = vst [vmem:[%s5 + $0xa0] sm:$0xff] %v1562
  %1627 = vst [vmem:[%s5 + $0xa8] sm:$0xff] %v1563
  %1628 = vst [vmem:[%s5 + $0xb0] sm:$0xff] %v1564
  %1629 = vst [vmem:[%s5 + $0xb8] sm:$0xff] %v1565
  %1630 = vst [vmem:[%s5 + $0xc0] sm:$0xff] %v1566
  %1631 = vst [vmem:[%s5 + $0xc8] sm:$0xff] %v1567
  %1632 = vst [vmem:[%s5 + $0xd0] sm:$0xff] %v1568
  %1633 = vst [vmem:[%s5 + $0xd8] sm:$0xff] %v1569
  %1634 = vst [vmem:[%s5 + $0xe0] sm:$0xff] %v1570
  %1635 = vst [vmem:[%s5 + $0xe8] sm:$0xff] %v1571
  %1636 = vst [vmem:[%s5 + $0xf0] sm:$0xff] %v1572
  %1637 = vst [vmem:[%s5 + $0xf8] sm:$0xff] %v1573
  %1638 = vst [vmem:[%s5 + $0x100] sm:$0xff] %v1574
  %1639 = vst [vmem:[%s5 + $0x108] sm:$0xff] %v1575
  %1640 = vst [vmem:[%s5 + $0x110] sm:$0xff] %v1576
  %1641 = vst [vmem:[%s5 + $0x118] sm:$0xff] %v1577
  %1642 = vst [vmem:[%s5 + $0x120] sm:$0xff] %v1578
  %1643 = vst [vmem:[%s5 + $0x128] sm:$0xff] %v1579
  %1644 = vst [vmem:[%s5 + $0x130] sm:$0xff] %v1580
  %1645 = vst [vmem:[%s5 + $0x138] sm:$0xff] %v1581
  %1646 = vst [vmem:[%s5 + $0x140] sm:$0xff] %v1582
  %1647 = vst [vmem:[%s5 + $0x148] sm:$0xff] %v1583
  %1648 = vst [vmem:[%s5 + $0x150] sm:$0xff] %v1584
  %1649 = vst [vmem:[%s5 + $0x158] sm:$0xff] %v1585
  %1650 = vst [vmem:[%s5 + $0x160] sm:$0xff] %v1586
  %1651 = vst [vmem:[%s5 + $0x168] sm:$0xff] %v1587
  %1652 = vst [vmem:[%s5 + $0x170] sm:$0xff] %v1588
  %1653 = vst [vmem:[%s5 + $0x178] sm:$0xff] %v1589
  %1654 = vst [vmem:[%s5 + $0x180] sm:$0xff] %v1590
  %1655 = vst [vmem:[%s5 + $0x188] sm:$0xff] %v1591
  %1656 = vst [vmem:[%s5 + $0x190] sm:$0xff] %v1592
  %1657 = vst [vmem:[%s5 + $0x198] sm:$0xff] %v1593
  %1658 = vst [vmem:[%s5 + $0x1a0] sm:$0xff] %v1594
  %1659 = vst [vmem:[%s5 + $0x1a8] sm:$0xff] %v1595
  %1660 = vst [vmem:[%s5 + $0x1b0] sm:$0xff] %v1596
  %1661 = vst [vmem:[%s5 + $0x1b8] sm:$0xff] %v1597
  %1662 = vst [vmem:[%s5 + $0x1c0] sm:$0xff] %v1598
  %1663 = vst [vmem:[%s5 + $0x1c8] sm:$0xff] %v1599
  %1664 = vst [vmem:[%s5 + $0x1d0] sm:$0xff] %v1600
  %1665 = vst [vmem:[%s5 + $0x1d8] sm:$0xff] %v1601
  %1666 = vst [vmem:[%s5 + $0x1e0] sm:$0xff] %v1602
  %1667 = vst [vmem:[%s5 + $0x1e8] sm:$0xff] %v1603
  %1668 = vst [vmem:[%s5 + $0x1f0] sm:$0xff] %v1604
  %1669 = vst [vmem:[%s5 + $0x1f8] sm:$0xff] %v1605
  // Predicated region
  $region22: #{gaussian_vae_forward.9} parent=0 // pred_check
    _
  $region23: #{gaussian_vae_forward.9} parent=0 // pred_check_branch
    %1671 = sbr.rel (0) target = $region25
  $region24: #{gaussian_vae_forward.9} parent=0 // pred_region
    _
  $region25: #{gaussian_vae_forward.9} parent=0 // pred_fallthru
    _
  // Predicated region
  $region26: #{gaussian_vae_forward.9} parent=0 // pred_check
    _
  $region27: #{gaussian_vae_forward.9} parent=0 // pred_check_branch
    %1673 = sbr.rel (0) target = $region29
  $region28: #{gaussian_vae_forward.9} parent=0 // pred_region
    _
  $region29: #{gaussian_vae_forward.9} parent=0 // pred_fallthru
    _

</llo_original>
